<compile_context>
chip_gen: v6e
topology: v6e:2x2x1
jax: 0.10.0
libtpu: 0.0.40
codegen_flags: <defaults>
</compile_context>

<pallas_src>
import jax
import jax.numpy as jnp
from jax import lax
from jax.experimental import pallas as pl
from jax.experimental.pallas import tpu as pltpu


# Rows of x per grid step.  Memory-bound kernel: big tiles are the lever that
# amortizes the ~0.35 us fixed per-step cost.  8192 is safe on every
# generation (see VMEM budget above) while keeping grids >= 2 on large N.
_TILE_N = 8192

# Below this row count the problem is pure launch overhead; hand it to XLA so
# it can fuse with the producer of x['evt'] and the bias add.
_PALLAS_MIN_ROWS = 4096


def _vertex_linear_kernel(w_ref, x_ref, b_ref, o_ref):
    """Lane-dense hot path: o[3, TILE_N] = W[3, F] . x[TILE_N, F]^T + b[3, 1].

    Contraction is over the feature axis, so each output column depends only
    on its own input row -- garbage rows in a padded partial x block only
    produce garbage in the masked-off output columns.
    """
    acc = lax.dot_general(
        w_ref[...], x_ref[...],
        dimension_numbers=(((1,), (1,)), ((), ())),
        preferred_element_type=jnp.float32,
    )
    o_ref[...] = (acc + b_ref[...]).astype(o_ref.dtype)


def prepare_vertex_decoder_params(weight: jax.Array, bias: jax.Array):
    """Hoisted ONCE (not per forward call).

    Args:
      weight: [3, F] torch nn.Linear.weight convention (used as-is now).
      bias:   [3].

    Returns:
      (w [3, F], b_col [3, 1]) ready for the lane-dense kernel.
    """
    return weight, bias.reshape(-1, 1)


def vertex_decoder_forward(x_evt: jax.Array, w: jax.Array, b_col: jax.Array):
    """Pallas implementation of VertexDecoder.forward.

    Args:
      x_evt: [N, F] float32 interaction-level features (x['evt']).
      w:     [3, F] float32 weight (torch convention, from prepare_*).
      b_col: [3, 1] float32 bias column (from prepare_*).

    Returns:
      {'v': {'evt': [N, 3] float32}}  — same nested-dict structure as PyTorch.
    """
    n, f = x_evt.shape
    out_dim = w.shape[0]

    if n < _PALLAS_MIN_ROWS:
        # Micro path: a ~KFLOP problem is pure launch overhead in any custom
        # call; plain XLA fuses this with x['evt']'s producer and the bias add.
        y = x_evt @ w.T + b_col[:, 0]
        return {"v": {"evt": y}}

    # Streaming path: tile only over N with large blocks; weight / bias are
    # replicated (same block at every grid point).  Output is emitted
    # lane-dense as [3, N] and transposed once in the wrapper.  A partial
    # final block (N % _TILE_N != 0) is handled by Pallas masked writeback.
    grid_n = pl.cdiv(n, _TILE_N)
    y_t = pl.pallas_call(
        _vertex_linear_kernel,
        out_shape=jax.ShapeDtypeStruct((out_dim, n), x_evt.dtype),
        grid=(grid_n,),
        in_specs=[
            pl.BlockSpec((out_dim, f), lambda i: (0, 0)),    # W, replicated
            pl.BlockSpec((_TILE_N, f), lambda i: (i, 0)),    # x, tiled over rows
            pl.BlockSpec((out_dim, 1), lambda i: (0, 0)),    # bias, replicated
        ],
        out_specs=pl.BlockSpec((out_dim, _TILE_N), lambda i: (0, i)),
        compiler_params=pltpu.CompilerParams(
            # Splits across v7x's 2 TCs whenever grid_n >= 2; no-op on v5e/v6e.
            dimension_semantics=("parallel",)),
        cost_estimate=pl.CostEstimate(
            flops=2 * n * f * out_dim,
            transcendentals=0,
            bytes_accessed=4 * (n * f + n * out_dim + f * out_dim + out_dim)),
    )(w, x_evt, b_col)

    return {"v": {"evt": y_t.T}}


def init_vertex_decoder_params(interaction_features: int, key: jax.Array):
    """Deterministic nn.Linear(interaction_features, 3) init (uniform ±1/sqrt(F)).

    Returns torch-convention (weight [3, F], bias [3]); call
    prepare_vertex_decoder_params once to get the kernel layout.
    """
    k_w, k_b = jax.random.split(key)
    bound = 1.0 / jnp.sqrt(jnp.float32(interaction_features))
    weight = jax.random.uniform(
        k_w, (3, interaction_features), jnp.float32, -bound, bound)
    bias = jax.random.uniform(k_b, (3,), jnp.float32, -bound, bound)
    return weight, bias


if __name__ == "__main__":
    key = jax.random.PRNGKey(0)
    k_x, k_p, k_big = jax.random.split(key, 3)

    # Small shapes implied by the module: a batch of 8 "evt" nodes with 32
    # interaction features each; VertexDecoder regresses 3 vertex coordinates.
    n_evt, interaction_features = 8, 32
    x_evt = jax.random.normal(k_x, (n_evt, interaction_features), jnp.float32)

    weight, bias = init_vertex_decoder_params(interaction_features, k_p)
    w, b_col = prepare_vertex_decoder_params(weight, bias)  # hoisted once

    # --- micro-batch path (plain XLA; fuses with upstream in real use) ---
    out = vertex_decoder_forward(x_evt, w, b_col)
    y = jax.block_until_ready(out["v"]["evt"])
    y_ref = x_evt @ weight.T + bias
    assert y.shape == (n_evt, 3)
    assert jnp.allclose(y, y_ref, atol=1e-5, rtol=1e-5)

    # --- streaming Pallas path: N NOT divisible by _TILE_N (exercises the
    #     masked partial final block) and grid >= 2 (exercises the parallel
    #     axis / replicated-weight indexing). ---
    n_big = 12_388
    x_big = jax.random.normal(k_big, (n_big, interaction_features), jnp.float32)
    out_big = vertex_decoder_forward(x_big, w, b_col)
    y_big = jax.block_until_ready(out_big["v"]["evt"])
    y_big_ref = x_big @ weight.T + bias
    assert y_big.shape == (n_big, 3)
    assert jnp.allclose(y_big, y_big_ref, atol=1e-4, rtol=1e-4)

    print("KERNEL_OK")
</pallas_src>

<mosaic_0001>
module attributes {stable_mosaic.version = 11 : i64} {
  func.func @_vertex_linear_kernel(%arg0: i32, %arg1: memref<3x32xf32, #tpu.memory_space<vmem>>, %arg2: memref<8192x32xf32, #tpu.memory_space<vmem>>, %arg3: memref<3x1xf32, #tpu.memory_space<vmem>>, %arg4: memref<3x8192xf32, #tpu.memory_space<vmem>>) attributes {dimension_semantics = [#tpu.dimension_semantics<parallel>], iteration_bounds = array<i64: 2>, scalar_prefetch = 0 : i64, scratch_operands = 0 : i64, tpu.core_type = #tpu.core_type<tc>, window_params = [{pipeline_mode = #tpu.pipeline_mode<synchronous>, transform_indices = @transform_0, window_bounds = array<i64: 3, 32>}, {transform_indices = @transform_1, window_bounds = array<i64: 8192, 32>}, {pipeline_mode = #tpu.pipeline_mode<synchronous>, transform_indices = @transform_2, window_bounds = array<i64: 3, 1>}, {transform_indices = @transform_3, window_bounds = array<i64: 3, 8192>}]} {
    %c0 = arith.constant 0 : index
    %c0_0 = arith.constant 0 : index
    %0 = vector.load %arg1[%c0, %c0_0] : memref<3x32xf32, #tpu.memory_space<vmem>>, vector<3x32xf32>
    %c0_1 = arith.constant 0 : index
    %c0_2 = arith.constant 0 : index
    %1 = vector.load %arg2[%c0_1, %c0_2] : memref<8192x32xf32, #tpu.memory_space<vmem>>, vector<8192x32xf32>
    %cst = arith.constant dense<0.000000e+00> : vector<3x8192xf32>
    %2 = tpu.matmul %0, %1, %cst {dimension_numbers = #tpu.dot_dimension_numbers<[1], [1], [0], [0], [0, 0, 1, 0], [], []>} : vector<3x32xf32>, vector<8192x32xf32>, vector<3x8192xf32> -> vector<3x8192xf32>
    %c0_3 = arith.constant 0 : index
    %c0_4 = arith.constant 0 : index
    %3 = vector.load %arg3[%c0_3, %c0_4] : memref<3x1xf32, #tpu.memory_space<vmem>>, vector<3x1xf32>
    %4 = vector.broadcast %3 : vector<3x1xf32> to vector<3x8192xf32>
    %5 = arith.addf %2, %4 : vector<3x8192xf32>
    %c0_5 = arith.constant 0 : index
    %c0_6 = arith.constant 0 : index
    %6 = vector.load %arg4[%c0_5, %c0_6] : memref<3x8192xf32, #tpu.memory_space<vmem>>, vector<3x8192xf32>
    tpu.vector_store %arg4[%c0_5, %c0_6], %5 {strides = array<i32>} : memref<3x8192xf32, #tpu.memory_space<vmem>>, vector<3x8192xf32>,
    return
  }
  func.func @transform_0(%arg0: i32) -> (i32, i32) {
    %c0_i32 = arith.constant 0 : i32
    %c0_i32_0 = arith.constant 0 : i32
    %c0_i32_1 = arith.constant 0 : i32
    return %c0_i32, %c0_i32_0 : i32, i32
  }
  func.func @transform_1(%arg0: i32) -> (i32, i32) {
    %c0_i32 = arith.constant 0 : i32
    %c0_i32_0 = arith.constant 0 : i32
    return %arg0, %c0_i32 : i32, i32
  }
  func.func @transform_2(%arg0: i32) -> (i32, i32) {
    %c0_i32 = arith.constant 0 : i32
    %c0_i32_0 = arith.constant 0 : i32
    %c0_i32_1 = arith.constant 0 : i32
    return %c0_i32, %c0_i32_0 : i32, i32
  }
  func.func @transform_3(%arg0: i32) -> (i32, i32) {
    %c0_i32 = arith.constant 0 : i32
    %c0_i32_0 = arith.constant 0 : i32
    return %c0_i32, %arg0 : i32, i32
  }
}

</mosaic_0001>

<llo_original>
// kernel: tpu_custom_call.1
$region0: #{tpu_custom_call.1}
  #allocation0 [shape = 'u32[]', space=smem, size = 0x4, offset = 0x4, fixed_abs, tag = 'smem constant byte address 0x4 - core index']
  #allocation1 [shape = 'u32[144,128]{1,0:T(1,128)}', space=vmem, size = 0x12000, scoped, tag = 'internal scratch']
  %s0 = inlined_call_operand.vmem [shape: f32[3,32], index: 0, kind: input, shape index: {}]
  %s1 = inlined_call_operand.vmem [shape: f32[12388,32], index: 1, kind: input, shape index: {}]
  %s2 = inlined_call_operand.vmem [shape: f32[3,1], index: 2, kind: input, shape index: {}]
  %s3 = inlined_call_operand.hbm [shape: f32[3,12388], index: 3, kind: output, shape index: {}]
  %s4 = sld [smem:[#allocation0]]
  $region45: #{tpu_custom_call.1} parent=0
    _
  %s6 = ssub.s32 1, %s4
  %s7 = scalar_select 0, %s6, %s4
  $region1: #{tpu_custom_call.1} parent=0
    #allocation2 [shape = 'u8[262144]{0}', space=vmem, size = 0x40000, scoped, tag = 'output window, operand 0']
    #allocation3 [shape = 's32[2]{0}', space=sflag, size = 0x8, scoped, tag = 'scoped memory for tpu_custom_call.1']
    %8 = vsyncpa [#allocation3], 0
    %s9 = scalar_lea.sflag [#allocation3], 1
    %10 = vsyncpa %s9, 0
    loop: start=0, step=1, limit=4
    $region2: #{tpu_custom_call.1} parent=1 // loop_pre_header
      _
    $region3: #{tpu_custom_call.1} parent=1 // loop_header
      %s12 = sphi 0, %s16
      %p13 = scmp.ge.s32.totalorder %s12, 4
      %s20 = sphi 0, %s20
      %s22 = sphi 0, %s20
      %s23 = sphi 0, %s22
      %s37 = sphi 0, %s23
      %s43 = sphi 0, %s45
      %s46 = sphi 0, %s43
      %s47 = sphi 0, %s46
      %s63 = sphi 0, %s47
      %s67 = sphi 0, %s67
      %s69 = sphi 0, %s67
      %s70 = sphi 0, %s69
      %s84 = sphi 0, %s70
      %s90 = sphi 0, %s92
      %s93 = sphi 0, %s90
      %s94 = sphi 0, %s93
      %s110 = sphi 0, %s94
    $region4: #{tpu_custom_call.1} parent=1 // loop_header_branch
      %15 = sbr.rel (%p13) target = $region8
    $region5: #{tpu_custom_call.1} parent=1 // loop_body
      %s17 = ssub.s32 %s12, 1
      %s18 = ssub.s32 %s12, 2
      %s19 = sadd.s32 %s12, 1
      %s21 = sadd.s32 %s20, 1
      %p24 = scmp.eq.s32.totalorder %s12, 1
      %p25 = scmp.ne.s32.totalorder %s20, %s22
      %p26 = scmp.eq.s32.totalorder %s12, 0
      %p27 = por %p25, %p26
      %p28 = scmp.ne.s32.totalorder %s20, %s22
      %p29 = scmp.eq.s32.totalorder %s17, 1
      %p30 = por %p28, %p29
      %p31 = scmp.ne.s32.totalorder %s22, %s23
      %p32 = scmp.eq.s32.totalorder %s17, 0
      %p33 = por %p31, %p32
      %p34 = scmp.ne.s32.totalorder %s22, %s23
      %p35 = scmp.eq.s32.totalorder %s18, 1
      %p36 = por %p34, %p35
      %p38 = scmp.ne.s32.totalorder %s23, %s37
      %p39 = scmp.eq.s32.totalorder %s18, 0
      %p40 = por %p38, %p39
      %s41 = ssub.s32 %s12, %s19
      %p42 = scmp.eq.s32.totalorder %s41, 0
      %s44 = sadd.s32 %s43, 1
      %s45 = scalar_select %p42, %s43, %s44
      %p48 = pneg %p42
      %p49 = scmp.eq.s32.totalorder %s12, 1
      %p50 = por %p48, %p49
      %p51 = scmp.ne.s32.totalorder %s43, %s46
      %p52 = scmp.eq.s32.totalorder %s12, 0
      %p53 = por %p51, %p52
      %p54 = scmp.ne.s32.totalorder %s43, %s46
      %p55 = scmp.eq.s32.totalorder %s17, 1
      %p56 = por %p54, %p55
      %p57 = scmp.ne.s32.totalorder %s46, %s47
      %p58 = scmp.eq.s32.totalorder %s17, 0
      %p59 = por %p57, %p58
      %p60 = scmp.ne.s32.totalorder %s46, %s47
      %p61 = scmp.eq.s32.totalorder %s18, 1
      %p62 = por %p60, %p61
      %p64 = scmp.ne.s32.totalorder %s47, %s63
      %p65 = scmp.eq.s32.totalorder %s18, 0
      %p66 = por %p64, %p65
      %s68 = sadd.s32 %s67, 1
      %p71 = scmp.eq.s32.totalorder %s12, 1
      %p72 = scmp.ne.s32.totalorder %s67, %s69
      %p73 = scmp.eq.s32.totalorder %s12, 0
      %p74 = por %p72, %p73
      %p75 = scmp.ne.s32.totalorder %s67, %s69
      %p76 = scmp.eq.s32.totalorder %s17, 1
      %p77 = por %p75, %p76
      %p78 = scmp.ne.s32.totalorder %s69, %s70
      %p79 = scmp.eq.s32.totalorder %s17, 0
      %p80 = por %p78, %p79
      %p81 = scmp.ne.s32.totalorder %s69, %s70
      %p82 = scmp.eq.s32.totalorder %s18, 1
      %p83 = por %p81, %p82
      %p85 = scmp.ne.s32.totalorder %s70, %s84
      %p86 = scmp.eq.s32.totalorder %s18, 0
      %p87 = por %p85, %p86
      %s88 = ssub.s32 %s12, %s19
      %p89 = scmp.eq.s32.totalorder %s88, 0
      %s91 = sadd.s32 %s90, 1
      %s92 = scalar_select %p89, %s90, %s91
      %p95 = pneg %p89
      %p96 = scmp.eq.s32.totalorder %s12, 1
      %p97 = por %p95, %p96
      %p98 = scmp.ne.s32.totalorder %s90, %s93
      %p99 = scmp.eq.s32.totalorder %s12, 0
      %p100 = por %p98, %p99
      %p101 = scmp.ne.s32.totalorder %s90, %s93
      %p102 = scmp.eq.s32.totalorder %s17, 1
      %p103 = por %p101, %p102
      %p104 = scmp.ne.s32.totalorder %s93, %s94
      %p105 = scmp.eq.s32.totalorder %s17, 0
      %p106 = por %p104, %p105
      %p107 = scmp.ne.s32.totalorder %s93, %s94
      %p108 = scmp.eq.s32.totalorder %s18, 1
      %p109 = por %p107, %p108
      %p111 = scmp.ne.s32.totalorder %s94, %s110
      %p112 = scmp.eq.s32.totalorder %s18, 0
      %p113 = por %p111, %p112
      %p114 = scmp.le.s32.totalorder 1, %s12
      %p115 = scmp.lt.s32.totalorder %s12, 3
      %p116 = pnand %p114, %p115
      %p117 = pneg %p116
      // Predicated region
      $region9: #{tpu_custom_call.1} parent=5 // pred_check
        _
      $region10: #{tpu_custom_call.1} parent=5 // pred_check_branch
        %119 = sbr.rel (%p116) target = $region12
      $region11: #{tpu_custom_call.1} parent=5 // pred_region
        %s120 = ssub.s32 %s12, 1
        // Predicated region
        $region13: #{tpu_custom_call.1} parent=11 // pred_check
          %p121 = pneg %p33
        $region14: #{tpu_custom_call.1} parent=11 // pred_check_branch
          %123 = sbr.rel (%p121) target = $region16
        $region15: #{tpu_custom_call.1} parent=11 // pred_region
          _
        $region16: #{tpu_custom_call.1} parent=11 // pred_fallthru
          _
        // Predicated region
        $region17: #{tpu_custom_call.1} parent=11 // pred_check
          %p124 = pneg %p80
        $region18: #{tpu_custom_call.1} parent=11 // pred_check_branch
          %126 = sbr.rel (%p124) target = $region20
        $region19: #{tpu_custom_call.1} parent=11 // pred_region
          _
        $region20: #{tpu_custom_call.1} parent=11 // pred_fallthru
          _
      $region12: #{tpu_custom_call.1} parent=5 // pred_fallthru
        _
      %p127 = scmp.lt.s32.totalorder %s12, 2
      // Predicated region
      $region21: #{tpu_custom_call.1} parent=5 // pred_check
        %p128 = pneg %p127
      $region22: #{tpu_custom_call.1} parent=5 // pred_check_branch
        %130 = sbr.rel (%p128) target = $region24
      $region23: #{tpu_custom_call.1} parent=5 // pred_region
        // Predicated region
        $region25: #{tpu_custom_call.1} parent=23 // pred_check
          %p131 = pneg %p53
        $region26: #{tpu_custom_call.1} parent=23 // pred_check_branch
          %133 = sbr.rel (%p131) target = $region28
        $region27: #{tpu_custom_call.1} parent=23 // pred_region
          %s134 = smul.u32 1024, %s12
          %s135 = ssub.s32 1549, %s134
          %p136 = scmp.lt.s32.totalorder %s135, 1024
          %s137 = scalar_select %p136, %s135, 1024
          %s138 = smul.u32 128, %s137
          %p139 = scmp.lt.s32.totalorder %s134, 1548
          %s140 = scalar_select %p139, %s134, 1548
          %s141 = smul.addr %s140, 8
          %s142 = scalar_lea.vmem %s1, %s141
          %s143 = smul.u32 1024, %s12
          %s144 = ssub.s32 1549, %s143
          %p145 = scmp.lt.s32.totalorder %s144, 1024
          %s146 = scalar_select %p145, %s144, 1024
          %s147 = smul.u32 128, %s146
        $region28: #{tpu_custom_call.1} parent=23 // pred_fallthru
          _
      $region24: #{tpu_custom_call.1} parent=5 // pred_fallthru
        _
      %p148 = scmp.le.s32.totalorder 1, %s12
      %p149 = scmp.lt.s32.totalorder %s12, 3
      %p150 = pnand %p148, %p149
      %p151 = pneg %p150
      // Predicated region
      $region29: #{tpu_custom_call.1} parent=5 // pred_check
        _
      $region30: #{tpu_custom_call.1} parent=5 // pred_check_branch
        %153 = sbr.rel (%p150) target = $region32
      $region31: #{tpu_custom_call.1} parent=5 // pred_region
        %s154 = ssub.s32 %s12, 1
        %p155 = pneg %p33
        %p156 = pneg %p30
        %s157 = smul.u32 1024, %s17
        %s158 = ssub.s32 1549, %s157
        %p159 = scmp.lt.s32.totalorder %s158, 1024
        %s160 = scalar_select %p159, %s158, 1024
        %s161 = smul.u32 128, %s160
        %p162 = scmp.lt.s32.totalorder %s157, 1548
        %s163 = scalar_select %p162, %s157, 1548
        %s164 = smul.addr %s163, 8
        %s165 = scalar_lea.vmem %s1, %s164
        %p166 = pneg %p59
        %p167 = pneg %p56
        %p168 = pneg %p80
        %p169 = pneg %p77
        %p170 = pneg %p106
        %p171 = pneg %p103
        %s172 = sand.u32 %s93, 1
        %s173 = scalar_lea.sflag [#allocation3], %s172
        %s174 = sand.u32 %s93, 1
        %s175 = smul.addr %s174, 256
        %s176 = scalar_lea.vmem [#allocation2], %s175
        %s177 = smul.u32 1024, %s17
        %s178 = ssub.s32 1549, %s177
        %p179 = scmp.lt.s32.totalorder %s178, 1024
        %s180 = scalar_select %p179, %s178, 1024
        %s181 = smul.u32 128, %s180
        %p182 = scmp.lt.s32.totalorder %s177, 1548
        %s183 = scalar_select %p182, %s177, 1548
        %s184 = smul.addr %s183, 8
        %s185 = scalar_lea.vmem %s1, %s184
        %s186 = smul.u32 1024, %s17
        %s187 = ssub.s32 1549, %s186
        %p188 = scmp.lt.s32.totalorder %s187, 1024
        %s189 = scalar_select %p188, %s187, 1024
        %s190 = smul.u32 128, %s189
        %s191 = smul.u32 64, %s17
        %s192 = ssub.s32 97, %s191
        %p193 = scmp.lt.s32.totalorder %s192, 64
        %s194 = scalar_select %p193, %s192, 64
        %s195 = smul.u32 64, %s194
        %v196 = vld [vmem:[%s0] sm:$0x7]
        %v197 = vld [vmem:[%s185] sm:$0xff]
        %v198 = vld [vmem:[%s185 + $0x8] sm:$0xff]
        %v199 = vld [vmem:[%s185 + $0x10] sm:$0xff]
        %v200 = vld [vmem:[%s185 + $0x18] sm:$0xff]
        %v201 = vld [vmem:[%s185 + $0x20] sm:$0xff]
        %v202 = vld [vmem:[%s185 + $0x28] sm:$0xff]
        %v203 = vld [vmem:[%s185 + $0x30] sm:$0xff]
        %v204 = vld [vmem:[%s185 + $0x38] sm:$0xff]
        %v205 = vld [vmem:[%s185 + $0x40] sm:$0xff]
        %v206 = vld [vmem:[%s185 + $0x48] sm:$0xff]
        %v207 = vld [vmem:[%s185 + $0x50] sm:$0xff]
        %v208 = vld [vmem:[%s185 + $0x58] sm:$0xff]
        %v209 = vld [vmem:[%s185 + $0x60] sm:$0xff]
        %v210 = vld [vmem:[%s185 + $0x68] sm:$0xff]
        %v211 = vld [vmem:[%s185 + $0x70] sm:$0xff]
        %v212 = vld [vmem:[%s185 + $0x78] sm:$0xff]
        %v213 = vld [vmem:[%s185 + $0x80] sm:$0xff]
        %v214 = vld [vmem:[%s185 + $0x88] sm:$0xff]
        %v215 = vld [vmem:[%s185 + $0x90] sm:$0xff]
        %v216 = vld [vmem:[%s185 + $0x98] sm:$0xff]
        %v217 = vld [vmem:[%s185 + $0xa0] sm:$0xff]
        %v218 = vld [vmem:[%s185 + $0xa8] sm:$0xff]
        %v219 = vld [vmem:[%s185 + $0xb0] sm:$0xff]
        %v220 = vld [vmem:[%s185 + $0xb8] sm:$0xff]
        %v221 = vld [vmem:[%s185 + $0xc0] sm:$0xff]
        %v222 = vld [vmem:[%s185 + $0xc8] sm:$0xff]
        %v223 = vld [vmem:[%s185 + $0xd0] sm:$0xff]
        %v224 = vld [vmem:[%s185 + $0xd8] sm:$0xff]
        %v225 = vld [vmem:[%s185 + $0xe0] sm:$0xff]
        %v226 = vld [vmem:[%s185 + $0xe8] sm:$0xff]
        %v227 = vld [vmem:[%s185 + $0xf0] sm:$0xff]
        %v228 = vld [vmem:[%s185 + $0xf8] sm:$0xff]
        %v229 = vld [vmem:[%s185 + $0x100] sm:$0xff]
        %v230 = vld [vmem:[%s185 + $0x108] sm:$0xff]
        %v231 = vld [vmem:[%s185 + $0x110] sm:$0xff]
        %v232 = vld [vmem:[%s185 + $0x118] sm:$0xff]
        %v233 = vld [vmem:[%s185 + $0x120] sm:$0xff]
        %v234 = vld [vmem:[%s185 + $0x128] sm:$0xff]
        %v235 = vld [vmem:[%s185 + $0x130] sm:$0xff]
        %v236 = vld [vmem:[%s185 + $0x138] sm:$0xff]
        %v237 = vld [vmem:[%s185 + $0x140] sm:$0xff]
        %v238 = vld [vmem:[%s185 + $0x148] sm:$0xff]
        %v239 = vld [vmem:[%s185 + $0x150] sm:$0xff]
        %v240 = vld [vmem:[%s185 + $0x158] sm:$0xff]
        %v241 = vld [vmem:[%s185 + $0x160] sm:$0xff]
        %v242 = vld [vmem:[%s185 + $0x168] sm:$0xff]
        %v243 = vld [vmem:[%s185 + $0x170] sm:$0xff]
        %v244 = vld [vmem:[%s185 + $0x178] sm:$0xff]
        %v245 = vld [vmem:[%s185 + $0x180] sm:$0xff]
        %v246 = vld [vmem:[%s185 + $0x188] sm:$0xff]
        %v247 = vld [vmem:[%s185 + $0x190] sm:$0xff]
        %v248 = vld [vmem:[%s185 + $0x198] sm:$0xff]
        %v249 = vld [vmem:[%s185 + $0x1a0] sm:$0xff]
        %v250 = vld [vmem:[%s185 + $0x1a8] sm:$0xff]
        %v251 = vld [vmem:[%s185 + $0x1b0] sm:$0xff]
        %v252 = vld [vmem:[%s185 + $0x1b8] sm:$0xff]
        %v253 = vld [vmem:[%s185 + $0x1c0] sm:$0xff]
        %v254 = vld [vmem:[%s185 + $0x1c8] sm:$0xff]
        %v255 = vld [vmem:[%s185 + $0x1d0] sm:$0xff]
        %v256 = vld [vmem:[%s185 + $0x1d8] sm:$0xff]
        %v257 = vld [vmem:[%s185 + $0x1e0] sm:$0xff]
        %v258 = vld [vmem:[%s185 + $0x1e8] sm:$0xff]
        %v259 = vld [vmem:[%s185 + $0x1f0] sm:$0xff]
        %v260 = vld [vmem:[%s185 + $0x1f8] sm:$0xff]
        %v261 = vld [vmem:[%s185 + $0x200] sm:$0xff]
        %v262 = vld [vmem:[%s185 + $0x208] sm:$0xff]
        %v263 = vld [vmem:[%s185 + $0x210] sm:$0xff]
        %v264 = vld [vmem:[%s185 + $0x218] sm:$0xff]
        %v265 = vld [vmem:[%s185 + $0x220] sm:$0xff]
        %v266 = vld [vmem:[%s185 + $0x228] sm:$0xff]
        %v267 = vld [vmem:[%s185 + $0x230] sm:$0xff]
        %v268 = vld [vmem:[%s185 + $0x238] sm:$0xff]
        %v269 = vld [vmem:[%s185 + $0x240] sm:$0xff]
        %v270 = vld [vmem:[%s185 + $0x248] sm:$0xff]
        %v271 = vld [vmem:[%s185 + $0x250] sm:$0xff]
        %v272 = vld [vmem:[%s185 + $0x258] sm:$0xff]
        %v273 = vld [vmem:[%s185 + $0x260] sm:$0xff]
        %v274 = vld [vmem:[%s185 + $0x268] sm:$0xff]
        %v275 = vld [vmem:[%s185 + $0x270] sm:$0xff]
        %v276 = vld [vmem:[%s185 + $0x278] sm:$0xff]
        %v277 = vld [vmem:[%s185 + $0x280] sm:$0xff]
        %v278 = vld [vmem:[%s185 + $0x288] sm:$0xff]
        %v279 = vld [vmem:[%s185 + $0x290] sm:$0xff]
        %v280 = vld [vmem:[%s185 + $0x298] sm:$0xff]
        %v281 = vld [vmem:[%s185 + $0x2a0] sm:$0xff]
        %v282 = vld [vmem:[%s185 + $0x2a8] sm:$0xff]
        %v283 = vld [vmem:[%s185 + $0x2b0] sm:$0xff]
        %v284 = vld [vmem:[%s185 + $0x2b8] sm:$0xff]
        %v285 = vld [vmem:[%s185 + $0x2c0] sm:$0xff]
        %v286 = vld [vmem:[%s185 + $0x2c8] sm:$0xff]
        %v287 = vld [vmem:[%s185 + $0x2d0] sm:$0xff]
        %v288 = vld [vmem:[%s185 + $0x2d8] sm:$0xff]
        %v289 = vld [vmem:[%s185 + $0x2e0] sm:$0xff]
        %v290 = vld [vmem:[%s185 + $0x2e8] sm:$0xff]
        %v291 = vld [vmem:[%s185 + $0x2f0] sm:$0xff]
        %v292 = vld [vmem:[%s185 + $0x2f8] sm:$0xff]
        %v293 = vld [vmem:[%s185 + $0x300] sm:$0xff]
        %v294 = vld [vmem:[%s185 + $0x308] sm:$0xff]
        %v295 = vld [vmem:[%s185 + $0x310] sm:$0xff]
        %v296 = vld [vmem:[%s185 + $0x318] sm:$0xff]
        %v297 = vld [vmem:[%s185 + $0x320] sm:$0xff]
        %v298 = vld [vmem:[%s185 + $0x328] sm:$0xff]
        %v299 = vld [vmem:[%s185 + $0x330] sm:$0xff]
        %v300 = vld [vmem:[%s185 + $0x338] sm:$0xff]
        %v301 = vld [vmem:[%s185 + $0x340] sm:$0xff]
        %v302 = vld [vmem:[%s185 + $0x348] sm:$0xff]
        %v303 = vld [vmem:[%s185 + $0x350] sm:$0xff]
        %v304 = vld [vmem:[%s185 + $0x358] sm:$0xff]
        %v305 = vld [vmem:[%s185 + $0x360] sm:$0xff]
        %v306 = vld [vmem:[%s185 + $0x368] sm:$0xff]
        %v307 = vld [vmem:[%s185 + $0x370] sm:$0xff]
        %v308 = vld [vmem:[%s185 + $0x378] sm:$0xff]
        %v309 = vld [vmem:[%s185 + $0x380] sm:$0xff]
        %v310 = vld [vmem:[%s185 + $0x388] sm:$0xff]
        %v311 = vld [vmem:[%s185 + $0x390] sm:$0xff]
        %v312 = vld [vmem:[%s185 + $0x398] sm:$0xff]
        %v313 = vld [vmem:[%s185 + $0x3a0] sm:$0xff]
        %v314 = vld [vmem:[%s185 + $0x3a8] sm:$0xff]
        %v315 = vld [vmem:[%s185 + $0x3b0] sm:$0xff]
        %v316 = vld [vmem:[%s185 + $0x3b8] sm:$0xff]
        %v317 = vld [vmem:[%s185 + $0x3c0] sm:$0xff]
        %v318 = vld [vmem:[%s185 + $0x3c8] sm:$0xff]
        %v319 = vld [vmem:[%s185 + $0x3d0] sm:$0xff]
        %v320 = vld [vmem:[%s185 + $0x3d8] sm:$0xff]
        %v321 = vld [vmem:[%s185 + $0x3e0] sm:$0xff]
        %v322 = vld [vmem:[%s185 + $0x3e8] sm:$0xff]
        %v323 = vld [vmem:[%s185 + $0x3f0] sm:$0xff]
        %v324 = vld [vmem:[%s185 + $0x3f8] sm:$0xff]
        %v325 = vld [vmem:[%s185 + $0x400] sm:$0xff]
        %v326 = vld [vmem:[%s185 + $0x408] sm:$0xff]
        %v327 = vld [vmem:[%s185 + $0x410] sm:$0xff]
        %v328 = vld [vmem:[%s185 + $0x418] sm:$0xff]
        %v329 = vld [vmem:[%s185 + $0x420] sm:$0xff]
        %v330 = vld [vmem:[%s185 + $0x428] sm:$0xff]
        %v331 = vld [vmem:[%s185 + $0x430] sm:$0xff]
        %v332 = vld [vmem:[%s185 + $0x438] sm:$0xff]
        %v333 = vld [vmem:[%s185 + $0x440] sm:$0xff]
        %v334 = vld [vmem:[%s185 + $0x448] sm:$0xff]
        %v335 = vld [vmem:[%s185 + $0x450] sm:$0xff]
        %v336 = vld [vmem:[%s185 + $0x458] sm:$0xff]
        %v337 = vld [vmem:[%s185 + $0x460] sm:$0xff]
        %v338 = vld [vmem:[%s185 + $0x468] sm:$0xff]
        %v339 = vld [vmem:[%s185 + $0x470] sm:$0xff]
        %v340 = vld [vmem:[%s185 + $0x478] sm:$0xff]
        %v341 = vld [vmem:[%s185 + $0x480] sm:$0xff]
        %v342 = vld [vmem:[%s185 + $0x488] sm:$0xff]
        %v343 = vld [vmem:[%s185 + $0x490] sm:$0xff]
        %v344 = vld [vmem:[%s185 + $0x498] sm:$0xff]
        %v345 = vld [vmem:[%s185 + $0x4a0] sm:$0xff]
        %v346 = vld [vmem:[%s185 + $0x4a8] sm:$0xff]
        %v347 = vld [vmem:[%s185 + $0x4b0] sm:$0xff]
        %v348 = vld [vmem:[%s185 + $0x4b8] sm:$0xff]
        %v349 = vld [vmem:[%s185 + $0x4c0] sm:$0xff]
        %v350 = vld [vmem:[%s185 + $0x4c8] sm:$0xff]
        %v351 = vld [vmem:[%s185 + $0x4d0] sm:$0xff]
        %v352 = vld [vmem:[%s185 + $0x4d8] sm:$0xff]
        %v353 = vld [vmem:[%s185 + $0x4e0] sm:$0xff]
        %v354 = vld [vmem:[%s185 + $0x4e8] sm:$0xff]
        %v355 = vld [vmem:[%s185 + $0x4f0] sm:$0xff]
        %v356 = vld [vmem:[%s185 + $0x4f8] sm:$0xff]
        %v357 = vld [vmem:[%s185 + $0x500] sm:$0xff]
        %v358 = vld [vmem:[%s185 + $0x508] sm:$0xff]
        %v359 = vld [vmem:[%s185 + $0x510] sm:$0xff]
        %v360 = vld [vmem:[%s185 + $0x518] sm:$0xff]
        %v361 = vld [vmem:[%s185 + $0x520] sm:$0xff]
        %v362 = vld [vmem:[%s185 + $0x528] sm:$0xff]
        %v363 = vld [vmem:[%s185 + $0x530] sm:$0xff]
        %v364 = vld [vmem:[%s185 + $0x538] sm:$0xff]
        %v365 = vld [vmem:[%s185 + $0x540] sm:$0xff]
        %v366 = vld [vmem:[%s185 + $0x548] sm:$0xff]
        %v367 = vld [vmem:[%s185 + $0x550] sm:$0xff]
        %v368 = vld [vmem:[%s185 + $0x558] sm:$0xff]
        %v369 = vld [vmem:[%s185 + $0x560] sm:$0xff]
        %v370 = vld [vmem:[%s185 + $0x568] sm:$0xff]
        %v371 = vld [vmem:[%s185 + $0x570] sm:$0xff]
        %v372 = vld [vmem:[%s185 + $0x578] sm:$0xff]
        %v373 = vld [vmem:[%s185 + $0x580] sm:$0xff]
        %v374 = vld [vmem:[%s185 + $0x588] sm:$0xff]
        %v375 = vld [vmem:[%s185 + $0x590] sm:$0xff]
        %v376 = vld [vmem:[%s185 + $0x598] sm:$0xff]
        %v377 = vld [vmem:[%s185 + $0x5a0] sm:$0xff]
        %v378 = vld [vmem:[%s185 + $0x5a8] sm:$0xff]
        %v379 = vld [vmem:[%s185 + $0x5b0] sm:$0xff]
        %v380 = vld [vmem:[%s185 + $0x5b8] sm:$0xff]
        %v381 = vld [vmem:[%s185 + $0x5c0] sm:$0xff]
        %v382 = vld [vmem:[%s185 + $0x5c8] sm:$0xff]
        %v383 = vld [vmem:[%s185 + $0x5d0] sm:$0xff]
        %v384 = vld [vmem:[%s185 + $0x5d8] sm:$0xff]
        %v385 = vld [vmem:[%s185 + $0x5e0] sm:$0xff]
        %v386 = vld [vmem:[%s185 + $0x5e8] sm:$0xff]
        %v387 = vld [vmem:[%s185 + $0x5f0] sm:$0xff]
        %v388 = vld [vmem:[%s185 + $0x5f8] sm:$0xff]
        %v389 = vld [vmem:[%s185 + $0x600] sm:$0xff]
        %v390 = vld [vmem:[%s185 + $0x608] sm:$0xff]
        %v391 = vld [vmem:[%s185 + $0x610] sm:$0xff]
        %v392 = vld [vmem:[%s185 + $0x618] sm:$0xff]
        %v393 = vld [vmem:[%s185 + $0x620] sm:$0xff]
        %v394 = vld [vmem:[%s185 + $0x628] sm:$0xff]
        %v395 = vld [vmem:[%s185 + $0x630] sm:$0xff]
        %v396 = vld [vmem:[%s185 + $0x638] sm:$0xff]
        %v397 = vld [vmem:[%s185 + $0x640] sm:$0xff]
        %v398 = vld [vmem:[%s185 + $0x648] sm:$0xff]
        %v399 = vld [vmem:[%s185 + $0x650] sm:$0xff]
        %v400 = vld [vmem:[%s185 + $0x658] sm:$0xff]
        %v401 = vld [vmem:[%s185 + $0x660] sm:$0xff]
        %v402 = vld [vmem:[%s185 + $0x668] sm:$0xff]
        %v403 = vld [vmem:[%s185 + $0x670] sm:$0xff]
        %v404 = vld [vmem:[%s185 + $0x678] sm:$0xff]
        %v405 = vld [vmem:[%s185 + $0x680] sm:$0xff]
        %v406 = vld [vmem:[%s185 + $0x688] sm:$0xff]
        %v407 = vld [vmem:[%s185 + $0x690] sm:$0xff]
        %v408 = vld [vmem:[%s185 + $0x698] sm:$0xff]
        %v409 = vld [vmem:[%s185 + $0x6a0] sm:$0xff]
        %v410 = vld [vmem:[%s185 + $0x6a8] sm:$0xff]
        %v411 = vld [vmem:[%s185 + $0x6b0] sm:$0xff]
        %v412 = vld [vmem:[%s185 + $0x6b8] sm:$0xff]
        %v413 = vld [vmem:[%s185 + $0x6c0] sm:$0xff]
        %v414 = vld [vmem:[%s185 + $0x6c8] sm:$0xff]
        %v415 = vld [vmem:[%s185 + $0x6d0] sm:$0xff]
        %v416 = vld [vmem:[%s185 + $0x6d8] sm:$0xff]
        %v417 = vld [vmem:[%s185 + $0x6e0] sm:$0xff]
        %v418 = vld [vmem:[%s185 + $0x6e8] sm:$0xff]
        %v419 = vld [vmem:[%s185 + $0x6f0] sm:$0xff]
        %v420 = vld [vmem:[%s185 + $0x6f8] sm:$0xff]
        %v421 = vld [vmem:[%s185 + $0x700] sm:$0xff]
        %v422 = vld [vmem:[%s185 + $0x708] sm:$0xff]
        %v423 = vld [vmem:[%s185 + $0x710] sm:$0xff]
        %v424 = vld [vmem:[%s185 + $0x718] sm:$0xff]
        %v425 = vld [vmem:[%s185 + $0x720] sm:$0xff]
        %v426 = vld [vmem:[%s185 + $0x728] sm:$0xff]
        %v427 = vld [vmem:[%s185 + $0x730] sm:$0xff]
        %v428 = vld [vmem:[%s185 + $0x738] sm:$0xff]
        %v429 = vld [vmem:[%s185 + $0x740] sm:$0xff]
        %v430 = vld [vmem:[%s185 + $0x748] sm:$0xff]
        %v431 = vld [vmem:[%s185 + $0x750] sm:$0xff]
        %v432 = vld [vmem:[%s185 + $0x758] sm:$0xff]
        %v433 = vld [vmem:[%s185 + $0x760] sm:$0xff]
        %v434 = vld [vmem:[%s185 + $0x768] sm:$0xff]
        %v435 = vld [vmem:[%s185 + $0x770] sm:$0xff]
        %v436 = vld [vmem:[%s185 + $0x778] sm:$0xff]
        %v437 = vld [vmem:[%s185 + $0x780] sm:$0xff]
        %v438 = vld [vmem:[%s185 + $0x788] sm:$0xff]
        %v439 = vld [vmem:[%s185 + $0x790] sm:$0xff]
        %v440 = vld [vmem:[%s185 + $0x798] sm:$0xff]
        %v441 = vld [vmem:[%s185 + $0x7a0] sm:$0xff]
        %v442 = vld [vmem:[%s185 + $0x7a8] sm:$0xff]
        %v443 = vld [vmem:[%s185 + $0x7b0] sm:$0xff]
        %v444 = vld [vmem:[%s185 + $0x7b8] sm:$0xff]
        %v445 = vld [vmem:[%s185 + $0x7c0] sm:$0xff]
        %v446 = vld [vmem:[%s185 + $0x7c8] sm:$0xff]
        %v447 = vld [vmem:[%s185 + $0x7d0] sm:$0xff]
        %v448 = vld [vmem:[%s185 + $0x7d8] sm:$0xff]
        %v449 = vld [vmem:[%s185 + $0x7e0] sm:$0xff]
        %v450 = vld [vmem:[%s185 + $0x7e8] sm:$0xff]
        %v451 = vld [vmem:[%s185 + $0x7f0] sm:$0xff]
        %v452 = vld [vmem:[%s185 + $0x7f8] sm:$0xff]
        %v453 = vld [vmem:[%s185 + $0x800] sm:$0xff]
        %v454 = vld [vmem:[%s185 + $0x808] sm:$0xff]
        %v455 = vld [vmem:[%s185 + $0x810] sm:$0xff]
        %v456 = vld [vmem:[%s185 + $0x818] sm:$0xff]
        %v457 = vld [vmem:[%s185 + $0x820] sm:$0xff]
        %v458 = vld [vmem:[%s185 + $0x828] sm:$0xff]
        %v459 = vld [vmem:[%s185 + $0x830] sm:$0xff]
        %v460 = vld [vmem:[%s185 + $0x838] sm:$0xff]
        %v461 = vld [vmem:[%s185 + $0x840] sm:$0xff]
        %v462 = vld [vmem:[%s185 + $0x848] sm:$0xff]
        %v463 = vld [vmem:[%s185 + $0x850] sm:$0xff]
        %v464 = vld [vmem:[%s185 + $0x858] sm:$0xff]
        %v465 = vld [vmem:[%s185 + $0x860] sm:$0xff]
        %v466 = vld [vmem:[%s185 + $0x868] sm:$0xff]
        %v467 = vld [vmem:[%s185 + $0x870] sm:$0xff]
        %v468 = vld [vmem:[%s185 + $0x878] sm:$0xff]
        %v469 = vld [vmem:[%s185 + $0x880] sm:$0xff]
        %v470 = vld [vmem:[%s185 + $0x888] sm:$0xff]
        %v471 = vld [vmem:[%s185 + $0x890] sm:$0xff]
        %v472 = vld [vmem:[%s185 + $0x898] sm:$0xff]
        %v473 = vld [vmem:[%s185 + $0x8a0] sm:$0xff]
        %v474 = vld [vmem:[%s185 + $0x8a8] sm:$0xff]
        %v475 = vld [vmem:[%s185 + $0x8b0] sm:$0xff]
        %v476 = vld [vmem:[%s185 + $0x8b8] sm:$0xff]
        %v477 = vld [vmem:[%s185 + $0x8c0] sm:$0xff]
        %v478 = vld [vmem:[%s185 + $0x8c8] sm:$0xff]
        %v479 = vld [vmem:[%s185 + $0x8d0] sm:$0xff]
        %v480 = vld [vmem:[%s185 + $0x8d8] sm:$0xff]
        %v481 = vld [vmem:[%s185 + $0x8e0] sm:$0xff]
        %v482 = vld [vmem:[%s185 + $0x8e8] sm:$0xff]
        %v483 = vld [vmem:[%s185 + $0x8f0] sm:$0xff]
        %v484 = vld [vmem:[%s185 + $0x8f8] sm:$0xff]
        %v485 = vld [vmem:[%s185 + $0x900] sm:$0xff]
        %v486 = vld [vmem:[%s185 + $0x908] sm:$0xff]
        %v487 = vld [vmem:[%s185 + $0x910] sm:$0xff]
        %v488 = vld [vmem:[%s185 + $0x918] sm:$0xff]
        %v489 = vld [vmem:[%s185 + $0x920] sm:$0xff]
        %v490 = vld [vmem:[%s185 + $0x928] sm:$0xff]
        %v491 = vld [vmem:[%s185 + $0x930] sm:$0xff]
        %v492 = vld [vmem:[%s185 + $0x938] sm:$0xff]
        %v493 = vld [vmem:[%s185 + $0x940] sm:$0xff]
        %v494 = vld [vmem:[%s185 + $0x948] sm:$0xff]
        %v495 = vld [vmem:[%s185 + $0x950] sm:$0xff]
        %v496 = vld [vmem:[%s185 + $0x958] sm:$0xff]
        %v497 = vld [vmem:[%s185 + $0x960] sm:$0xff]
        %v498 = vld [vmem:[%s185 + $0x968] sm:$0xff]
        %v499 = vld [vmem:[%s185 + $0x970] sm:$0xff]
        %v500 = vld [vmem:[%s185 + $0x978] sm:$0xff]
        %v501 = vld [vmem:[%s185 + $0x980] sm:$0xff]
        %v502 = vld [vmem:[%s185 + $0x988] sm:$0xff]
        %v503 = vld [vmem:[%s185 + $0x990] sm:$0xff]
        %v504 = vld [vmem:[%s185 + $0x998] sm:$0xff]
        %v505 = vld [vmem:[%s185 + $0x9a0] sm:$0xff]
        %v506 = vld [vmem:[%s185 + $0x9a8] sm:$0xff]
        %v507 = vld [vmem:[%s185 + $0x9b0] sm:$0xff]
        %v508 = vld [vmem:[%s185 + $0x9b8] sm:$0xff]
        %v509 = vld [vmem:[%s185 + $0x9c0] sm:$0xff]
        %v510 = vld [vmem:[%s185 + $0x9c8] sm:$0xff]
        %v511 = vld [vmem:[%s185 + $0x9d0] sm:$0xff]
        %v512 = vld [vmem:[%s185 + $0x9d8] sm:$0xff]
        %v513 = vld [vmem:[%s185 + $0x9e0] sm:$0xff]
        %v514 = vld [vmem:[%s185 + $0x9e8] sm:$0xff]
        %v515 = vld [vmem:[%s185 + $0x9f0] sm:$0xff]
        %v516 = vld [vmem:[%s185 + $0x9f8] sm:$0xff]
        %v517 = vld [vmem:[%s185 + $0xa00] sm:$0xff]
        %v518 = vld [vmem:[%s185 + $0xa08] sm:$0xff]
        %v519 = vld [vmem:[%s185 + $0xa10] sm:$0xff]
        %v520 = vld [vmem:[%s185 + $0xa18] sm:$0xff]
        %v521 = vld [vmem:[%s185 + $0xa20] sm:$0xff]
        %v522 = vld [vmem:[%s185 + $0xa28] sm:$0xff]
        %v523 = vld [vmem:[%s185 + $0xa30] sm:$0xff]
        %v524 = vld [vmem:[%s185 + $0xa38] sm:$0xff]
        %v525 = vld [vmem:[%s185 + $0xa40] sm:$0xff]
        %v526 = vld [vmem:[%s185 + $0xa48] sm:$0xff]
        %v527 = vld [vmem:[%s185 + $0xa50] sm:$0xff]
        %v528 = vld [vmem:[%s185 + $0xa58] sm:$0xff]
        %v529 = vld [vmem:[%s185 + $0xa60] sm:$0xff]
        %v530 = vld [vmem:[%s185 + $0xa68] sm:$0xff]
        %v531 = vld [vmem:[%s185 + $0xa70] sm:$0xff]
        %v532 = vld [vmem:[%s185 + $0xa78] sm:$0xff]
        %v533 = vld [vmem:[%s185 + $0xa80] sm:$0xff]
        %v534 = vld [vmem:[%s185 + $0xa88] sm:$0xff]
        %v535 = vld [vmem:[%s185 + $0xa90] sm:$0xff]
        %v536 = vld [vmem:[%s185 + $0xa98] sm:$0xff]
        %v537 = vld [vmem:[%s185 + $0xaa0] sm:$0xff]
        %v538 = vld [vmem:[%s185 + $0xaa8] sm:$0xff]
        %v539 = vld [vmem:[%s185 + $0xab0] sm:$0xff]
        %v540 = vld [vmem:[%s185 + $0xab8] sm:$0xff]
        %v541 = vld [vmem:[%s185 + $0xac0] sm:$0xff]
        %v542 = vld [vmem:[%s185 + $0xac8] sm:$0xff]
        %v543 = vld [vmem:[%s185 + $0xad0] sm:$0xff]
        %v544 = vld [vmem:[%s185 + $0xad8] sm:$0xff]
        %v545 = vld [vmem:[%s185 + $0xae0] sm:$0xff]
        %v546 = vld [vmem:[%s185 + $0xae8] sm:$0xff]
        %v547 = vld [vmem:[%s185 + $0xaf0] sm:$0xff]
        %v548 = vld [vmem:[%s185 + $0xaf8] sm:$0xff]
        %v549 = vld [vmem:[%s185 + $0xb00] sm:$0xff]
        %v550 = vld [vmem:[%s185 + $0xb08] sm:$0xff]
        %v551 = vld [vmem:[%s185 + $0xb10] sm:$0xff]
        %v552 = vld [vmem:[%s185 + $0xb18] sm:$0xff]
        %v553 = vld [vmem:[%s185 + $0xb20] sm:$0xff]
        %v554 = vld [vmem:[%s185 + $0xb28] sm:$0xff]
        %v555 = vld [vmem:[%s185 + $0xb30] sm:$0xff]
        %v556 = vld [vmem:[%s185 + $0xb38] sm:$0xff]
        %v557 = vld [vmem:[%s185 + $0xb40] sm:$0xff]
        %v558 = vld [vmem:[%s185 + $0xb48] sm:$0xff]
        %v559 = vld [vmem:[%s185 + $0xb50] sm:$0xff]
        %v560 = vld [vmem:[%s185 + $0xb58] sm:$0xff]
        %v561 = vld [vmem:[%s185 + $0xb60] sm:$0xff]
        %v562 = vld [vmem:[%s185 + $0xb68] sm:$0xff]
        %v563 = vld [vmem:[%s185 + $0xb70] sm:$0xff]
        %v564 = vld [vmem:[%s185 + $0xb78] sm:$0xff]
        %v565 = vld [vmem:[%s185 + $0xb80] sm:$0xff]
        %v566 = vld [vmem:[%s185 + $0xb88] sm:$0xff]
        %v567 = vld [vmem:[%s185 + $0xb90] sm:$0xff]
        %v568 = vld [vmem:[%s185 + $0xb98] sm:$0xff]
        %v569 = vld [vmem:[%s185 + $0xba0] sm:$0xff]
        %v570 = vld [vmem:[%s185 + $0xba8] sm:$0xff]
        %v571 = vld [vmem:[%s185 + $0xbb0] sm:$0xff]
        %v572 = vld [vmem:[%s185 + $0xbb8] sm:$0xff]
        %v573 = vld [vmem:[%s185 + $0xbc0] sm:$0xff]
        %v574 = vld [vmem:[%s185 + $0xbc8] sm:$0xff]
        %v575 = vld [vmem:[%s185 + $0xbd0] sm:$0xff]
        %v576 = vld [vmem:[%s185 + $0xbd8] sm:$0xff]
        %v577 = vld [vmem:[%s185 + $0xbe0] sm:$0xff]
        %v578 = vld [vmem:[%s185 + $0xbe8] sm:$0xff]
        %v579 = vld [vmem:[%s185 + $0xbf0] sm:$0xff]
        %v580 = vld [vmem:[%s185 + $0xbf8] sm:$0xff]
        %v581 = vld [vmem:[%s185 + $0xc00] sm:$0xff]
        %v582 = vld [vmem:[%s185 + $0xc08] sm:$0xff]
        %v583 = vld [vmem:[%s185 + $0xc10] sm:$0xff]
        %v584 = vld [vmem:[%s185 + $0xc18] sm:$0xff]
        %v585 = vld [vmem:[%s185 + $0xc20] sm:$0xff]
        %v586 = vld [vmem:[%s185 + $0xc28] sm:$0xff]
        %v587 = vld [vmem:[%s185 + $0xc30] sm:$0xff]
        %v588 = vld [vmem:[%s185 + $0xc38] sm:$0xff]
        %v589 = vld [vmem:[%s185 + $0xc40] sm:$0xff]
        %v590 = vld [vmem:[%s185 + $0xc48] sm:$0xff]
        %v591 = vld [vmem:[%s185 + $0xc50] sm:$0xff]
        %v592 = vld [vmem:[%s185 + $0xc58] sm:$0xff]
        %v593 = vld [vmem:[%s185 + $0xc60] sm:$0xff]
        %v594 = vld [vmem:[%s185 + $0xc68] sm:$0xff]
        %v595 = vld [vmem:[%s185 + $0xc70] sm:$0xff]
        %v596 = vld [vmem:[%s185 + $0xc78] sm:$0xff]
        %v597 = vld [vmem:[%s185 + $0xc80] sm:$0xff]
        %v598 = vld [vmem:[%s185 + $0xc88] sm:$0xff]
        %v599 = vld [vmem:[%s185 + $0xc90] sm:$0xff]
        %v600 = vld [vmem:[%s185 + $0xc98] sm:$0xff]
        %v601 = vld [vmem:[%s185 + $0xca0] sm:$0xff]
        %v602 = vld [vmem:[%s185 + $0xca8] sm:$0xff]
        %v603 = vld [vmem:[%s185 + $0xcb0] sm:$0xff]
        %v604 = vld [vmem:[%s185 + $0xcb8] sm:$0xff]
        %v605 = vld [vmem:[%s185 + $0xcc0] sm:$0xff]
        %v606 = vld [vmem:[%s185 + $0xcc8] sm:$0xff]
        %v607 = vld [vmem:[%s185 + $0xcd0] sm:$0xff]
        %v608 = vld [vmem:[%s185 + $0xcd8] sm:$0xff]
        %v609 = vld [vmem:[%s185 + $0xce0] sm:$0xff]
        %v610 = vld [vmem:[%s185 + $0xce8] sm:$0xff]
        %v611 = vld [vmem:[%s185 + $0xcf0] sm:$0xff]
        %v612 = vld [vmem:[%s185 + $0xcf8] sm:$0xff]
        %v613 = vld [vmem:[%s185 + $0xd00] sm:$0xff]
        %v614 = vld [vmem:[%s185 + $0xd08] sm:$0xff]
        %v615 = vld [vmem:[%s185 + $0xd10] sm:$0xff]
        %v616 = vld [vmem:[%s185 + $0xd18] sm:$0xff]
        %v617 = vld [vmem:[%s185 + $0xd20] sm:$0xff]
        %v618 = vld [vmem:[%s185 + $0xd28] sm:$0xff]
        %v619 = vld [vmem:[%s185 + $0xd30] sm:$0xff]
        %v620 = vld [vmem:[%s185 + $0xd38] sm:$0xff]
        %v621 = vld [vmem:[%s185 + $0xd40] sm:$0xff]
        %v622 = vld [vmem:[%s185 + $0xd48] sm:$0xff]
        %v623 = vld [vmem:[%s185 + $0xd50] sm:$0xff]
        %v624 = vld [vmem:[%s185 + $0xd58] sm:$0xff]
        %v625 = vld [vmem:[%s185 + $0xd60] sm:$0xff]
        %v626 = vld [vmem:[%s185 + $0xd68] sm:$0xff]
        %v627 = vld [vmem:[%s185 + $0xd70] sm:$0xff]
        %v628 = vld [vmem:[%s185 + $0xd78] sm:$0xff]
        %v629 = vld [vmem:[%s185 + $0xd80] sm:$0xff]
        %v630 = vld [vmem:[%s185 + $0xd88] sm:$0xff]
        %v631 = vld [vmem:[%s185 + $0xd90] sm:$0xff]
        %v632 = vld [vmem:[%s185 + $0xd98] sm:$0xff]
        %v633 = vld [vmem:[%s185 + $0xda0] sm:$0xff]
        %v634 = vld [vmem:[%s185 + $0xda8] sm:$0xff]
        %v635 = vld [vmem:[%s185 + $0xdb0] sm:$0xff]
        %v636 = vld [vmem:[%s185 + $0xdb8] sm:$0xff]
        %v637 = vld [vmem:[%s185 + $0xdc0] sm:$0xff]
        %v638 = vld [vmem:[%s185 + $0xdc8] sm:$0xff]
        %v639 = vld [vmem:[%s185 + $0xdd0] sm:$0xff]
        %v640 = vld [vmem:[%s185 + $0xdd8] sm:$0xff]
        %v641 = vld [vmem:[%s185 + $0xde0] sm:$0xff]
        %v642 = vld [vmem:[%s185 + $0xde8] sm:$0xff]
        %v643 = vld [vmem:[%s185 + $0xdf0] sm:$0xff]
        %v644 = vld [vmem:[%s185 + $0xdf8] sm:$0xff]
        %v645 = vld [vmem:[%s185 + $0xe00] sm:$0xff]
        %v646 = vld [vmem:[%s185 + $0xe08] sm:$0xff]
        %v647 = vld [vmem:[%s185 + $0xe10] sm:$0xff]
        %v648 = vld [vmem:[%s185 + $0xe18] sm:$0xff]
        %v649 = vld [vmem:[%s185 + $0xe20] sm:$0xff]
        %v650 = vld [vmem:[%s185 + $0xe28] sm:$0xff]
        %v651 = vld [vmem:[%s185 + $0xe30] sm:$0xff]
        %v652 = vld [vmem:[%s185 + $0xe38] sm:$0xff]
        %v653 = vld [vmem:[%s185 + $0xe40] sm:$0xff]
        %v654 = vld [vmem:[%s185 + $0xe48] sm:$0xff]
        %v655 = vld [vmem:[%s185 + $0xe50] sm:$0xff]
        %v656 = vld [vmem:[%s185 + $0xe58] sm:$0xff]
        %v657 = vld [vmem:[%s185 + $0xe60] sm:$0xff]
        %v658 = vld [vmem:[%s185 + $0xe68] sm:$0xff]
        %v659 = vld [vmem:[%s185 + $0xe70] sm:$0xff]
        %v660 = vld [vmem:[%s185 + $0xe78] sm:$0xff]
        %v661 = vld [vmem:[%s185 + $0xe80] sm:$0xff]
        %v662 = vld [vmem:[%s185 + $0xe88] sm:$0xff]
        %v663 = vld [vmem:[%s185 + $0xe90] sm:$0xff]
        %v664 = vld [vmem:[%s185 + $0xe98] sm:$0xff]
        %v665 = vld [vmem:[%s185 + $0xea0] sm:$0xff]
        %v666 = vld [vmem:[%s185 + $0xea8] sm:$0xff]
        %v667 = vld [vmem:[%s185 + $0xeb0] sm:$0xff]
        %v668 = vld [vmem:[%s185 + $0xeb8] sm:$0xff]
        %v669 = vld [vmem:[%s185 + $0xec0] sm:$0xff]
        %v670 = vld [vmem:[%s185 + $0xec8] sm:$0xff]
        %v671 = vld [vmem:[%s185 + $0xed0] sm:$0xff]
        %v672 = vld [vmem:[%s185 + $0xed8] sm:$0xff]
        %v673 = vld [vmem:[%s185 + $0xee0] sm:$0xff]
        %v674 = vld [vmem:[%s185 + $0xee8] sm:$0xff]
        %v675 = vld [vmem:[%s185 + $0xef0] sm:$0xff]
        %v676 = vld [vmem:[%s185 + $0xef8] sm:$0xff]
        %v677 = vld [vmem:[%s185 + $0xf00] sm:$0xff]
        %v678 = vld [vmem:[%s185 + $0xf08] sm:$0xff]
        %v679 = vld [vmem:[%s185 + $0xf10] sm:$0xff]
        %v680 = vld [vmem:[%s185 + $0xf18] sm:$0xff]
        %v681 = vld [vmem:[%s185 + $0xf20] sm:$0xff]
        %v682 = vld [vmem:[%s185 + $0xf28] sm:$0xff]
        %v683 = vld [vmem:[%s185 + $0xf30] sm:$0xff]
        %v684 = vld [vmem:[%s185 + $0xf38] sm:$0xff]
        %v685 = vld [vmem:[%s185 + $0xf40] sm:$0xff]
        %v686 = vld [vmem:[%s185 + $0xf48] sm:$0xff]
        %v687 = vld [vmem:[%s185 + $0xf50] sm:$0xff]
        %v688 = vld [vmem:[%s185 + $0xf58] sm:$0xff]
        %v689 = vld [vmem:[%s185 + $0xf60] sm:$0xff]
        %v690 = vld [vmem:[%s185 + $0xf68] sm:$0xff]
        %v691 = vld [vmem:[%s185 + $0xf70] sm:$0xff]
        %v692 = vld [vmem:[%s185 + $0xf78] sm:$0xff]
        %v693 = vld [vmem:[%s185 + $0xf80] sm:$0xff]
        %v694 = vld [vmem:[%s185 + $0xf88] sm:$0xff]
        %v695 = vld [vmem:[%s185 + $0xf90] sm:$0xff]
        %v696 = vld [vmem:[%s185 + $0xf98] sm:$0xff]
        %v697 = vld [vmem:[%s185 + $0xfa0] sm:$0xff]
        %v698 = vld [vmem:[%s185 + $0xfa8] sm:$0xff]
        %v699 = vld [vmem:[%s185 + $0xfb0] sm:$0xff]
        %v700 = vld [vmem:[%s185 + $0xfb8] sm:$0xff]
        %v701 = vld [vmem:[%s185 + $0xfc0] sm:$0xff]
        %v702 = vld [vmem:[%s185 + $0xfc8] sm:$0xff]
        %v703 = vld [vmem:[%s185 + $0xfd0] sm:$0xff]
        %v704 = vld [vmem:[%s185 + $0xfd8] sm:$0xff]
        %v705 = vld [vmem:[%s185 + $0xfe0] sm:$0xff]
        %v706 = vld [vmem:[%s185 + $0xfe8] sm:$0xff]
        %v707 = vld [vmem:[%s185 + $0xff0] sm:$0xff]
        %v708 = vld [vmem:[%s185 + $0xff8] sm:$0xff]
        %v709 = vld [vmem:[%s185 + $0x1000] sm:$0xff]
        %v710 = vld [vmem:[%s185 + $0x1008] sm:$0xff]
        %v711 = vld [vmem:[%s185 + $0x1010] sm:$0xff]
        %v712 = vld [vmem:[%s185 + $0x1018] sm:$0xff]
        %v713 = vld [vmem:[%s185 + $0x1020] sm:$0xff]
        %v714 = vld [vmem:[%s185 + $0x1028] sm:$0xff]
        %v715 = vld [vmem:[%s185 + $0x1030] sm:$0xff]
        %v716 = vld [vmem:[%s185 + $0x1038] sm:$0xff]
        %v717 = vld [vmem:[%s185 + $0x1040] sm:$0xff]
        %v718 = vld [vmem:[%s185 + $0x1048] sm:$0xff]
        %v719 = vld [vmem:[%s185 + $0x1050] sm:$0xff]
        %v720 = vld [vmem:[%s185 + $0x1058] sm:$0xff]
        %v721 = vld [vmem:[%s185 + $0x1060] sm:$0xff]
        %v722 = vld [vmem:[%s185 + $0x1068] sm:$0xff]
        %v723 = vld [vmem:[%s185 + $0x1070] sm:$0xff]
        %v724 = vld [vmem:[%s185 + $0x1078] sm:$0xff]
        %v725 = vld [vmem:[%s185 + $0x1080] sm:$0xff]
        %v726 = vld [vmem:[%s185 + $0x1088] sm:$0xff]
        %v727 = vld [vmem:[%s185 + $0x1090] sm:$0xff]
        %v728 = vld [vmem:[%s185 + $0x1098] sm:$0xff]
        %v729 = vld [vmem:[%s185 + $0x10a0] sm:$0xff]
        %v730 = vld [vmem:[%s185 + $0x10a8] sm:$0xff]
        %v731 = vld [vmem:[%s185 + $0x10b0] sm:$0xff]
        %v732 = vld [vmem:[%s185 + $0x10b8] sm:$0xff]
        %v733 = vld [vmem:[%s185 + $0x10c0] sm:$0xff]
        %v734 = vld [vmem:[%s185 + $0x10c8] sm:$0xff]
        %v735 = vld [vmem:[%s185 + $0x10d0] sm:$0xff]
        %v736 = vld [vmem:[%s185 + $0x10d8] sm:$0xff]
        %v737 = vld [vmem:[%s185 + $0x10e0] sm:$0xff]
        %v738 = vld [vmem:[%s185 + $0x10e8] sm:$0xff]
        %v739 = vld [vmem:[%s185 + $0x10f0] sm:$0xff]
        %v740 = vld [vmem:[%s185 + $0x10f8] sm:$0xff]
        %v741 = vld [vmem:[%s185 + $0x1100] sm:$0xff]
        %v742 = vld [vmem:[%s185 + $0x1108] sm:$0xff]
        %v743 = vld [vmem:[%s185 + $0x1110] sm:$0xff]
        %v744 = vld [vmem:[%s185 + $0x1118] sm:$0xff]
        %v745 = vld [vmem:[%s185 + $0x1120] sm:$0xff]
        %v746 = vld [vmem:[%s185 + $0x1128] sm:$0xff]
        %v747 = vld [vmem:[%s185 + $0x1130] sm:$0xff]
        %v748 = vld [vmem:[%s185 + $0x1138] sm:$0xff]
        %v749 = vld [vmem:[%s185 + $0x1140] sm:$0xff]
        %v750 = vld [vmem:[%s185 + $0x1148] sm:$0xff]
        %v751 = vld [vmem:[%s185 + $0x1150] sm:$0xff]
        %v752 = vld [vmem:[%s185 + $0x1158] sm:$0xff]
        %v753 = vld [vmem:[%s185 + $0x1160] sm:$0xff]
        %v754 = vld [vmem:[%s185 + $0x1168] sm:$0xff]
        %v755 = vld [vmem:[%s185 + $0x1170] sm:$0xff]
        %v756 = vld [vmem:[%s185 + $0x1178] sm:$0xff]
        %v757 = vld [vmem:[%s185 + $0x1180] sm:$0xff]
        %v758 = vld [vmem:[%s185 + $0x1188] sm:$0xff]
        %v759 = vld [vmem:[%s185 + $0x1190] sm:$0xff]
        %v760 = vld [vmem:[%s185 + $0x1198] sm:$0xff]
        %v761 = vld [vmem:[%s185 + $0x11a0] sm:$0xff]
        %v762 = vld [vmem:[%s185 + $0x11a8] sm:$0xff]
        %v763 = vld [vmem:[%s185 + $0x11b0] sm:$0xff]
        %v764 = vld [vmem:[%s185 + $0x11b8] sm:$0xff]
        %v765 = vld [vmem:[%s185 + $0x11c0] sm:$0xff]
        %v766 = vld [vmem:[%s185 + $0x11c8] sm:$0xff]
        %v767 = vld [vmem:[%s185 + $0x11d0] sm:$0xff]
        %v768 = vld [vmem:[%s185 + $0x11d8] sm:$0xff]
        %v769 = vld [vmem:[%s185 + $0x11e0] sm:$0xff]
        %v770 = vld [vmem:[%s185 + $0x11e8] sm:$0xff]
        %v771 = vld [vmem:[%s185 + $0x11f0] sm:$0xff]
        %v772 = vld [vmem:[%s185 + $0x11f8] sm:$0xff]
        %v773 = vld [vmem:[%s185 + $0x1200] sm:$0xff]
        %v774 = vld [vmem:[%s185 + $0x1208] sm:$0xff]
        %v775 = vld [vmem:[%s185 + $0x1210] sm:$0xff]
        %v776 = vld [vmem:[%s185 + $0x1218] sm:$0xff]
        %v777 = vld [vmem:[%s185 + $0x1220] sm:$0xff]
        %v778 = vld [vmem:[%s185 + $0x1228] sm:$0xff]
        %v779 = vld [vmem:[%s185 + $0x1230] sm:$0xff]
        %v780 = vld [vmem:[%s185 + $0x1238] sm:$0xff]
        %v781 = vld [vmem:[%s185 + $0x1240] sm:$0xff]
        %v782 = vld [vmem:[%s185 + $0x1248] sm:$0xff]
        %v783 = vld [vmem:[%s185 + $0x1250] sm:$0xff]
        %v784 = vld [vmem:[%s185 + $0x1258] sm:$0xff]
        %v785 = vld [vmem:[%s185 + $0x1260] sm:$0xff]
        %v786 = vld [vmem:[%s185 + $0x1268] sm:$0xff]
        %v787 = vld [vmem:[%s185 + $0x1270] sm:$0xff]
        %v788 = vld [vmem:[%s185 + $0x1278] sm:$0xff]
        %v789 = vld [vmem:[%s185 + $0x1280] sm:$0xff]
        %v790 = vld [vmem:[%s185 + $0x1288] sm:$0xff]
        %v791 = vld [vmem:[%s185 + $0x1290] sm:$0xff]
        %v792 = vld [vmem:[%s185 + $0x1298] sm:$0xff]
        %v793 = vld [vmem:[%s185 + $0x12a0] sm:$0xff]
        %v794 = vld [vmem:[%s185 + $0x12a8] sm:$0xff]
        %v795 = vld [vmem:[%s185 + $0x12b0] sm:$0xff]
        %v796 = vld [vmem:[%s185 + $0x12b8] sm:$0xff]
        %v797 = vld [vmem:[%s185 + $0x12c0] sm:$0xff]
        %v798 = vld [vmem:[%s185 + $0x12c8] sm:$0xff]
        %v799 = vld [vmem:[%s185 + $0x12d0] sm:$0xff]
        %v800 = vld [vmem:[%s185 + $0x12d8] sm:$0xff]
        %v801 = vld [vmem:[%s185 + $0x12e0] sm:$0xff]
        %v802 = vld [vmem:[%s185 + $0x12e8] sm:$0xff]
        %v803 = vld [vmem:[%s185 + $0x12f0] sm:$0xff]
        %v804 = vld [vmem:[%s185 + $0x12f8] sm:$0xff]
        %v805 = vld [vmem:[%s185 + $0x1300] sm:$0xff]
        %v806 = vld [vmem:[%s185 + $0x1308] sm:$0xff]
        %v807 = vld [vmem:[%s185 + $0x1310] sm:$0xff]
        %v808 = vld [vmem:[%s185 + $0x1318] sm:$0xff]
        %v809 = vld [vmem:[%s185 + $0x1320] sm:$0xff]
        %v810 = vld [vmem:[%s185 + $0x1328] sm:$0xff]
        %v811 = vld [vmem:[%s185 + $0x1330] sm:$0xff]
        %v812 = vld [vmem:[%s185 + $0x1338] sm:$0xff]
        %v813 = vld [vmem:[%s185 + $0x1340] sm:$0xff]
        %v814 = vld [vmem:[%s185 + $0x1348] sm:$0xff]
        %v815 = vld [vmem:[%s185 + $0x1350] sm:$0xff]
        %v816 = vld [vmem:[%s185 + $0x1358] sm:$0xff]
        %v817 = vld [vmem:[%s185 + $0x1360] sm:$0xff]
        %v818 = vld [vmem:[%s185 + $0x1368] sm:$0xff]
        %v819 = vld [vmem:[%s185 + $0x1370] sm:$0xff]
        %v820 = vld [vmem:[%s185 + $0x1378] sm:$0xff]
        %v821 = vld [vmem:[%s185 + $0x1380] sm:$0xff]
        %v822 = vld [vmem:[%s185 + $0x1388] sm:$0xff]
        %v823 = vld [vmem:[%s185 + $0x1390] sm:$0xff]
        %v824 = vld [vmem:[%s185 + $0x1398] sm:$0xff]
        %v825 = vld [vmem:[%s185 + $0x13a0] sm:$0xff]
        %v826 = vld [vmem:[%s185 + $0x13a8] sm:$0xff]
        %v827 = vld [vmem:[%s185 + $0x13b0] sm:$0xff]
        %v828 = vld [vmem:[%s185 + $0x13b8] sm:$0xff]
        %v829 = vld [vmem:[%s185 + $0x13c0] sm:$0xff]
        %v830 = vld [vmem:[%s185 + $0x13c8] sm:$0xff]
        %v831 = vld [vmem:[%s185 + $0x13d0] sm:$0xff]
        %v832 = vld [vmem:[%s185 + $0x13d8] sm:$0xff]
        %v833 = vld [vmem:[%s185 + $0x13e0] sm:$0xff]
        %v834 = vld [vmem:[%s185 + $0x13e8] sm:$0xff]
        %v835 = vld [vmem:[%s185 + $0x13f0] sm:$0xff]
        %v836 = vld [vmem:[%s185 + $0x13f8] sm:$0xff]
        %v837 = vld [vmem:[%s185 + $0x1400] sm:$0xff]
        %v838 = vld [vmem:[%s185 + $0x1408] sm:$0xff]
        %v839 = vld [vmem:[%s185 + $0x1410] sm:$0xff]
        %v840 = vld [vmem:[%s185 + $0x1418] sm:$0xff]
        %v841 = vld [vmem:[%s185 + $0x1420] sm:$0xff]
        %v842 = vld [vmem:[%s185 + $0x1428] sm:$0xff]
        %v843 = vld [vmem:[%s185 + $0x1430] sm:$0xff]
        %v844 = vld [vmem:[%s185 + $0x1438] sm:$0xff]
        %v845 = vld [vmem:[%s185 + $0x1440] sm:$0xff]
        %v846 = vld [vmem:[%s185 + $0x1448] sm:$0xff]
        %v847 = vld [vmem:[%s185 + $0x1450] sm:$0xff]
        %v848 = vld [vmem:[%s185 + $0x1458] sm:$0xff]
        %v849 = vld [vmem:[%s185 + $0x1460] sm:$0xff]
        %v850 = vld [vmem:[%s185 + $0x1468] sm:$0xff]
        %v851 = vld [vmem:[%s185 + $0x1470] sm:$0xff]
        %v852 = vld [vmem:[%s185 + $0x1478] sm:$0xff]
        %v853 = vld [vmem:[%s185 + $0x1480] sm:$0xff]
        %v854 = vld [vmem:[%s185 + $0x1488] sm:$0xff]
        %v855 = vld [vmem:[%s185 + $0x1490] sm:$0xff]
        %v856 = vld [vmem:[%s185 + $0x1498] sm:$0xff]
        %v857 = vld [vmem:[%s185 + $0x14a0] sm:$0xff]
        %v858 = vld [vmem:[%s185 + $0x14a8] sm:$0xff]
        %v859 = vld [vmem:[%s185 + $0x14b0] sm:$0xff]
        %v860 = vld [vmem:[%s185 + $0x14b8] sm:$0xff]
        %v861 = vld [vmem:[%s185 + $0x14c0] sm:$0xff]
        %v862 = vld [vmem:[%s185 + $0x14c8] sm:$0xff]
        %v863 = vld [vmem:[%s185 + $0x14d0] sm:$0xff]
        %v864 = vld [vmem:[%s185 + $0x14d8] sm:$0xff]
        %v865 = vld [vmem:[%s185 + $0x14e0] sm:$0xff]
        %v866 = vld [vmem:[%s185 + $0x14e8] sm:$0xff]
        %v867 = vld [vmem:[%s185 + $0x14f0] sm:$0xff]
        %v868 = vld [vmem:[%s185 + $0x14f8] sm:$0xff]
        %v869 = vld [vmem:[%s185 + $0x1500] sm:$0xff]
        %v870 = vld [vmem:[%s185 + $0x1508] sm:$0xff]
        %v871 = vld [vmem:[%s185 + $0x1510] sm:$0xff]
        %v872 = vld [vmem:[%s185 + $0x1518] sm:$0xff]
        %v873 = vld [vmem:[%s185 + $0x1520] sm:$0xff]
        %v874 = vld [vmem:[%s185 + $0x1528] sm:$0xff]
        %v875 = vld [vmem:[%s185 + $0x1530] sm:$0xff]
        %v876 = vld [vmem:[%s185 + $0x1538] sm:$0xff]
        %v877 = vld [vmem:[%s185 + $0x1540] sm:$0xff]
        %v878 = vld [vmem:[%s185 + $0x1548] sm:$0xff]
        %v879 = vld [vmem:[%s185 + $0x1550] sm:$0xff]
        %v880 = vld [vmem:[%s185 + $0x1558] sm:$0xff]
        %v881 = vld [vmem:[%s185 + $0x1560] sm:$0xff]
        %v882 = vld [vmem:[%s185 + $0x1568] sm:$0xff]
        %v883 = vld [vmem:[%s185 + $0x1570] sm:$0xff]
        %v884 = vld [vmem:[%s185 + $0x1578] sm:$0xff]
        %v885 = vld [vmem:[%s185 + $0x1580] sm:$0xff]
        %v886 = vld [vmem:[%s185 + $0x1588] sm:$0xff]
        %v887 = vld [vmem:[%s185 + $0x1590] sm:$0xff]
        %v888 = vld [vmem:[%s185 + $0x1598] sm:$0xff]
        %v889 = vld [vmem:[%s185 + $0x15a0] sm:$0xff]
        %v890 = vld [vmem:[%s185 + $0x15a8] sm:$0xff]
        %v891 = vld [vmem:[%s185 + $0x15b0] sm:$0xff]
        %v892 = vld [vmem:[%s185 + $0x15b8] sm:$0xff]
        %v893 = vld [vmem:[%s185 + $0x15c0] sm:$0xff]
        %v894 = vld [vmem:[%s185 + $0x15c8] sm:$0xff]
        %v895 = vld [vmem:[%s185 + $0x15d0] sm:$0xff]
        %v896 = vld [vmem:[%s185 + $0x15d8] sm:$0xff]
        %v897 = vld [vmem:[%s185 + $0x15e0] sm:$0xff]
        %v898 = vld [vmem:[%s185 + $0x15e8] sm:$0xff]
        %v899 = vld [vmem:[%s185 + $0x15f0] sm:$0xff]
        %v900 = vld [vmem:[%s185 + $0x15f8] sm:$0xff]
        %v901 = vld [vmem:[%s185 + $0x1600] sm:$0xff]
        %v902 = vld [vmem:[%s185 + $0x1608] sm:$0xff]
        %v903 = vld [vmem:[%s185 + $0x1610] sm:$0xff]
        %v904 = vld [vmem:[%s185 + $0x1618] sm:$0xff]
        %v905 = vld [vmem:[%s185 + $0x1620] sm:$0xff]
        %v906 = vld [vmem:[%s185 + $0x1628] sm:$0xff]
        %v907 = vld [vmem:[%s185 + $0x1630] sm:$0xff]
        %v908 = vld [vmem:[%s185 + $0x1638] sm:$0xff]
        %v909 = vld [vmem:[%s185 + $0x1640] sm:$0xff]
        %v910 = vld [vmem:[%s185 + $0x1648] sm:$0xff]
        %v911 = vld [vmem:[%s185 + $0x1650] sm:$0xff]
        %v912 = vld [vmem:[%s185 + $0x1658] sm:$0xff]
        %v913 = vld [vmem:[%s185 + $0x1660] sm:$0xff]
        %v914 = vld [vmem:[%s185 + $0x1668] sm:$0xff]
        %v915 = vld [vmem:[%s185 + $0x1670] sm:$0xff]
        %v916 = vld [vmem:[%s185 + $0x1678] sm:$0xff]
        %v917 = vld [vmem:[%s185 + $0x1680] sm:$0xff]
        %v918 = vld [vmem:[%s185 + $0x1688] sm:$0xff]
        %v919 = vld [vmem:[%s185 + $0x1690] sm:$0xff]
        %v920 = vld [vmem:[%s185 + $0x1698] sm:$0xff]
        %v921 = vld [vmem:[%s185 + $0x16a0] sm:$0xff]
        %v922 = vld [vmem:[%s185 + $0x16a8] sm:$0xff]
        %v923 = vld [vmem:[%s185 + $0x16b0] sm:$0xff]
        %v924 = vld [vmem:[%s185 + $0x16b8] sm:$0xff]
        %v925 = vld [vmem:[%s185 + $0x16c0] sm:$0xff]
        %v926 = vld [vmem:[%s185 + $0x16c8] sm:$0xff]
        %v927 = vld [vmem:[%s185 + $0x16d0] sm:$0xff]
        %v928 = vld [vmem:[%s185 + $0x16d8] sm:$0xff]
        %v929 = vld [vmem:[%s185 + $0x16e0] sm:$0xff]
        %v930 = vld [vmem:[%s185 + $0x16e8] sm:$0xff]
        %v931 = vld [vmem:[%s185 + $0x16f0] sm:$0xff]
        %v932 = vld [vmem:[%s185 + $0x16f8] sm:$0xff]
        %v933 = vld [vmem:[%s185 + $0x1700] sm:$0xff]
        %v934 = vld [vmem:[%s185 + $0x1708] sm:$0xff]
        %v935 = vld [vmem:[%s185 + $0x1710] sm:$0xff]
        %v936 = vld [vmem:[%s185 + $0x1718] sm:$0xff]
        %v937 = vld [vmem:[%s185 + $0x1720] sm:$0xff]
        %v938 = vld [vmem:[%s185 + $0x1728] sm:$0xff]
        %v939 = vld [vmem:[%s185 + $0x1730] sm:$0xff]
        %v940 = vld [vmem:[%s185 + $0x1738] sm:$0xff]
        %v941 = vld [vmem:[%s185 + $0x1740] sm:$0xff]
        %v942 = vld [vmem:[%s185 + $0x1748] sm:$0xff]
        %v943 = vld [vmem:[%s185 + $0x1750] sm:$0xff]
        %v944 = vld [vmem:[%s185 + $0x1758] sm:$0xff]
        %v945 = vld [vmem:[%s185 + $0x1760] sm:$0xff]
        %v946 = vld [vmem:[%s185 + $0x1768] sm:$0xff]
        %v947 = vld [vmem:[%s185 + $0x1770] sm:$0xff]
        %v948 = vld [vmem:[%s185 + $0x1778] sm:$0xff]
        %v949 = vld [vmem:[%s185 + $0x1780] sm:$0xff]
        %v950 = vld [vmem:[%s185 + $0x1788] sm:$0xff]
        %v951 = vld [vmem:[%s185 + $0x1790] sm:$0xff]
        %v952 = vld [vmem:[%s185 + $0x1798] sm:$0xff]
        %v953 = vld [vmem:[%s185 + $0x17a0] sm:$0xff]
        %v954 = vld [vmem:[%s185 + $0x17a8] sm:$0xff]
        %v955 = vld [vmem:[%s185 + $0x17b0] sm:$0xff]
        %v956 = vld [vmem:[%s185 + $0x17b8] sm:$0xff]
        %v957 = vld [vmem:[%s185 + $0x17c0] sm:$0xff]
        %v958 = vld [vmem:[%s185 + $0x17c8] sm:$0xff]
        %v959 = vld [vmem:[%s185 + $0x17d0] sm:$0xff]
        %v960 = vld [vmem:[%s185 + $0x17d8] sm:$0xff]
        %v961 = vld [vmem:[%s185 + $0x17e0] sm:$0xff]
        %v962 = vld [vmem:[%s185 + $0x17e8] sm:$0xff]
        %v963 = vld [vmem:[%s185 + $0x17f0] sm:$0xff]
        %v964 = vld [vmem:[%s185 + $0x17f8] sm:$0xff]
        %v965 = vld [vmem:[%s185 + $0x1800] sm:$0xff]
        %v966 = vld [vmem:[%s185 + $0x1808] sm:$0xff]
        %v967 = vld [vmem:[%s185 + $0x1810] sm:$0xff]
        %v968 = vld [vmem:[%s185 + $0x1818] sm:$0xff]
        %v969 = vld [vmem:[%s185 + $0x1820] sm:$0xff]
        %v970 = vld [vmem:[%s185 + $0x1828] sm:$0xff]
        %v971 = vld [vmem:[%s185 + $0x1830] sm:$0xff]
        %v972 = vld [vmem:[%s185 + $0x1838] sm:$0xff]
        %v973 = vld [vmem:[%s185 + $0x1840] sm:$0xff]
        %v974 = vld [vmem:[%s185 + $0x1848] sm:$0xff]
        %v975 = vld [vmem:[%s185 + $0x1850] sm:$0xff]
        %v976 = vld [vmem:[%s185 + $0x1858] sm:$0xff]
        %v977 = vld [vmem:[%s185 + $0x1860] sm:$0xff]
        %v978 = vld [vmem:[%s185 + $0x1868] sm:$0xff]
        %v979 = vld [vmem:[%s185 + $0x1870] sm:$0xff]
        %v980 = vld [vmem:[%s185 + $0x1878] sm:$0xff]
        %v981 = vld [vmem:[%s185 + $0x1880] sm:$0xff]
        %v982 = vld [vmem:[%s185 + $0x1888] sm:$0xff]
        %v983 = vld [vmem:[%s185 + $0x1890] sm:$0xff]
        %v984 = vld [vmem:[%s185 + $0x1898] sm:$0xff]
        %v985 = vld [vmem:[%s185 + $0x18a0] sm:$0xff]
        %v986 = vld [vmem:[%s185 + $0x18a8] sm:$0xff]
        %v987 = vld [vmem:[%s185 + $0x18b0] sm:$0xff]
        %v988 = vld [vmem:[%s185 + $0x18b8] sm:$0xff]
        %v989 = vld [vmem:[%s185 + $0x18c0] sm:$0xff]
        %v990 = vld [vmem:[%s185 + $0x18c8] sm:$0xff]
        %v991 = vld [vmem:[%s185 + $0x18d0] sm:$0xff]
        %v992 = vld [vmem:[%s185 + $0x18d8] sm:$0xff]
        %v993 = vld [vmem:[%s185 + $0x18e0] sm:$0xff]
        %v994 = vld [vmem:[%s185 + $0x18e8] sm:$0xff]
        %v995 = vld [vmem:[%s185 + $0x18f0] sm:$0xff]
        %v996 = vld [vmem:[%s185 + $0x18f8] sm:$0xff]
        %v997 = vld [vmem:[%s185 + $0x1900] sm:$0xff]
        %v998 = vld [vmem:[%s185 + $0x1908] sm:$0xff]
        %v999 = vld [vmem:[%s185 + $0x1910] sm:$0xff]
        %v1000 = vld [vmem:[%s185 + $0x1918] sm:$0xff]
        %v1001 = vld [vmem:[%s185 + $0x1920] sm:$0xff]
        %v1002 = vld [vmem:[%s185 + $0x1928] sm:$0xff]
        %v1003 = vld [vmem:[%s185 + $0x1930] sm:$0xff]
        %v1004 = vld [vmem:[%s185 + $0x1938] sm:$0xff]
        %v1005 = vld [vmem:[%s185 + $0x1940] sm:$0xff]
        %v1006 = vld [vmem:[%s185 + $0x1948] sm:$0xff]
        %v1007 = vld [vmem:[%s185 + $0x1950] sm:$0xff]
        %v1008 = vld [vmem:[%s185 + $0x1958] sm:$0xff]
        %v1009 = vld [vmem:[%s185 + $0x1960] sm:$0xff]
        %v1010 = vld [vmem:[%s185 + $0x1968] sm:$0xff]
        %v1011 = vld [vmem:[%s185 + $0x1970] sm:$0xff]
        %v1012 = vld [vmem:[%s185 + $0x1978] sm:$0xff]
        %v1013 = vld [vmem:[%s185 + $0x1980] sm:$0xff]
        %v1014 = vld [vmem:[%s185 + $0x1988] sm:$0xff]
        %v1015 = vld [vmem:[%s185 + $0x1990] sm:$0xff]
        %v1016 = vld [vmem:[%s185 + $0x1998] sm:$0xff]
        %v1017 = vld [vmem:[%s185 + $0x19a0] sm:$0xff]
        %v1018 = vld [vmem:[%s185 + $0x19a8] sm:$0xff]
        %v1019 = vld [vmem:[%s185 + $0x19b0] sm:$0xff]
        %v1020 = vld [vmem:[%s185 + $0x19b8] sm:$0xff]
        %v1021 = vld [vmem:[%s185 + $0x19c0] sm:$0xff]
        %v1022 = vld [vmem:[%s185 + $0x19c8] sm:$0xff]
        %v1023 = vld [vmem:[%s185 + $0x19d0] sm:$0xff]
        %v1024 = vld [vmem:[%s185 + $0x19d8] sm:$0xff]
        %v1025 = vld [vmem:[%s185 + $0x19e0] sm:$0xff]
        %v1026 = vld [vmem:[%s185 + $0x19e8] sm:$0xff]
        %v1027 = vld [vmem:[%s185 + $0x19f0] sm:$0xff]
        %v1028 = vld [vmem:[%s185 + $0x19f8] sm:$0xff]
        %v1029 = vld [vmem:[%s185 + $0x1a00] sm:$0xff]
        %v1030 = vld [vmem:[%s185 + $0x1a08] sm:$0xff]
        %v1031 = vld [vmem:[%s185 + $0x1a10] sm:$0xff]
        %v1032 = vld [vmem:[%s185 + $0x1a18] sm:$0xff]
        %v1033 = vld [vmem:[%s185 + $0x1a20] sm:$0xff]
        %v1034 = vld [vmem:[%s185 + $0x1a28] sm:$0xff]
        %v1035 = vld [vmem:[%s185 + $0x1a30] sm:$0xff]
        %v1036 = vld [vmem:[%s185 + $0x1a38] sm:$0xff]
        %v1037 = vld [vmem:[%s185 + $0x1a40] sm:$0xff]
        %v1038 = vld [vmem:[%s185 + $0x1a48] sm:$0xff]
        %v1039 = vld [vmem:[%s185 + $0x1a50] sm:$0xff]
        %v1040 = vld [vmem:[%s185 + $0x1a58] sm:$0xff]
        %v1041 = vld [vmem:[%s185 + $0x1a60] sm:$0xff]
        %v1042 = vld [vmem:[%s185 + $0x1a68] sm:$0xff]
        %v1043 = vld [vmem:[%s185 + $0x1a70] sm:$0xff]
        %v1044 = vld [vmem:[%s185 + $0x1a78] sm:$0xff]
        %v1045 = vld [vmem:[%s185 + $0x1a80] sm:$0xff]
        %v1046 = vld [vmem:[%s185 + $0x1a88] sm:$0xff]
        %v1047 = vld [vmem:[%s185 + $0x1a90] sm:$0xff]
        %v1048 = vld [vmem:[%s185 + $0x1a98] sm:$0xff]
        %v1049 = vld [vmem:[%s185 + $0x1aa0] sm:$0xff]
        %v1050 = vld [vmem:[%s185 + $0x1aa8] sm:$0xff]
        %v1051 = vld [vmem:[%s185 + $0x1ab0] sm:$0xff]
        %v1052 = vld [vmem:[%s185 + $0x1ab8] sm:$0xff]
        %v1053 = vld [vmem:[%s185 + $0x1ac0] sm:$0xff]
        %v1054 = vld [vmem:[%s185 + $0x1ac8] sm:$0xff]
        %v1055 = vld [vmem:[%s185 + $0x1ad0] sm:$0xff]
        %v1056 = vld [vmem:[%s185 + $0x1ad8] sm:$0xff]
        %v1057 = vld [vmem:[%s185 + $0x1ae0] sm:$0xff]
        %v1058 = vld [vmem:[%s185 + $0x1ae8] sm:$0xff]
        %v1059 = vld [vmem:[%s185 + $0x1af0] sm:$0xff]
        %v1060 = vld [vmem:[%s185 + $0x1af8] sm:$0xff]
        %v1061 = vld [vmem:[%s185 + $0x1b00] sm:$0xff]
        %v1062 = vld [vmem:[%s185 + $0x1b08] sm:$0xff]
        %v1063 = vld [vmem:[%s185 + $0x1b10] sm:$0xff]
        %v1064 = vld [vmem:[%s185 + $0x1b18] sm:$0xff]
        %v1065 = vld [vmem:[%s185 + $0x1b20] sm:$0xff]
        %v1066 = vld [vmem:[%s185 + $0x1b28] sm:$0xff]
        %v1067 = vld [vmem:[%s185 + $0x1b30] sm:$0xff]
        %v1068 = vld [vmem:[%s185 + $0x1b38] sm:$0xff]
        %v1069 = vld [vmem:[%s185 + $0x1b40] sm:$0xff]
        %v1070 = vld [vmem:[%s185 + $0x1b48] sm:$0xff]
        %v1071 = vld [vmem:[%s185 + $0x1b50] sm:$0xff]
        %v1072 = vld [vmem:[%s185 + $0x1b58] sm:$0xff]
        %v1073 = vld [vmem:[%s185 + $0x1b60] sm:$0xff]
        %v1074 = vld [vmem:[%s185 + $0x1b68] sm:$0xff]
        %v1075 = vld [vmem:[%s185 + $0x1b70] sm:$0xff]
        %v1076 = vld [vmem:[%s185 + $0x1b78] sm:$0xff]
        %v1077 = vld [vmem:[%s185 + $0x1b80] sm:$0xff]
        %v1078 = vld [vmem:[%s185 + $0x1b88] sm:$0xff]
        %v1079 = vld [vmem:[%s185 + $0x1b90] sm:$0xff]
        %v1080 = vld [vmem:[%s185 + $0x1b98] sm:$0xff]
        %v1081 = vld [vmem:[%s185 + $0x1ba0] sm:$0xff]
        %v1082 = vld [vmem:[%s185 + $0x1ba8] sm:$0xff]
        %v1083 = vld [vmem:[%s185 + $0x1bb0] sm:$0xff]
        %v1084 = vld [vmem:[%s185 + $0x1bb8] sm:$0xff]
        %v1085 = vld [vmem:[%s185 + $0x1bc0] sm:$0xff]
        %v1086 = vld [vmem:[%s185 + $0x1bc8] sm:$0xff]
        %v1087 = vld [vmem:[%s185 + $0x1bd0] sm:$0xff]
        %v1088 = vld [vmem:[%s185 + $0x1bd8] sm:$0xff]
        %v1089 = vld [vmem:[%s185 + $0x1be0] sm:$0xff]
        %v1090 = vld [vmem:[%s185 + $0x1be8] sm:$0xff]
        %v1091 = vld [vmem:[%s185 + $0x1bf0] sm:$0xff]
        %v1092 = vld [vmem:[%s185 + $0x1bf8] sm:$0xff]
        %v1093 = vld [vmem:[%s185 + $0x1c00] sm:$0xff]
        %v1094 = vld [vmem:[%s185 + $0x1c08] sm:$0xff]
        %v1095 = vld [vmem:[%s185 + $0x1c10] sm:$0xff]
        %v1096 = vld [vmem:[%s185 + $0x1c18] sm:$0xff]
        %v1097 = vld [vmem:[%s185 + $0x1c20] sm:$0xff]
        %v1098 = vld [vmem:[%s185 + $0x1c28] sm:$0xff]
        %v1099 = vld [vmem:[%s185 + $0x1c30] sm:$0xff]
        %v1100 = vld [vmem:[%s185 + $0x1c38] sm:$0xff]
        %v1101 = vld [vmem:[%s185 + $0x1c40] sm:$0xff]
        %v1102 = vld [vmem:[%s185 + $0x1c48] sm:$0xff]
        %v1103 = vld [vmem:[%s185 + $0x1c50] sm:$0xff]
        %v1104 = vld [vmem:[%s185 + $0x1c58] sm:$0xff]
        %v1105 = vld [vmem:[%s185 + $0x1c60] sm:$0xff]
        %v1106 = vld [vmem:[%s185 + $0x1c68] sm:$0xff]
        %v1107 = vld [vmem:[%s185 + $0x1c70] sm:$0xff]
        %v1108 = vld [vmem:[%s185 + $0x1c78] sm:$0xff]
        %v1109 = vld [vmem:[%s185 + $0x1c80] sm:$0xff]
        %v1110 = vld [vmem:[%s185 + $0x1c88] sm:$0xff]
        %v1111 = vld [vmem:[%s185 + $0x1c90] sm:$0xff]
        %v1112 = vld [vmem:[%s185 + $0x1c98] sm:$0xff]
        %v1113 = vld [vmem:[%s185 + $0x1ca0] sm:$0xff]
        %v1114 = vld [vmem:[%s185 + $0x1ca8] sm:$0xff]
        %v1115 = vld [vmem:[%s185 + $0x1cb0] sm:$0xff]
        %v1116 = vld [vmem:[%s185 + $0x1cb8] sm:$0xff]
        %v1117 = vld [vmem:[%s185 + $0x1cc0] sm:$0xff]
        %v1118 = vld [vmem:[%s185 + $0x1cc8] sm:$0xff]
        %v1119 = vld [vmem:[%s185 + $0x1cd0] sm:$0xff]
        %v1120 = vld [vmem:[%s185 + $0x1cd8] sm:$0xff]
        %v1121 = vld [vmem:[%s185 + $0x1ce0] sm:$0xff]
        %v1122 = vld [vmem:[%s185 + $0x1ce8] sm:$0xff]
        %v1123 = vld [vmem:[%s185 + $0x1cf0] sm:$0xff]
        %v1124 = vld [vmem:[%s185 + $0x1cf8] sm:$0xff]
        %v1125 = vld [vmem:[%s185 + $0x1d00] sm:$0xff]
        %v1126 = vld [vmem:[%s185 + $0x1d08] sm:$0xff]
        %v1127 = vld [vmem:[%s185 + $0x1d10] sm:$0xff]
        %v1128 = vld [vmem:[%s185 + $0x1d18] sm:$0xff]
        %v1129 = vld [vmem:[%s185 + $0x1d20] sm:$0xff]
        %v1130 = vld [vmem:[%s185 + $0x1d28] sm:$0xff]
        %v1131 = vld [vmem:[%s185 + $0x1d30] sm:$0xff]
        %v1132 = vld [vmem:[%s185 + $0x1d38] sm:$0xff]
        %v1133 = vld [vmem:[%s185 + $0x1d40] sm:$0xff]
        %v1134 = vld [vmem:[%s185 + $0x1d48] sm:$0xff]
        %v1135 = vld [vmem:[%s185 + $0x1d50] sm:$0xff]
        %v1136 = vld [vmem:[%s185 + $0x1d58] sm:$0xff]
        %v1137 = vld [vmem:[%s185 + $0x1d60] sm:$0xff]
        %v1138 = vld [vmem:[%s185 + $0x1d68] sm:$0xff]
        %v1139 = vld [vmem:[%s185 + $0x1d70] sm:$0xff]
        %v1140 = vld [vmem:[%s185 + $0x1d78] sm:$0xff]
        %v1141 = vld [vmem:[%s185 + $0x1d80] sm:$0xff]
        %v1142 = vld [vmem:[%s185 + $0x1d88] sm:$0xff]
        %v1143 = vld [vmem:[%s185 + $0x1d90] sm:$0xff]
        %v1144 = vld [vmem:[%s185 + $0x1d98] sm:$0xff]
        %v1145 = vld [vmem:[%s185 + $0x1da0] sm:$0xff]
        %v1146 = vld [vmem:[%s185 + $0x1da8] sm:$0xff]
        %v1147 = vld [vmem:[%s185 + $0x1db0] sm:$0xff]
        %v1148 = vld [vmem:[%s185 + $0x1db8] sm:$0xff]
        %v1149 = vld [vmem:[%s185 + $0x1dc0] sm:$0xff]
        %v1150 = vld [vmem:[%s185 + $0x1dc8] sm:$0xff]
        %v1151 = vld [vmem:[%s185 + $0x1dd0] sm:$0xff]
        %v1152 = vld [vmem:[%s185 + $0x1dd8] sm:$0xff]
        %v1153 = vld [vmem:[%s185 + $0x1de0] sm:$0xff]
        %v1154 = vld [vmem:[%s185 + $0x1de8] sm:$0xff]
        %v1155 = vld [vmem:[%s185 + $0x1df0] sm:$0xff]
        %v1156 = vld [vmem:[%s185 + $0x1df8] sm:$0xff]
        %v1157 = vld [vmem:[%s185 + $0x1e00] sm:$0xff]
        %v1158 = vld [vmem:[%s185 + $0x1e08] sm:$0xff]
        %v1159 = vld [vmem:[%s185 + $0x1e10] sm:$0xff]
        %v1160 = vld [vmem:[%s185 + $0x1e18] sm:$0xff]
        %v1161 = vld [vmem:[%s185 + $0x1e20] sm:$0xff]
        %v1162 = vld [vmem:[%s185 + $0x1e28] sm:$0xff]
        %v1163 = vld [vmem:[%s185 + $0x1e30] sm:$0xff]
        %v1164 = vld [vmem:[%s185 + $0x1e38] sm:$0xff]
        %v1165 = vld [vmem:[%s185 + $0x1e40] sm:$0xff]
        %v1166 = vld [vmem:[%s185 + $0x1e48] sm:$0xff]
        %v1167 = vld [vmem:[%s185 + $0x1e50] sm:$0xff]
        %v1168 = vld [vmem:[%s185 + $0x1e58] sm:$0xff]
        %v1169 = vld [vmem:[%s185 + $0x1e60] sm:$0xff]
        %v1170 = vld [vmem:[%s185 + $0x1e68] sm:$0xff]
        %v1171 = vld [vmem:[%s185 + $0x1e70] sm:$0xff]
        %v1172 = vld [vmem:[%s185 + $0x1e78] sm:$0xff]
        %v1173 = vld [vmem:[%s185 + $0x1e80] sm:$0xff]
        %v1174 = vld [vmem:[%s185 + $0x1e88] sm:$0xff]
        %v1175 = vld [vmem:[%s185 + $0x1e90] sm:$0xff]
        %v1176 = vld [vmem:[%s185 + $0x1e98] sm:$0xff]
        %v1177 = vld [vmem:[%s185 + $0x1ea0] sm:$0xff]
        %v1178 = vld [vmem:[%s185 + $0x1ea8] sm:$0xff]
        %v1179 = vld [vmem:[%s185 + $0x1eb0] sm:$0xff]
        %v1180 = vld [vmem:[%s185 + $0x1eb8] sm:$0xff]
        %v1181 = vld [vmem:[%s185 + $0x1ec0] sm:$0xff]
        %v1182 = vld [vmem:[%s185 + $0x1ec8] sm:$0xff]
        %v1183 = vld [vmem:[%s185 + $0x1ed0] sm:$0xff]
        %v1184 = vld [vmem:[%s185 + $0x1ed8] sm:$0xff]
        %v1185 = vld [vmem:[%s185 + $0x1ee0] sm:$0xff]
        %v1186 = vld [vmem:[%s185 + $0x1ee8] sm:$0xff]
        %v1187 = vld [vmem:[%s185 + $0x1ef0] sm:$0xff]
        %v1188 = vld [vmem:[%s185 + $0x1ef8] sm:$0xff]
        %v1189 = vld [vmem:[%s185 + $0x1f00] sm:$0xff]
        %v1190 = vld [vmem:[%s185 + $0x1f08] sm:$0xff]
        %v1191 = vld [vmem:[%s185 + $0x1f10] sm:$0xff]
        %v1192 = vld [vmem:[%s185 + $0x1f18] sm:$0xff]
        %v1193 = vld [vmem:[%s185 + $0x1f20] sm:$0xff]
        %v1194 = vld [vmem:[%s185 + $0x1f28] sm:$0xff]
        %v1195 = vld [vmem:[%s185 + $0x1f30] sm:$0xff]
        %v1196 = vld [vmem:[%s185 + $0x1f38] sm:$0xff]
        %v1197 = vld [vmem:[%s185 + $0x1f40] sm:$0xff]
        %v1198 = vld [vmem:[%s185 + $0x1f48] sm:$0xff]
        %v1199 = vld [vmem:[%s185 + $0x1f50] sm:$0xff]
        %v1200 = vld [vmem:[%s185 + $0x1f58] sm:$0xff]
        %v1201 = vld [vmem:[%s185 + $0x1f60] sm:$0xff]
        %v1202 = vld [vmem:[%s185 + $0x1f68] sm:$0xff]
        %v1203 = vld [vmem:[%s185 + $0x1f70] sm:$0xff]
        %v1204 = vld [vmem:[%s185 + $0x1f78] sm:$0xff]
        %v1205 = vld [vmem:[%s185 + $0x1f80] sm:$0xff]
        %v1206 = vld [vmem:[%s185 + $0x1f88] sm:$0xff]
        %v1207 = vld [vmem:[%s185 + $0x1f90] sm:$0xff]
        %v1208 = vld [vmem:[%s185 + $0x1f98] sm:$0xff]
        %v1209 = vld [vmem:[%s185 + $0x1fa0] sm:$0xff]
        %v1210 = vld [vmem:[%s185 + $0x1fa8] sm:$0xff]
        %v1211 = vld [vmem:[%s185 + $0x1fb0] sm:$0xff]
        %v1212 = vld [vmem:[%s185 + $0x1fb8] sm:$0xff]
        %v1213 = vld [vmem:[%s185 + $0x1fc0] sm:$0xff]
        %v1214 = vld [vmem:[%s185 + $0x1fc8] sm:$0xff]
        %v1215 = vld [vmem:[%s185 + $0x1fd0] sm:$0xff]
        %v1216 = vld [vmem:[%s185 + $0x1fd8] sm:$0xff]
        %v1217 = vld [vmem:[%s185 + $0x1fe0] sm:$0xff]
        %v1218 = vld [vmem:[%s185 + $0x1fe8] sm:$0xff]
        %v1219 = vld [vmem:[%s185 + $0x1ff0] sm:$0xff]
        %v1220 = vld [vmem:[%s185 + $0x1ff8] sm:$0xff]
        %v1221 = vld [vmem:[%s2] sm:$0x7]
        %1223 = vset.pattern.permute.xlu0 0
        %1224 = vperm.xlu0 %1223, %v1221
        %v1225 = vpop.permute.xlu0 %1224
        %vm1227 = vcmask 261120
        %v1229 = vsel %vm1227, %v196, 0
        %v1232 = vsel %vm1227, %v197, 0
        %v1235 = vsel %vm1227, %v198, 0
        %v1238 = vsel %vm1227, %v199, 0
        %v1241 = vsel %vm1227, %v200, 0
        %v1244 = vsel %vm1227, %v201, 0
        %v1247 = vsel %vm1227, %v202, 0
        %v1250 = vsel %vm1227, %v203, 0
        %v1253 = vsel %vm1227, %v204, 0
        %v1256 = vsel %vm1227, %v205, 0
        %v1259 = vsel %vm1227, %v206, 0
        %v1262 = vsel %vm1227, %v207, 0
        %v1265 = vsel %vm1227, %v208, 0
        %v1268 = vsel %vm1227, %v209, 0
        %v1271 = vsel %vm1227, %v210, 0
        %v1274 = vsel %vm1227, %v211, 0
        %v1277 = vsel %vm1227, %v212, 0
        %v1280 = vsel %vm1227, %v213, 0
        %v1283 = vsel %vm1227, %v214, 0
        %v1286 = vsel %vm1227, %v215, 0
        %v1289 = vsel %vm1227, %v216, 0
        %v1292 = vsel %vm1227, %v217, 0
        %v1295 = vsel %vm1227, %v218, 0
        %v1298 = vsel %vm1227, %v219, 0
        %v1301 = vsel %vm1227, %v220, 0
        %v1304 = vsel %vm1227, %v221, 0
        %v1307 = vsel %vm1227, %v222, 0
        %v1310 = vsel %vm1227, %v223, 0
        %v1313 = vsel %vm1227, %v224, 0
        %v1316 = vsel %vm1227, %v225, 0
        %v1319 = vsel %vm1227, %v226, 0
        %v1322 = vsel %vm1227, %v227, 0
        %v1325 = vsel %vm1227, %v228, 0
        %v1328 = vsel %vm1227, %v229, 0
        %v1331 = vsel %vm1227, %v230, 0
        %v1334 = vsel %vm1227, %v231, 0
        %v1337 = vsel %vm1227, %v232, 0
        %v1340 = vsel %vm1227, %v233, 0
        %v1343 = vsel %vm1227, %v234, 0
        %v1346 = vsel %vm1227, %v235, 0
        %v1349 = vsel %vm1227, %v236, 0
        %v1352 = vsel %vm1227, %v237, 0
        %v1355 = vsel %vm1227, %v238, 0
        %v1358 = vsel %vm1227, %v239, 0
        %v1361 = vsel %vm1227, %v240, 0
        %v1364 = vsel %vm1227, %v241, 0
        %v1367 = vsel %vm1227, %v242, 0
        %v1370 = vsel %vm1227, %v243, 0
        %v1373 = vsel %vm1227, %v244, 0
        %v1376 = vsel %vm1227, %v245, 0
        %v1379 = vsel %vm1227, %v246, 0
        %v1382 = vsel %vm1227, %v247, 0
        %v1385 = vsel %vm1227, %v248, 0
        %v1388 = vsel %vm1227, %v249, 0
        %v1391 = vsel %vm1227, %v250, 0
        %v1394 = vsel %vm1227, %v251, 0
        %v1397 = vsel %vm1227, %v252, 0
        %v1400 = vsel %vm1227, %v253, 0
        %v1403 = vsel %vm1227, %v254, 0
        %v1406 = vsel %vm1227, %v255, 0
        %v1409 = vsel %vm1227, %v256, 0
        %v1412 = vsel %vm1227, %v257, 0
        %v1415 = vsel %vm1227, %v258, 0
        %v1418 = vsel %vm1227, %v259, 0
        %v1421 = vsel %vm1227, %v260, 0
        %v1424 = vsel %vm1227, %v261, 0
        %v1427 = vsel %vm1227, %v262, 0
        %v1430 = vsel %vm1227, %v263, 0
        %v1433 = vsel %vm1227, %v264, 0
        %v1436 = vsel %vm1227, %v265, 0
        %v1439 = vsel %vm1227, %v266, 0
        %v1442 = vsel %vm1227, %v267, 0
        %v1445 = vsel %vm1227, %v268, 0
        %v1448 = vsel %vm1227, %v269, 0
        %v1451 = vsel %vm1227, %v270, 0
        %v1454 = vsel %vm1227, %v271, 0
        %v1457 = vsel %vm1227, %v272, 0
        %v1460 = vsel %vm1227, %v273, 0
        %v1463 = vsel %vm1227, %v274, 0
        %v1466 = vsel %vm1227, %v275, 0
        %v1469 = vsel %vm1227, %v276, 0
        %v1472 = vsel %vm1227, %v277, 0
        %v1475 = vsel %vm1227, %v278, 0
        %v1478 = vsel %vm1227, %v279, 0
        %v1481 = vsel %vm1227, %v280, 0
        %v1484 = vsel %vm1227, %v281, 0
        %v1487 = vsel %vm1227, %v282, 0
        %v1490 = vsel %vm1227, %v283, 0
        %v1493 = vsel %vm1227, %v284, 0
        %v1496 = vsel %vm1227, %v285, 0
        %v1499 = vsel %vm1227, %v286, 0
        %v1502 = vsel %vm1227, %v287, 0
        %v1505 = vsel %vm1227, %v288, 0
        %v1508 = vsel %vm1227, %v289, 0
        %v1511 = vsel %vm1227, %v290, 0
        %v1514 = vsel %vm1227, %v291, 0
        %v1517 = vsel %vm1227, %v292, 0
        %v1520 = vsel %vm1227, %v293, 0
        %v1523 = vsel %vm1227, %v294, 0
        %v1526 = vsel %vm1227, %v295, 0
        %v1529 = vsel %vm1227, %v296, 0
        %v1532 = vsel %vm1227, %v297, 0
        %v1535 = vsel %vm1227, %v298, 0
        %v1538 = vsel %vm1227, %v299, 0
        %v1541 = vsel %vm1227, %v300, 0
        %v1544 = vsel %vm1227, %v301, 0
        %v1547 = vsel %vm1227, %v302, 0
        %v1550 = vsel %vm1227, %v303, 0
        %v1553 = vsel %vm1227, %v304, 0
        %v1556 = vsel %vm1227, %v305, 0
        %v1559 = vsel %vm1227, %v306, 0
        %v1562 = vsel %vm1227, %v307, 0
        %v1565 = vsel %vm1227, %v308, 0
        %v1568 = vsel %vm1227, %v309, 0
        %v1571 = vsel %vm1227, %v310, 0
        %v1574 = vsel %vm1227, %v311, 0
        %v1577 = vsel %vm1227, %v312, 0
        %v1580 = vsel %vm1227, %v313, 0
        %v1583 = vsel %vm1227, %v314, 0
        %v1586 = vsel %vm1227, %v315, 0
        %v1589 = vsel %vm1227, %v316, 0
        %v1592 = vsel %vm1227, %v317, 0
        %v1595 = vsel %vm1227, %v318, 0
        %v1598 = vsel %vm1227, %v319, 0
        %v1601 = vsel %vm1227, %v320, 0
        %v1604 = vsel %vm1227, %v321, 0
        %v1607 = vsel %vm1227, %v322, 0
        %v1610 = vsel %vm1227, %v323, 0
        %v1613 = vsel %vm1227, %v324, 0
        %v1616 = vsel %vm1227, %v325, 0
        %v1619 = vsel %vm1227, %v326, 0
        %v1622 = vsel %vm1227, %v327, 0
        %v1625 = vsel %vm1227, %v328, 0
        %v1628 = vsel %vm1227, %v329, 0
        %v1631 = vsel %vm1227, %v330, 0
        %v1634 = vsel %vm1227, %v331, 0
        %v1637 = vsel %vm1227, %v332, 0
        %v1640 = vsel %vm1227, %v333, 0
        %v1643 = vsel %vm1227, %v334, 0
        %v1646 = vsel %vm1227, %v335, 0
        %v1649 = vsel %vm1227, %v336, 0
        %v1652 = vsel %vm1227, %v337, 0
        %v1655 = vsel %vm1227, %v338, 0
        %v1658 = vsel %vm1227, %v339, 0
        %v1661 = vsel %vm1227, %v340, 0
        %v1664 = vsel %vm1227, %v341, 0
        %v1667 = vsel %vm1227, %v342, 0
        %v1670 = vsel %vm1227, %v343, 0
        %v1673 = vsel %vm1227, %v344, 0
        %v1676 = vsel %vm1227, %v345, 0
        %v1679 = vsel %vm1227, %v346, 0
        %v1682 = vsel %vm1227, %v347, 0
        %v1685 = vsel %vm1227, %v348, 0
        %v1688 = vsel %vm1227, %v349, 0
        %v1691 = vsel %vm1227, %v350, 0
        %v1694 = vsel %vm1227, %v351, 0
        %v1697 = vsel %vm1227, %v352, 0
        %v1700 = vsel %vm1227, %v353, 0
        %v1703 = vsel %vm1227, %v354, 0
        %v1706 = vsel %vm1227, %v355, 0
        %v1709 = vsel %vm1227, %v356, 0
        %v1712 = vsel %vm1227, %v357, 0
        %v1715 = vsel %vm1227, %v358, 0
        %v1718 = vsel %vm1227, %v359, 0
        %v1721 = vsel %vm1227, %v360, 0
        %v1724 = vsel %vm1227, %v361, 0
        %v1727 = vsel %vm1227, %v362, 0
        %v1730 = vsel %vm1227, %v363, 0
        %v1733 = vsel %vm1227, %v364, 0
        %v1736 = vsel %vm1227, %v365, 0
        %v1739 = vsel %vm1227, %v366, 0
        %v1742 = vsel %vm1227, %v367, 0
        %v1745 = vsel %vm1227, %v368, 0
        %v1748 = vsel %vm1227, %v369, 0
        %v1751 = vsel %vm1227, %v370, 0
        %v1754 = vsel %vm1227, %v371, 0
        %v1757 = vsel %vm1227, %v372, 0
        %v1760 = vsel %vm1227, %v373, 0
        %v1763 = vsel %vm1227, %v374, 0
        %v1766 = vsel %vm1227, %v375, 0
        %v1769 = vsel %vm1227, %v376, 0
        %v1772 = vsel %vm1227, %v377, 0
        %v1775 = vsel %vm1227, %v378, 0
        %v1778 = vsel %vm1227, %v379, 0
        %v1781 = vsel %vm1227, %v380, 0
        %v1784 = vsel %vm1227, %v381, 0
        %v1787 = vsel %vm1227, %v382, 0
        %v1790 = vsel %vm1227, %v383, 0
        %v1793 = vsel %vm1227, %v384, 0
        %v1796 = vsel %vm1227, %v385, 0
        %v1799 = vsel %vm1227, %v386, 0
        %v1802 = vsel %vm1227, %v387, 0
        %v1805 = vsel %vm1227, %v388, 0
        %v1808 = vsel %vm1227, %v389, 0
        %v1811 = vsel %vm1227, %v390, 0
        %v1814 = vsel %vm1227, %v391, 0
        %v1817 = vsel %vm1227, %v392, 0
        %v1820 = vsel %vm1227, %v393, 0
        %v1823 = vsel %vm1227, %v394, 0
        %v1826 = vsel %vm1227, %v395, 0
        %v1829 = vsel %vm1227, %v396, 0
        %v1832 = vsel %vm1227, %v397, 0
        %v1835 = vsel %vm1227, %v398, 0
        %v1838 = vsel %vm1227, %v399, 0
        %v1841 = vsel %vm1227, %v400, 0
        %v1844 = vsel %vm1227, %v401, 0
        %v1847 = vsel %vm1227, %v402, 0
        %v1850 = vsel %vm1227, %v403, 0
        %v1853 = vsel %vm1227, %v404, 0
        %v1856 = vsel %vm1227, %v405, 0
        %v1859 = vsel %vm1227, %v406, 0
        %v1862 = vsel %vm1227, %v407, 0
        %v1865 = vsel %vm1227, %v408, 0
        %v1868 = vsel %vm1227, %v409, 0
        %v1871 = vsel %vm1227, %v410, 0
        %v1874 = vsel %vm1227, %v411, 0
        %v1877 = vsel %vm1227, %v412, 0
        %v1880 = vsel %vm1227, %v413, 0
        %v1883 = vsel %vm1227, %v414, 0
        %v1886 = vsel %vm1227, %v415, 0
        %v1889 = vsel %vm1227, %v416, 0
        %v1892 = vsel %vm1227, %v417, 0
        %v1895 = vsel %vm1227, %v418, 0
        %v1898 = vsel %vm1227, %v419, 0
        %v1901 = vsel %vm1227, %v420, 0
        %v1904 = vsel %vm1227, %v421, 0
        %v1907 = vsel %vm1227, %v422, 0
        %v1910 = vsel %vm1227, %v423, 0
        %v1913 = vsel %vm1227, %v424, 0
        %v1916 = vsel %vm1227, %v425, 0
        %v1919 = vsel %vm1227, %v426, 0
        %v1922 = vsel %vm1227, %v427, 0
        %v1925 = vsel %vm1227, %v428, 0
        %v1928 = vsel %vm1227, %v429, 0
        %v1931 = vsel %vm1227, %v430, 0
        %v1934 = vsel %vm1227, %v431, 0
        %v1937 = vsel %vm1227, %v432, 0
        %v1940 = vsel %vm1227, %v433, 0
        %v1943 = vsel %vm1227, %v434, 0
        %v1946 = vsel %vm1227, %v435, 0
        %v1949 = vsel %vm1227, %v436, 0
        %v1952 = vsel %vm1227, %v437, 0
        %v1955 = vsel %vm1227, %v438, 0
        %v1958 = vsel %vm1227, %v439, 0
        %v1961 = vsel %vm1227, %v440, 0
        %v1964 = vsel %vm1227, %v441, 0
        %v1967 = vsel %vm1227, %v442, 0
        %v1970 = vsel %vm1227, %v443, 0
        %v1973 = vsel %vm1227, %v444, 0
        %v1976 = vsel %vm1227, %v445, 0
        %v1979 = vsel %vm1227, %v446, 0
        %v1982 = vsel %vm1227, %v447, 0
        %v1985 = vsel %vm1227, %v448, 0
        %v1988 = vsel %vm1227, %v449, 0
        %v1991 = vsel %vm1227, %v450, 0
        %v1994 = vsel %vm1227, %v451, 0
        %v1997 = vsel %vm1227, %v452, 0
        %v2000 = vsel %vm1227, %v453, 0
        %v2003 = vsel %vm1227, %v454, 0
        %v2006 = vsel %vm1227, %v455, 0
        %v2009 = vsel %vm1227, %v456, 0
        %v2012 = vsel %vm1227, %v457, 0
        %v2015 = vsel %vm1227, %v458, 0
        %v2018 = vsel %vm1227, %v459, 0
        %v2021 = vsel %vm1227, %v460, 0
        %v2024 = vsel %vm1227, %v461, 0
        %v2027 = vsel %vm1227, %v462, 0
        %v2030 = vsel %vm1227, %v463, 0
        %v2033 = vsel %vm1227, %v464, 0
        %v2036 = vsel %vm1227, %v465, 0
        %v2039 = vsel %vm1227, %v466, 0
        %v2042 = vsel %vm1227, %v467, 0
        %v2045 = vsel %vm1227, %v468, 0
        %v2048 = vsel %vm1227, %v469, 0
        %v2051 = vsel %vm1227, %v470, 0
        %v2054 = vsel %vm1227, %v471, 0
        %v2057 = vsel %vm1227, %v472, 0
        %v2060 = vsel %vm1227, %v473, 0
        %v2063 = vsel %vm1227, %v474, 0
        %v2066 = vsel %vm1227, %v475, 0
        %v2069 = vsel %vm1227, %v476, 0
        %v2072 = vsel %vm1227, %v477, 0
        %v2075 = vsel %vm1227, %v478, 0
        %v2078 = vsel %vm1227, %v479, 0
        %v2081 = vsel %vm1227, %v480, 0
        %v2084 = vsel %vm1227, %v481, 0
        %v2087 = vsel %vm1227, %v482, 0
        %v2090 = vsel %vm1227, %v483, 0
        %v2093 = vsel %vm1227, %v484, 0
        %v2096 = vsel %vm1227, %v485, 0
        %v2099 = vsel %vm1227, %v486, 0
        %v2102 = vsel %vm1227, %v487, 0
        %v2105 = vsel %vm1227, %v488, 0
        %v2108 = vsel %vm1227, %v489, 0
        %v2111 = vsel %vm1227, %v490, 0
        %v2114 = vsel %vm1227, %v491, 0
        %v2117 = vsel %vm1227, %v492, 0
        %v2120 = vsel %vm1227, %v493, 0
        %v2123 = vsel %vm1227, %v494, 0
        %v2126 = vsel %vm1227, %v495, 0
        %v2129 = vsel %vm1227, %v496, 0
        %v2132 = vsel %vm1227, %v497, 0
        %v2135 = vsel %vm1227, %v498, 0
        %v2138 = vsel %vm1227, %v499, 0
        %v2141 = vsel %vm1227, %v500, 0
        %v2144 = vsel %vm1227, %v501, 0
        %v2147 = vsel %vm1227, %v502, 0
        %v2150 = vsel %vm1227, %v503, 0
        %v2153 = vsel %vm1227, %v504, 0
        %v2156 = vsel %vm1227, %v505, 0
        %v2159 = vsel %vm1227, %v506, 0
        %v2162 = vsel %vm1227, %v507, 0
        %v2165 = vsel %vm1227, %v508, 0
        %v2168 = vsel %vm1227, %v509, 0
        %v2171 = vsel %vm1227, %v510, 0
        %v2174 = vsel %vm1227, %v511, 0
        %v2177 = vsel %vm1227, %v512, 0
        %v2180 = vsel %vm1227, %v513, 0
        %v2183 = vsel %vm1227, %v514, 0
        %v2186 = vsel %vm1227, %v515, 0
        %v2189 = vsel %vm1227, %v516, 0
        %v2192 = vsel %vm1227, %v517, 0
        %v2195 = vsel %vm1227, %v518, 0
        %v2198 = vsel %vm1227, %v519, 0
        %v2201 = vsel %vm1227, %v520, 0
        %v2204 = vsel %vm1227, %v521, 0
        %v2207 = vsel %vm1227, %v522, 0
        %v2210 = vsel %vm1227, %v523, 0
        %v2213 = vsel %vm1227, %v524, 0
        %v2216 = vsel %vm1227, %v525, 0
        %v2219 = vsel %vm1227, %v526, 0
        %v2222 = vsel %vm1227, %v527, 0
        %v2225 = vsel %vm1227, %v528, 0
        %v2228 = vsel %vm1227, %v529, 0
        %v2231 = vsel %vm1227, %v530, 0
        %v2234 = vsel %vm1227, %v531, 0
        %v2237 = vsel %vm1227, %v532, 0
        %v2240 = vsel %vm1227, %v533, 0
        %v2243 = vsel %vm1227, %v534, 0
        %v2246 = vsel %vm1227, %v535, 0
        %v2249 = vsel %vm1227, %v536, 0
        %v2252 = vsel %vm1227, %v537, 0
        %v2255 = vsel %vm1227, %v538, 0
        %v2258 = vsel %vm1227, %v539, 0
        %v2261 = vsel %vm1227, %v540, 0
        %v2264 = vsel %vm1227, %v541, 0
        %v2267 = vsel %vm1227, %v542, 0
        %v2270 = vsel %vm1227, %v543, 0
        %v2273 = vsel %vm1227, %v544, 0
        %v2276 = vsel %vm1227, %v545, 0
        %v2279 = vsel %vm1227, %v546, 0
        %v2282 = vsel %vm1227, %v547, 0
        %v2285 = vsel %vm1227, %v548, 0
        %v2288 = vsel %vm1227, %v549, 0
        %v2291 = vsel %vm1227, %v550, 0
        %v2294 = vsel %vm1227, %v551, 0
        %v2297 = vsel %vm1227, %v552, 0
        %v2300 = vsel %vm1227, %v553, 0
        %v2303 = vsel %vm1227, %v554, 0
        %v2306 = vsel %vm1227, %v555, 0
        %v2309 = vsel %vm1227, %v556, 0
        %v2312 = vsel %vm1227, %v557, 0
        %v2315 = vsel %vm1227, %v558, 0
        %v2318 = vsel %vm1227, %v559, 0
        %v2321 = vsel %vm1227, %v560, 0
        %v2324 = vsel %vm1227, %v561, 0
        %v2327 = vsel %vm1227, %v562, 0
        %v2330 = vsel %vm1227, %v563, 0
        %v2333 = vsel %vm1227, %v564, 0
        %v2336 = vsel %vm1227, %v565, 0
        %v2339 = vsel %vm1227, %v566, 0
        %v2342 = vsel %vm1227, %v567, 0
        %v2345 = vsel %vm1227, %v568, 0
        %v2348 = vsel %vm1227, %v569, 0
        %v2351 = vsel %vm1227, %v570, 0
        %v2354 = vsel %vm1227, %v571, 0
        %v2357 = vsel %vm1227, %v572, 0
        %v2360 = vsel %vm1227, %v573, 0
        %v2363 = vsel %vm1227, %v574, 0
        %v2366 = vsel %vm1227, %v575, 0
        %v2369 = vsel %vm1227, %v576, 0
        %v2372 = vsel %vm1227, %v577, 0
        %v2375 = vsel %vm1227, %v578, 0
        %v2378 = vsel %vm1227, %v579, 0
        %v2381 = vsel %vm1227, %v580, 0
        %v2384 = vsel %vm1227, %v581, 0
        %v2387 = vsel %vm1227, %v582, 0
        %v2390 = vsel %vm1227, %v583, 0
        %v2393 = vsel %vm1227, %v584, 0
        %v2396 = vsel %vm1227, %v585, 0
        %v2399 = vsel %vm1227, %v586, 0
        %v2402 = vsel %vm1227, %v587, 0
        %v2405 = vsel %vm1227, %v588, 0
        %v2408 = vsel %vm1227, %v589, 0
        %v2411 = vsel %vm1227, %v590, 0
        %v2414 = vsel %vm1227, %v591, 0
        %v2417 = vsel %vm1227, %v592, 0
        %v2420 = vsel %vm1227, %v593, 0
        %v2423 = vsel %vm1227, %v594, 0
        %v2426 = vsel %vm1227, %v595, 0
        %v2429 = vsel %vm1227, %v596, 0
        %v2432 = vsel %vm1227, %v597, 0
        %v2435 = vsel %vm1227, %v598, 0
        %v2438 = vsel %vm1227, %v599, 0
        %v2441 = vsel %vm1227, %v600, 0
        %v2444 = vsel %vm1227, %v601, 0
        %v2447 = vsel %vm1227, %v602, 0
        %v2450 = vsel %vm1227, %v603, 0
        %v2453 = vsel %vm1227, %v604, 0
        %v2456 = vsel %vm1227, %v605, 0
        %v2459 = vsel %vm1227, %v606, 0
        %v2462 = vsel %vm1227, %v607, 0
        %v2465 = vsel %vm1227, %v608, 0
        %v2468 = vsel %vm1227, %v609, 0
        %v2471 = vsel %vm1227, %v610, 0
        %v2474 = vsel %vm1227, %v611, 0
        %v2477 = vsel %vm1227, %v612, 0
        %v2480 = vsel %vm1227, %v613, 0
        %v2483 = vsel %vm1227, %v614, 0
        %v2486 = vsel %vm1227, %v615, 0
        %v2489 = vsel %vm1227, %v616, 0
        %v2492 = vsel %vm1227, %v617, 0
        %v2495 = vsel %vm1227, %v618, 0
        %v2498 = vsel %vm1227, %v619, 0
        %v2501 = vsel %vm1227, %v620, 0
        %v2504 = vsel %vm1227, %v621, 0
        %v2507 = vsel %vm1227, %v622, 0
        %v2510 = vsel %vm1227, %v623, 0
        %v2513 = vsel %vm1227, %v624, 0
        %v2516 = vsel %vm1227, %v625, 0
        %v2519 = vsel %vm1227, %v626, 0
        %v2522 = vsel %vm1227, %v627, 0
        %v2525 = vsel %vm1227, %v628, 0
        %v2528 = vsel %vm1227, %v629, 0
        %v2531 = vsel %vm1227, %v630, 0
        %v2534 = vsel %vm1227, %v631, 0
        %v2537 = vsel %vm1227, %v632, 0
        %v2540 = vsel %vm1227, %v633, 0
        %v2543 = vsel %vm1227, %v634, 0
        %v2546 = vsel %vm1227, %v635, 0
        %v2549 = vsel %vm1227, %v636, 0
        %v2552 = vsel %vm1227, %v637, 0
        %v2555 = vsel %vm1227, %v638, 0
        %v2558 = vsel %vm1227, %v639, 0
        %v2561 = vsel %vm1227, %v640, 0
        %v2564 = vsel %vm1227, %v641, 0
        %v2567 = vsel %vm1227, %v642, 0
        %v2570 = vsel %vm1227, %v643, 0
        %v2573 = vsel %vm1227, %v644, 0
        %v2576 = vsel %vm1227, %v645, 0
        %v2579 = vsel %vm1227, %v646, 0
        %v2582 = vsel %vm1227, %v647, 0
        %v2585 = vsel %vm1227, %v648, 0
        %v2588 = vsel %vm1227, %v649, 0
        %v2591 = vsel %vm1227, %v650, 0
        %v2594 = vsel %vm1227, %v651, 0
        %v2597 = vsel %vm1227, %v652, 0
        %v2600 = vsel %vm1227, %v653, 0
        %v2603 = vsel %vm1227, %v654, 0
        %v2606 = vsel %vm1227, %v655, 0
        %v2609 = vsel %vm1227, %v656, 0
        %v2612 = vsel %vm1227, %v657, 0
        %v2615 = vsel %vm1227, %v658, 0
        %v2618 = vsel %vm1227, %v659, 0
        %v2621 = vsel %vm1227, %v660, 0
        %v2624 = vsel %vm1227, %v661, 0
        %v2627 = vsel %vm1227, %v662, 0
        %v2630 = vsel %vm1227, %v663, 0
        %v2633 = vsel %vm1227, %v664, 0
        %v2636 = vsel %vm1227, %v665, 0
        %v2639 = vsel %vm1227, %v666, 0
        %v2642 = vsel %vm1227, %v667, 0
        %v2645 = vsel %vm1227, %v668, 0
        %v2648 = vsel %vm1227, %v669, 0
        %v2651 = vsel %vm1227, %v670, 0
        %v2654 = vsel %vm1227, %v671, 0
        %v2657 = vsel %vm1227, %v672, 0
        %v2660 = vsel %vm1227, %v673, 0
        %v2663 = vsel %vm1227, %v674, 0
        %v2666 = vsel %vm1227, %v675, 0
        %v2669 = vsel %vm1227, %v676, 0
        %v2672 = vsel %vm1227, %v677, 0
        %v2675 = vsel %vm1227, %v678, 0
        %v2678 = vsel %vm1227, %v679, 0
        %v2681 = vsel %vm1227, %v680, 0
        %v2684 = vsel %vm1227, %v681, 0
        %v2687 = vsel %vm1227, %v682, 0
        %v2690 = vsel %vm1227, %v683, 0
        %v2693 = vsel %vm1227, %v684, 0
        %v2696 = vsel %vm1227, %v685, 0
        %v2699 = vsel %vm1227, %v686, 0
        %v2702 = vsel %vm1227, %v687, 0
        %v2705 = vsel %vm1227, %v688, 0
        %v2708 = vsel %vm1227, %v689, 0
        %v2711 = vsel %vm1227, %v690, 0
        %v2714 = vsel %vm1227, %v691, 0
        %v2717 = vsel %vm1227, %v692, 0
        %v2720 = vsel %vm1227, %v693, 0
        %v2723 = vsel %vm1227, %v694, 0
        %v2726 = vsel %vm1227, %v695, 0
        %v2729 = vsel %vm1227, %v696, 0
        %v2732 = vsel %vm1227, %v697, 0
        %v2735 = vsel %vm1227, %v698, 0
        %v2738 = vsel %vm1227, %v699, 0
        %v2741 = vsel %vm1227, %v700, 0
        %v2744 = vsel %vm1227, %v701, 0
        %v2747 = vsel %vm1227, %v702, 0
        %v2750 = vsel %vm1227, %v703, 0
        %v2753 = vsel %vm1227, %v704, 0
        %v2756 = vsel %vm1227, %v705, 0
        %v2759 = vsel %vm1227, %v706, 0
        %v2762 = vsel %vm1227, %v707, 0
        %v2765 = vsel %vm1227, %v708, 0
        %v2768 = vsel %vm1227, %v709, 0
        %v2771 = vsel %vm1227, %v710, 0
        %v2774 = vsel %vm1227, %v711, 0
        %v2777 = vsel %vm1227, %v712, 0
        %v2780 = vsel %vm1227, %v713, 0
        %v2783 = vsel %vm1227, %v714, 0
        %v2786 = vsel %vm1227, %v715, 0
        %v2789 = vsel %vm1227, %v716, 0
        %v2792 = vsel %vm1227, %v717, 0
        %v2795 = vsel %vm1227, %v718, 0
        %v2798 = vsel %vm1227, %v719, 0
        %v2801 = vsel %vm1227, %v720, 0
        %v2804 = vsel %vm1227, %v721, 0
        %v2807 = vsel %vm1227, %v722, 0
        %v2810 = vsel %vm1227, %v723, 0
        %v2813 = vsel %vm1227, %v724, 0
        %v2816 = vsel %vm1227, %v725, 0
        %v2819 = vsel %vm1227, %v726, 0
        %v2822 = vsel %vm1227, %v727, 0
        %v2825 = vsel %vm1227, %v728, 0
        %v2828 = vsel %vm1227, %v729, 0
        %v2831 = vsel %vm1227, %v730, 0
        %v2834 = vsel %vm1227, %v731, 0
        %v2837 = vsel %vm1227, %v732, 0
        %v2840 = vsel %vm1227, %v733, 0
        %v2843 = vsel %vm1227, %v734, 0
        %v2846 = vsel %vm1227, %v735, 0
        %v2849 = vsel %vm1227, %v736, 0
        %v2852 = vsel %vm1227, %v737, 0
        %v2855 = vsel %vm1227, %v738, 0
        %v2858 = vsel %vm1227, %v739, 0
        %v2861 = vsel %vm1227, %v740, 0
        %v2864 = vsel %vm1227, %v741, 0
        %v2867 = vsel %vm1227, %v742, 0
        %v2870 = vsel %vm1227, %v743, 0
        %v2873 = vsel %vm1227, %v744, 0
        %v2876 = vsel %vm1227, %v745, 0
        %v2879 = vsel %vm1227, %v746, 0
        %v2882 = vsel %vm1227, %v747, 0
        %v2885 = vsel %vm1227, %v748, 0
        %v2888 = vsel %vm1227, %v749, 0
        %v2891 = vsel %vm1227, %v750, 0
        %v2894 = vsel %vm1227, %v751, 0
        %v2897 = vsel %vm1227, %v752, 0
        %v2900 = vsel %vm1227, %v753, 0
        %v2903 = vsel %vm1227, %v754, 0
        %v2906 = vsel %vm1227, %v755, 0
        %v2909 = vsel %vm1227, %v756, 0
        %v2912 = vsel %vm1227, %v757, 0
        %v2915 = vsel %vm1227, %v758, 0
        %v2918 = vsel %vm1227, %v759, 0
        %v2921 = vsel %vm1227, %v760, 0
        %v2924 = vsel %vm1227, %v761, 0
        %v2927 = vsel %vm1227, %v762, 0
        %v2930 = vsel %vm1227, %v763, 0
        %v2933 = vsel %vm1227, %v764, 0
        %v2936 = vsel %vm1227, %v765, 0
        %v2939 = vsel %vm1227, %v766, 0
        %v2942 = vsel %vm1227, %v767, 0
        %v2945 = vsel %vm1227, %v768, 0
        %v2948 = vsel %vm1227, %v769, 0
        %v2951 = vsel %vm1227, %v770, 0
        %v2954 = vsel %vm1227, %v771, 0
        %v2957 = vsel %vm1227, %v772, 0
        %v2960 = vsel %vm1227, %v773, 0
        %v2963 = vsel %vm1227, %v774, 0
        %v2966 = vsel %vm1227, %v775, 0
        %v2969 = vsel %vm1227, %v776, 0
        %v2972 = vsel %vm1227, %v777, 0
        %v2975 = vsel %vm1227, %v778, 0
        %v2978 = vsel %vm1227, %v779, 0
        %v2981 = vsel %vm1227, %v780, 0
        %v2984 = vsel %vm1227, %v781, 0
        %v2987 = vsel %vm1227, %v782, 0
        %v2990 = vsel %vm1227, %v783, 0
        %v2993 = vsel %vm1227, %v784, 0
        %v2996 = vsel %vm1227, %v785, 0
        %v2999 = vsel %vm1227, %v786, 0
        %v3002 = vsel %vm1227, %v787, 0
        %v3005 = vsel %vm1227, %v788, 0
        %v3008 = vsel %vm1227, %v789, 0
        %v3011 = vsel %vm1227, %v790, 0
        %v3014 = vsel %vm1227, %v791, 0
        %v3017 = vsel %vm1227, %v792, 0
        %v3020 = vsel %vm1227, %v793, 0
        %v3023 = vsel %vm1227, %v794, 0
        %v3026 = vsel %vm1227, %v795, 0
        %v3029 = vsel %vm1227, %v796, 0
        %v3032 = vsel %vm1227, %v797, 0
        %v3035 = vsel %vm1227, %v798, 0
        %v3038 = vsel %vm1227, %v799, 0
        %v3041 = vsel %vm1227, %v800, 0
        %v3044 = vsel %vm1227, %v801, 0
        %v3047 = vsel %vm1227, %v802, 0
        %v3050 = vsel %vm1227, %v803, 0
        %v3053 = vsel %vm1227, %v804, 0
        %v3056 = vsel %vm1227, %v805, 0
        %v3059 = vsel %vm1227, %v806, 0
        %v3062 = vsel %vm1227, %v807, 0
        %v3065 = vsel %vm1227, %v808, 0
        %v3068 = vsel %vm1227, %v809, 0
        %v3071 = vsel %vm1227, %v810, 0
        %v3074 = vsel %vm1227, %v811, 0
        %v3077 = vsel %vm1227, %v812, 0
        %v3080 = vsel %vm1227, %v813, 0
        %v3083 = vsel %vm1227, %v814, 0
        %v3086 = vsel %vm1227, %v815, 0
        %v3089 = vsel %vm1227, %v816, 0
        %v3092 = vsel %vm1227, %v817, 0
        %v3095 = vsel %vm1227, %v818, 0
        %v3098 = vsel %vm1227, %v819, 0
        %v3101 = vsel %vm1227, %v820, 0
        %v3104 = vsel %vm1227, %v821, 0
        %v3107 = vsel %vm1227, %v822, 0
        %v3110 = vsel %vm1227, %v823, 0
        %v3113 = vsel %vm1227, %v824, 0
        %v3116 = vsel %vm1227, %v825, 0
        %v3119 = vsel %vm1227, %v826, 0
        %v3122 = vsel %vm1227, %v827, 0
        %v3125 = vsel %vm1227, %v828, 0
        %v3128 = vsel %vm1227, %v829, 0
        %v3131 = vsel %vm1227, %v830, 0
        %v3134 = vsel %vm1227, %v831, 0
        %v3137 = vsel %vm1227, %v832, 0
        %v3140 = vsel %vm1227, %v833, 0
        %v3143 = vsel %vm1227, %v834, 0
        %v3146 = vsel %vm1227, %v835, 0
        %v3149 = vsel %vm1227, %v836, 0
        %v3152 = vsel %vm1227, %v837, 0
        %v3155 = vsel %vm1227, %v838, 0
        %v3158 = vsel %vm1227, %v839, 0
        %v3161 = vsel %vm1227, %v840, 0
        %v3164 = vsel %vm1227, %v841, 0
        %v3167 = vsel %vm1227, %v842, 0
        %v3170 = vsel %vm1227, %v843, 0
        %v3173 = vsel %vm1227, %v844, 0
        %v3176 = vsel %vm1227, %v845, 0
        %v3179 = vsel %vm1227, %v846, 0
        %v3182 = vsel %vm1227, %v847, 0
        %v3185 = vsel %vm1227, %v848, 0
        %v3188 = vsel %vm1227, %v849, 0
        %v3191 = vsel %vm1227, %v850, 0
        %v3194 = vsel %vm1227, %v851, 0
        %v3197 = vsel %vm1227, %v852, 0
        %v3200 = vsel %vm1227, %v853, 0
        %v3203 = vsel %vm1227, %v854, 0
        %v3206 = vsel %vm1227, %v855, 0
        %v3209 = vsel %vm1227, %v856, 0
        %v3212 = vsel %vm1227, %v857, 0
        %v3215 = vsel %vm1227, %v858, 0
        %v3218 = vsel %vm1227, %v859, 0
        %v3221 = vsel %vm1227, %v860, 0
        %v3224 = vsel %vm1227, %v861, 0
        %v3227 = vsel %vm1227, %v862, 0
        %v3230 = vsel %vm1227, %v863, 0
        %v3233 = vsel %vm1227, %v864, 0
        %v3236 = vsel %vm1227, %v865, 0
        %v3239 = vsel %vm1227, %v866, 0
        %v3242 = vsel %vm1227, %v867, 0
        %v3245 = vsel %vm1227, %v868, 0
        %v3248 = vsel %vm1227, %v869, 0
        %v3251 = vsel %vm1227, %v870, 0
        %v3254 = vsel %vm1227, %v871, 0
        %v3257 = vsel %vm1227, %v872, 0
        %v3260 = vsel %vm1227, %v873, 0
        %v3263 = vsel %vm1227, %v874, 0
        %v3266 = vsel %vm1227, %v875, 0
        %v3269 = vsel %vm1227, %v876, 0
        %v3272 = vsel %vm1227, %v877, 0
        %v3275 = vsel %vm1227, %v878, 0
        %v3278 = vsel %vm1227, %v879, 0
        %v3281 = vsel %vm1227, %v880, 0
        %v3284 = vsel %vm1227, %v881, 0
        %v3287 = vsel %vm1227, %v882, 0
        %v3290 = vsel %vm1227, %v883, 0
        %v3293 = vsel %vm1227, %v884, 0
        %v3296 = vsel %vm1227, %v885, 0
        %v3299 = vsel %vm1227, %v886, 0
        %v3302 = vsel %vm1227, %v887, 0
        %v3305 = vsel %vm1227, %v888, 0
        %v3308 = vsel %vm1227, %v889, 0
        %v3311 = vsel %vm1227, %v890, 0
        %v3314 = vsel %vm1227, %v891, 0
        %v3317 = vsel %vm1227, %v892, 0
        %v3320 = vsel %vm1227, %v893, 0
        %v3323 = vsel %vm1227, %v894, 0
        %v3326 = vsel %vm1227, %v895, 0
        %v3329 = vsel %vm1227, %v896, 0
        %v3332 = vsel %vm1227, %v897, 0
        %v3335 = vsel %vm1227, %v898, 0
        %v3338 = vsel %vm1227, %v899, 0
        %v3341 = vsel %vm1227, %v900, 0
        %v3344 = vsel %vm1227, %v901, 0
        %v3347 = vsel %vm1227, %v902, 0
        %v3350 = vsel %vm1227, %v903, 0
        %v3353 = vsel %vm1227, %v904, 0
        %v3356 = vsel %vm1227, %v905, 0
        %v3359 = vsel %vm1227, %v906, 0
        %v3362 = vsel %vm1227, %v907, 0
        %v3365 = vsel %vm1227, %v908, 0
        %v3368 = vsel %vm1227, %v909, 0
        %v3371 = vsel %vm1227, %v910, 0
        %v3374 = vsel %vm1227, %v911, 0
        %v3377 = vsel %vm1227, %v912, 0
        %v3380 = vsel %vm1227, %v913, 0
        %v3383 = vsel %vm1227, %v914, 0
        %v3386 = vsel %vm1227, %v915, 0
        %v3389 = vsel %vm1227, %v916, 0
        %v3392 = vsel %vm1227, %v917, 0
        %v3395 = vsel %vm1227, %v918, 0
        %v3398 = vsel %vm1227, %v919, 0
        %v3401 = vsel %vm1227, %v920, 0
        %v3404 = vsel %vm1227, %v921, 0
        %v3407 = vsel %vm1227, %v922, 0
        %v3410 = vsel %vm1227, %v923, 0
        %v3413 = vsel %vm1227, %v924, 0
        %v3416 = vsel %vm1227, %v925, 0
        %v3419 = vsel %vm1227, %v926, 0
        %v3422 = vsel %vm1227, %v927, 0
        %v3425 = vsel %vm1227, %v928, 0
        %v3428 = vsel %vm1227, %v929, 0
        %v3431 = vsel %vm1227, %v930, 0
        %v3434 = vsel %vm1227, %v931, 0
        %v3437 = vsel %vm1227, %v932, 0
        %v3440 = vsel %vm1227, %v933, 0
        %v3443 = vsel %vm1227, %v934, 0
        %v3446 = vsel %vm1227, %v935, 0
        %v3449 = vsel %vm1227, %v936, 0
        %v3452 = vsel %vm1227, %v937, 0
        %v3455 = vsel %vm1227, %v938, 0
        %v3458 = vsel %vm1227, %v939, 0
        %v3461 = vsel %vm1227, %v940, 0
        %v3464 = vsel %vm1227, %v941, 0
        %v3467 = vsel %vm1227, %v942, 0
        %v3470 = vsel %vm1227, %v943, 0
        %v3473 = vsel %vm1227, %v944, 0
        %v3476 = vsel %vm1227, %v945, 0
        %v3479 = vsel %vm1227, %v946, 0
        %v3482 = vsel %vm1227, %v947, 0
        %v3485 = vsel %vm1227, %v948, 0
        %v3488 = vsel %vm1227, %v949, 0
        %v3491 = vsel %vm1227, %v950, 0
        %v3494 = vsel %vm1227, %v951, 0
        %v3497 = vsel %vm1227, %v952, 0
        %v3500 = vsel %vm1227, %v953, 0
        %v3503 = vsel %vm1227, %v954, 0
        %v3506 = vsel %vm1227, %v955, 0
        %v3509 = vsel %vm1227, %v956, 0
        %v3512 = vsel %vm1227, %v957, 0
        %v3515 = vsel %vm1227, %v958, 0
        %v3518 = vsel %vm1227, %v959, 0
        %v3521 = vsel %vm1227, %v960, 0
        %v3524 = vsel %vm1227, %v961, 0
        %v3527 = vsel %vm1227, %v962, 0
        %v3530 = vsel %vm1227, %v963, 0
        %v3533 = vsel %vm1227, %v964, 0
        %v3536 = vsel %vm1227, %v965, 0
        %v3539 = vsel %vm1227, %v966, 0
        %v3542 = vsel %vm1227, %v967, 0
        %v3545 = vsel %vm1227, %v968, 0
        %v3548 = vsel %vm1227, %v969, 0
        %v3551 = vsel %vm1227, %v970, 0
        %v3554 = vsel %vm1227, %v971, 0
        %v3557 = vsel %vm1227, %v972, 0
        %v3560 = vsel %vm1227, %v973, 0
        %v3563 = vsel %vm1227, %v974, 0
        %v3566 = vsel %vm1227, %v975, 0
        %v3569 = vsel %vm1227, %v976, 0
        %v3572 = vsel %vm1227, %v977, 0
        %v3575 = vsel %vm1227, %v978, 0
        %v3578 = vsel %vm1227, %v979, 0
        %v3581 = vsel %vm1227, %v980, 0
        %v3584 = vsel %vm1227, %v981, 0
        %v3587 = vsel %vm1227, %v982, 0
        %v3590 = vsel %vm1227, %v983, 0
        %v3593 = vsel %vm1227, %v984, 0
        %v3596 = vsel %vm1227, %v985, 0
        %v3599 = vsel %vm1227, %v986, 0
        %v3602 = vsel %vm1227, %v987, 0
        %v3605 = vsel %vm1227, %v988, 0
        %v3608 = vsel %vm1227, %v989, 0
        %v3611 = vsel %vm1227, %v990, 0
        %v3614 = vsel %vm1227, %v991, 0
        %v3617 = vsel %vm1227, %v992, 0
        %v3620 = vsel %vm1227, %v993, 0
        %v3623 = vsel %vm1227, %v994, 0
        %v3626 = vsel %vm1227, %v995, 0
        %v3629 = vsel %vm1227, %v996, 0
        %v3632 = vsel %vm1227, %v997, 0
        %v3635 = vsel %vm1227, %v998, 0
        %v3638 = vsel %vm1227, %v999, 0
        %v3641 = vsel %vm1227, %v1000, 0
        %v3644 = vsel %vm1227, %v1001, 0
        %v3647 = vsel %vm1227, %v1002, 0
        %v3650 = vsel %vm1227, %v1003, 0
        %v3653 = vsel %vm1227, %v1004, 0
        %v3656 = vsel %vm1227, %v1005, 0
        %v3659 = vsel %vm1227, %v1006, 0
        %v3662 = vsel %vm1227, %v1007, 0
        %v3665 = vsel %vm1227, %v1008, 0
        %v3668 = vsel %vm1227, %v1009, 0
        %v3671 = vsel %vm1227, %v1010, 0
        %v3674 = vsel %vm1227, %v1011, 0
        %v3677 = vsel %vm1227, %v1012, 0
        %v3680 = vsel %vm1227, %v1013, 0
        %v3683 = vsel %vm1227, %v1014, 0
        %v3686 = vsel %vm1227, %v1015, 0
        %v3689 = vsel %vm1227, %v1016, 0
        %v3692 = vsel %vm1227, %v1017, 0
        %v3695 = vsel %vm1227, %v1018, 0
        %v3698 = vsel %vm1227, %v1019, 0
        %v3701 = vsel %vm1227, %v1020, 0
        %v3704 = vsel %vm1227, %v1021, 0
        %v3707 = vsel %vm1227, %v1022, 0
        %v3710 = vsel %vm1227, %v1023, 0
        %v3713 = vsel %vm1227, %v1024, 0
        %v3716 = vsel %vm1227, %v1025, 0
        %v3719 = vsel %vm1227, %v1026, 0
        %v3722 = vsel %vm1227, %v1027, 0
        %v3725 = vsel %vm1227, %v1028, 0
        %v3728 = vsel %vm1227, %v1029, 0
        %v3731 = vsel %vm1227, %v1030, 0
        %v3734 = vsel %vm1227, %v1031, 0
        %v3737 = vsel %vm1227, %v1032, 0
        %v3740 = vsel %vm1227, %v1033, 0
        %v3743 = vsel %vm1227, %v1034, 0
        %v3746 = vsel %vm1227, %v1035, 0
        %v3749 = vsel %vm1227, %v1036, 0
        %v3752 = vsel %vm1227, %v1037, 0
        %v3755 = vsel %vm1227, %v1038, 0
        %v3758 = vsel %vm1227, %v1039, 0
        %v3761 = vsel %vm1227, %v1040, 0
        %v3764 = vsel %vm1227, %v1041, 0
        %v3767 = vsel %vm1227, %v1042, 0
        %v3770 = vsel %vm1227, %v1043, 0
        %v3773 = vsel %vm1227, %v1044, 0
        %v3776 = vsel %vm1227, %v1045, 0
        %v3779 = vsel %vm1227, %v1046, 0
        %v3782 = vsel %vm1227, %v1047, 0
        %v3785 = vsel %vm1227, %v1048, 0
        %v3788 = vsel %vm1227, %v1049, 0
        %v3791 = vsel %vm1227, %v1050, 0
        %v3794 = vsel %vm1227, %v1051, 0
        %v3797 = vsel %vm1227, %v1052, 0
        %v3800 = vsel %vm1227, %v1053, 0
        %v3803 = vsel %vm1227, %v1054, 0
        %v3806 = vsel %vm1227, %v1055, 0
        %v3809 = vsel %vm1227, %v1056, 0
        %v3812 = vsel %vm1227, %v1057, 0
        %v3815 = vsel %vm1227, %v1058, 0
        %v3818 = vsel %vm1227, %v1059, 0
        %v3821 = vsel %vm1227, %v1060, 0
        %v3824 = vsel %vm1227, %v1061, 0
        %v3827 = vsel %vm1227, %v1062, 0
        %v3830 = vsel %vm1227, %v1063, 0
        %v3833 = vsel %vm1227, %v1064, 0
        %v3836 = vsel %vm1227, %v1065, 0
        %v3839 = vsel %vm1227, %v1066, 0
        %v3842 = vsel %vm1227, %v1067, 0
        %v3845 = vsel %vm1227, %v1068, 0
        %v3848 = vsel %vm1227, %v1069, 0
        %v3851 = vsel %vm1227, %v1070, 0
        %v3854 = vsel %vm1227, %v1071, 0
        %v3857 = vsel %vm1227, %v1072, 0
        %v3860 = vsel %vm1227, %v1073, 0
        %v3863 = vsel %vm1227, %v1074, 0
        %v3866 = vsel %vm1227, %v1075, 0
        %v3869 = vsel %vm1227, %v1076, 0
        %v3872 = vsel %vm1227, %v1077, 0
        %v3875 = vsel %vm1227, %v1078, 0
        %v3878 = vsel %vm1227, %v1079, 0
        %v3881 = vsel %vm1227, %v1080, 0
        %v3884 = vsel %vm1227, %v1081, 0
        %v3887 = vsel %vm1227, %v1082, 0
        %v3890 = vsel %vm1227, %v1083, 0
        %v3893 = vsel %vm1227, %v1084, 0
        %v3896 = vsel %vm1227, %v1085, 0
        %v3899 = vsel %vm1227, %v1086, 0
        %v3902 = vsel %vm1227, %v1087, 0
        %v3905 = vsel %vm1227, %v1088, 0
        %v3908 = vsel %vm1227, %v1089, 0
        %v3911 = vsel %vm1227, %v1090, 0
        %v3914 = vsel %vm1227, %v1091, 0
        %v3917 = vsel %vm1227, %v1092, 0
        %v3920 = vsel %vm1227, %v1093, 0
        %v3923 = vsel %vm1227, %v1094, 0
        %v3926 = vsel %vm1227, %v1095, 0
        %v3929 = vsel %vm1227, %v1096, 0
        %v3932 = vsel %vm1227, %v1097, 0
        %v3935 = vsel %vm1227, %v1098, 0
        %v3938 = vsel %vm1227, %v1099, 0
        %v3941 = vsel %vm1227, %v1100, 0
        %v3944 = vsel %vm1227, %v1101, 0
        %v3947 = vsel %vm1227, %v1102, 0
        %v3950 = vsel %vm1227, %v1103, 0
        %v3953 = vsel %vm1227, %v1104, 0
        %v3956 = vsel %vm1227, %v1105, 0
        %v3959 = vsel %vm1227, %v1106, 0
        %v3962 = vsel %vm1227, %v1107, 0
        %v3965 = vsel %vm1227, %v1108, 0
        %v3968 = vsel %vm1227, %v1109, 0
        %v3971 = vsel %vm1227, %v1110, 0
        %v3974 = vsel %vm1227, %v1111, 0
        %v3977 = vsel %vm1227, %v1112, 0
        %v3980 = vsel %vm1227, %v1113, 0
        %v3983 = vsel %vm1227, %v1114, 0
        %v3986 = vsel %vm1227, %v1115, 0
        %v3989 = vsel %vm1227, %v1116, 0
        %v3992 = vsel %vm1227, %v1117, 0
        %v3995 = vsel %vm1227, %v1118, 0
        %v3998 = vsel %vm1227, %v1119, 0
        %v4001 = vsel %vm1227, %v1120, 0
        %v4004 = vsel %vm1227, %v1121, 0
        %v4007 = vsel %vm1227, %v1122, 0
        %v4010 = vsel %vm1227, %v1123, 0
        %v4013 = vsel %vm1227, %v1124, 0
        %v4016 = vsel %vm1227, %v1125, 0
        %v4019 = vsel %vm1227, %v1126, 0
        %v4022 = vsel %vm1227, %v1127, 0
        %v4025 = vsel %vm1227, %v1128, 0
        %v4028 = vsel %vm1227, %v1129, 0
        %v4031 = vsel %vm1227, %v1130, 0
        %v4034 = vsel %vm1227, %v1131, 0
        %v4037 = vsel %vm1227, %v1132, 0
        %v4040 = vsel %vm1227, %v1133, 0
        %v4043 = vsel %vm1227, %v1134, 0
        %v4046 = vsel %vm1227, %v1135, 0
        %v4049 = vsel %vm1227, %v1136, 0
        %v4052 = vsel %vm1227, %v1137, 0
        %v4055 = vsel %vm1227, %v1138, 0
        %v4058 = vsel %vm1227, %v1139, 0
        %v4061 = vsel %vm1227, %v1140, 0
        %v4064 = vsel %vm1227, %v1141, 0
        %v4067 = vsel %vm1227, %v1142, 0
        %v4070 = vsel %vm1227, %v1143, 0
        %v4073 = vsel %vm1227, %v1144, 0
        %v4076 = vsel %vm1227, %v1145, 0
        %v4079 = vsel %vm1227, %v1146, 0
        %v4082 = vsel %vm1227, %v1147, 0
        %v4085 = vsel %vm1227, %v1148, 0
        %v4088 = vsel %vm1227, %v1149, 0
        %v4091 = vsel %vm1227, %v1150, 0
        %v4094 = vsel %vm1227, %v1151, 0
        %v4097 = vsel %vm1227, %v1152, 0
        %v4100 = vsel %vm1227, %v1153, 0
        %v4103 = vsel %vm1227, %v1154, 0
        %v4106 = vsel %vm1227, %v1155, 0
        %v4109 = vsel %vm1227, %v1156, 0
        %v4112 = vsel %vm1227, %v1157, 0
        %v4115 = vsel %vm1227, %v1158, 0
        %v4118 = vsel %vm1227, %v1159, 0
        %v4121 = vsel %vm1227, %v1160, 0
        %v4124 = vsel %vm1227, %v1161, 0
        %v4127 = vsel %vm1227, %v1162, 0
        %v4130 = vsel %vm1227, %v1163, 0
        %v4133 = vsel %vm1227, %v1164, 0
        %v4136 = vsel %vm1227, %v1165, 0
        %v4139 = vsel %vm1227, %v1166, 0
        %v4142 = vsel %vm1227, %v1167, 0
        %v4145 = vsel %vm1227, %v1168, 0
        %v4148 = vsel %vm1227, %v1169, 0
        %v4151 = vsel %vm1227, %v1170, 0
        %v4154 = vsel %vm1227, %v1171, 0
        %v4157 = vsel %vm1227, %v1172, 0
        %v4160 = vsel %vm1227, %v1173, 0
        %v4163 = vsel %vm1227, %v1174, 0
        %v4166 = vsel %vm1227, %v1175, 0
        %v4169 = vsel %vm1227, %v1176, 0
        %v4172 = vsel %vm1227, %v1177, 0
        %v4175 = vsel %vm1227, %v1178, 0
        %v4178 = vsel %vm1227, %v1179, 0
        %v4181 = vsel %vm1227, %v1180, 0
        %v4184 = vsel %vm1227, %v1181, 0
        %v4187 = vsel %vm1227, %v1182, 0
        %v4190 = vsel %vm1227, %v1183, 0
        %v4193 = vsel %vm1227, %v1184, 0
        %v4196 = vsel %vm1227, %v1185, 0
        %v4199 = vsel %vm1227, %v1186, 0
        %v4202 = vsel %vm1227, %v1187, 0
        %v4205 = vsel %vm1227, %v1188, 0
        %v4208 = vsel %vm1227, %v1189, 0
        %v4211 = vsel %vm1227, %v1190, 0
        %v4214 = vsel %vm1227, %v1191, 0
        %v4217 = vsel %vm1227, %v1192, 0
        %v4220 = vsel %vm1227, %v1193, 0
        %v4223 = vsel %vm1227, %v1194, 0
        %v4226 = vsel %vm1227, %v1195, 0
        %v4229 = vsel %vm1227, %v1196, 0
        %v4232 = vsel %vm1227, %v1197, 0
        %v4235 = vsel %vm1227, %v1198, 0
        %v4238 = vsel %vm1227, %v1199, 0
        %v4241 = vsel %vm1227, %v1200, 0
        %v4244 = vsel %vm1227, %v1201, 0
        %v4247 = vsel %vm1227, %v1202, 0
        %v4250 = vsel %vm1227, %v1203, 0
        %v4253 = vsel %vm1227, %v1204, 0
        %v4256 = vsel %vm1227, %v1205, 0
        %v4259 = vsel %vm1227, %v1206, 0
        %v4262 = vsel %vm1227, %v1207, 0
        %v4265 = vsel %vm1227, %v1208, 0
        %v4268 = vsel %vm1227, %v1209, 0
        %v4271 = vsel %vm1227, %v1210, 0
        %v4274 = vsel %vm1227, %v1211, 0
        %v4277 = vsel %vm1227, %v1212, 0
        %v4280 = vsel %vm1227, %v1213, 0
        %v4283 = vsel %vm1227, %v1214, 0
        %v4286 = vsel %vm1227, %v1215, 0
        %v4289 = vsel %vm1227, %v1216, 0
        %v4292 = vsel %vm1227, %v1217, 0
        %v4295 = vsel %vm1227, %v1218, 0
        %v4298 = vsel %vm1227, %v1219, 0
        %v4301 = vsel %vm1227, %v1220, 0
        %4303 = vmatprep.subr.mxu0 0.0
        %4304 = vmatpush1.xpose.msra.mxu0 %v1277
        %4305 = vmatprep.subr.mxu0 0.0
        %4306 = vmatpush1.xpose.msra.mxu0 %v1274
        %4307 = vmatprep.subr.mxu0 0.0
        %4308 = vmatpush1.xpose.msra.mxu0 %v1271
        %4309 = vmatprep.subr.mxu0 0.0
        %4310 = vmatpush1.xpose.msra.mxu0 %v1268
        %4311 = vmatprep.subr.mxu0 0.0
        %4312 = vmatpush1.xpose.msra.mxu0 %v1265
        %4313 = vmatprep.subr.mxu0 0.0
        %4314 = vmatpush1.xpose.msra.mxu0 %v1262
        %4315 = vmatprep.subr.mxu0 0.0
        %4316 = vmatpush1.xpose.msra.mxu0 %v1259
        %4317 = vmatprep.subr.mxu0 0.0
        %4318 = vmatpush1.xpose.msra.mxu0 %v1256
        %4319 = vmatprep.subr.mxu0 0.0
        %4320 = vmatpush1.xpose.msra.mxu0 %v1253
        %4321 = vmatprep.subr.mxu0 0.0
        %4322 = vmatpush1.xpose.msra.mxu0 %v1250
        %4323 = vmatprep.subr.mxu0 0.0
        %4324 = vmatpush1.xpose.msra.mxu0 %v1247
        %4325 = vmatprep.subr.mxu0 0.0
        %4326 = vmatpush1.xpose.msra.mxu0 %v1244
        %4327 = vmatprep.subr.mxu0 0.0
        %4328 = vmatpush1.xpose.msra.mxu0 %v1241
        %4329 = vmatprep.subr.mxu0 0.0
        %4330 = vmatpush1.xpose.msra.mxu0 %v1238
        %4331 = vmatprep.subr.mxu0 0.0
        %4332 = vmatpush1.xpose.msra.mxu0 %v1235
        %4333 = vmatprep.subr.mxu0 0.0
        %4334 = vmatpush1.xpose.msra.mxu0 %v1232
        %4335 = vmatprep.subr.mxu0 0.0
        %4336 = vmatpush2.xpose.msra.mxu0 %v1325
        %4337 = vmatprep.subr.mxu0 0.0
        %4338 = vmatpush2.xpose.msra.mxu0 %v1322
        %4339 = vmatprep.subr.mxu0 0.0
        %4340 = vmatpush2.xpose.msra.mxu0 %v1319
        %4341 = vmatprep.subr.mxu0 0.0
        %4342 = vmatpush2.xpose.msra.mxu0 %v1316
        %4343 = vmatprep.subr.mxu0 0.0
        %4344 = vmatpush2.xpose.msra.mxu0 %v1313
        %4345 = vmatprep.subr.mxu0 0.0
        %4346 = vmatpush2.xpose.msra.mxu0 %v1310
        %4347 = vmatprep.subr.mxu0 0.0
        %4348 = vmatpush2.xpose.msra.mxu0 %v1307
        %4349 = vmatprep.subr.mxu0 0.0
        %4350 = vmatpush2.xpose.msra.mxu0 %v1304
        %4351 = vmatprep.subr.mxu0 0.0
        %4352 = vmatpush2.xpose.msra.mxu0 %v1301
        %4353 = vmatprep.subr.mxu0 0.0
        %4354 = vmatpush2.xpose.msra.mxu0 %v1298
        %4355 = vmatprep.subr.mxu0 0.0
        %4356 = vmatpush2.xpose.msra.mxu0 %v1295
        %4357 = vmatprep.subr.mxu0 0.0
        %4358 = vmatpush2.xpose.msra.mxu0 %v1292
        %4359 = vmatprep.subr.mxu0 0.0
        %4360 = vmatpush2.xpose.msra.mxu0 %v1289
        %4361 = vmatprep.subr.mxu0 0.0
        %4362 = vmatpush2.xpose.msra.mxu0 %v1286
        %4363 = vmatprep.subr.mxu0 0.0
        %4364 = vmatpush2.xpose.msra.mxu0 %v1283
        %4365 = vmatprep.subr.mxu0 0.0
        %4366 = vmatpush2.xpose.msra.mxu0 %v1280
        %4367 = vmatprep.mubr.f32.mxu0 0.0
        %4368 = vmatmul.mubr.f32.gmra.mxu0 %v1229
        %v4369 = vpop.f32.mrf.mxu0
        %v4370 = vadd.f32 %v1225, %v4369
        %v4371 = vpop.f32.mrf.mxu0
        %v4372 = vadd.f32 %v1225, %v4371
        %4373 = vdwg.mxu0
        %4374 = vmatprep.subr.mxu0 0.0
        %4375 = vmatpush1.xpose.msra.mxu0 %v1373
        %4376 = vmatprep.subr.mxu0 0.0
        %4377 = vmatpush1.xpose.msra.mxu0 %v1370
        %4378 = vmatprep.subr.mxu0 0.0
        %4379 = vmatpush1.xpose.msra.mxu0 %v1367
        %4380 = vmatprep.subr.mxu0 0.0
        %4381 = vmatpush1.xpose.msra.mxu0 %v1364
        %4382 = vmatprep.subr.mxu0 0.0
        %4383 = vmatpush1.xpose.msra.mxu0 %v1361
        %4384 = vmatprep.subr.mxu0 0.0
        %4385 = vmatpush1.xpose.msra.mxu0 %v1358
        %4386 = vmatprep.subr.mxu0 0.0
        %4387 = vmatpush1.xpose.msra.mxu0 %v1355
        %4388 = vmatprep.subr.mxu0 0.0
        %4389 = vmatpush1.xpose.msra.mxu0 %v1352
        %4390 = vmatprep.subr.mxu0 0.0
        %4391 = vmatpush1.xpose.msra.mxu0 %v1349
        %4392 = vmatprep.subr.mxu0 0.0
        %4393 = vmatpush1.xpose.msra.mxu0 %v1346
        %4394 = vmatprep.subr.mxu0 0.0
        %4395 = vmatpush1.xpose.msra.mxu0 %v1343
        %4396 = vmatprep.subr.mxu0 0.0
        %4397 = vmatpush1.xpose.msra.mxu0 %v1340
        %4398 = vmatprep.subr.mxu0 0.0
        %4399 = vmatpush1.xpose.msra.mxu0 %v1337
        %4400 = vmatprep.subr.mxu0 0.0
        %4401 = vmatpush1.xpose.msra.mxu0 %v1334
        %4402 = vmatprep.subr.mxu0 0.0
        %4403 = vmatpush1.xpose.msra.mxu0 %v1331
        %4404 = vmatprep.subr.mxu0 0.0
        %4405 = vmatpush1.xpose.msra.mxu0 %v1328
        %4406 = vmatprep.subr.mxu0 0.0
        %4407 = vmatpush2.xpose.msra.mxu0 %v1421
        %4408 = vmatprep.subr.mxu0 0.0
        %4409 = vmatpush2.xpose.msra.mxu0 %v1418
        %4410 = vmatprep.subr.mxu0 0.0
        %4411 = vmatpush2.xpose.msra.mxu0 %v1415
        %4412 = vmatprep.subr.mxu0 0.0
        %4413 = vmatpush2.xpose.msra.mxu0 %v1412
        %4414 = vmatprep.subr.mxu0 0.0
        %4415 = vmatpush2.xpose.msra.mxu0 %v1409
        %4416 = vmatprep.subr.mxu0 0.0
        %4417 = vmatpush2.xpose.msra.mxu0 %v1406
        %4418 = vmatprep.subr.mxu0 0.0
        %4419 = vmatpush2.xpose.msra.mxu0 %v1403
        %4420 = vmatprep.subr.mxu0 0.0
        %4421 = vmatpush2.xpose.msra.mxu0 %v1400
        %4422 = vmatprep.subr.mxu0 0.0
        %4423 = vmatpush2.xpose.msra.mxu0 %v1397
        %4424 = vmatprep.subr.mxu0 0.0
        %4425 = vmatpush2.xpose.msra.mxu0 %v1394
        %4426 = vmatprep.subr.mxu0 0.0
        %4427 = vmatpush2.xpose.msra.mxu0 %v1391
        %4428 = vmatprep.subr.mxu0 0.0
        %4429 = vmatpush2.xpose.msra.mxu0 %v1388
        %4430 = vmatprep.subr.mxu0 0.0
        %4431 = vmatpush2.xpose.msra.mxu0 %v1385
        %4432 = vmatprep.subr.mxu0 0.0
        %4433 = vmatpush2.xpose.msra.mxu0 %v1382
        %4434 = vmatprep.subr.mxu0 0.0
        %4435 = vmatpush2.xpose.msra.mxu0 %v1379
        %4436 = vmatprep.subr.mxu0 0.0
        %4437 = vmatpush2.xpose.msra.mxu0 %v1376
        %4438 = vmatprep.mubr.f32.mxu0 0.0
        %4439 = vmatmul.mubr.f32.gmra.mxu0 %v1229
        %v4440 = vpop.f32.mrf.mxu0
        %v4441 = vadd.f32 %v1225, %v4440
        %v4442 = vpop.f32.mrf.mxu0
        %v4443 = vadd.f32 %v1225, %v4442
        %4444 = vdwg.mxu0
        %4445 = vmatprep.subr.mxu0 0.0
        %4446 = vmatpush1.xpose.msra.mxu0 %v1469
        %4447 = vmatprep.subr.mxu0 0.0
        %4448 = vmatpush1.xpose.msra.mxu0 %v1466
        %4449 = vmatprep.subr.mxu0 0.0
        %4450 = vmatpush1.xpose.msra.mxu0 %v1463
        %4451 = vmatprep.subr.mxu0 0.0
        %4452 = vmatpush1.xpose.msra.mxu0 %v1460
        %4453 = vmatprep.subr.mxu0 0.0
        %4454 = vmatpush1.xpose.msra.mxu0 %v1457
        %4455 = vmatprep.subr.mxu0 0.0
        %4456 = vmatpush1.xpose.msra.mxu0 %v1454
        %4457 = vmatprep.subr.mxu0 0.0
        %4458 = vmatpush1.xpose.msra.mxu0 %v1451
        %4459 = vmatprep.subr.mxu0 0.0
        %4460 = vmatpush1.xpose.msra.mxu0 %v1448
        %4461 = vmatprep.subr.mxu0 0.0
        %4462 = vmatpush1.xpose.msra.mxu0 %v1445
        %4463 = vmatprep.subr.mxu0 0.0
        %4464 = vmatpush1.xpose.msra.mxu0 %v1442
        %4465 = vmatprep.subr.mxu0 0.0
        %4466 = vmatpush1.xpose.msra.mxu0 %v1439
        %4467 = vmatprep.subr.mxu0 0.0
        %4468 = vmatpush1.xpose.msra.mxu0 %v1436
        %4469 = vmatprep.subr.mxu0 0.0
        %4470 = vmatpush1.xpose.msra.mxu0 %v1433
        %4471 = vmatprep.subr.mxu0 0.0
        %4472 = vmatpush1.xpose.msra.mxu0 %v1430
        %4473 = vmatprep.subr.mxu0 0.0
        %4474 = vmatpush1.xpose.msra.mxu0 %v1427
        %4475 = vmatprep.subr.mxu0 0.0
        %4476 = vmatpush1.xpose.msra.mxu0 %v1424
        %4477 = vmatprep.subr.mxu0 0.0
        %4478 = vmatpush2.xpose.msra.mxu0 %v1517
        %4479 = vmatprep.subr.mxu0 0.0
        %4480 = vmatpush2.xpose.msra.mxu0 %v1514
        %4481 = vmatprep.subr.mxu0 0.0
        %4482 = vmatpush2.xpose.msra.mxu0 %v1511
        %4483 = vmatprep.subr.mxu0 0.0
        %4484 = vmatpush2.xpose.msra.mxu0 %v1508
        %4485 = vmatprep.subr.mxu0 0.0
        %4486 = vmatpush2.xpose.msra.mxu0 %v1505
        %4487 = vmatprep.subr.mxu0 0.0
        %4488 = vmatpush2.xpose.msra.mxu0 %v1502
        %4489 = vmatprep.subr.mxu0 0.0
        %4490 = vmatpush2.xpose.msra.mxu0 %v1499
        %4491 = vmatprep.subr.mxu0 0.0
        %4492 = vmatpush2.xpose.msra.mxu0 %v1496
        %4493 = vmatprep.subr.mxu0 0.0
        %4494 = vmatpush2.xpose.msra.mxu0 %v1493
        %4495 = vmatprep.subr.mxu0 0.0
        %4496 = vmatpush2.xpose.msra.mxu0 %v1490
        %4497 = vmatprep.subr.mxu0 0.0
        %4498 = vmatpush2.xpose.msra.mxu0 %v1487
        %4499 = vmatprep.subr.mxu0 0.0
        %4500 = vmatpush2.xpose.msra.mxu0 %v1484
        %4501 = vmatprep.subr.mxu0 0.0
        %4502 = vmatpush2.xpose.msra.mxu0 %v1481
        %4503 = vmatprep.subr.mxu0 0.0
        %4504 = vmatpush2.xpose.msra.mxu0 %v1478
        %4505 = vmatprep.subr.mxu0 0.0
        %4506 = vmatpush2.xpose.msra.mxu0 %v1475
        %4507 = vmatprep.subr.mxu0 0.0
        %4508 = vmatpush2.xpose.msra.mxu0 %v1472
        %4509 = vmatprep.mubr.f32.mxu0 0.0
        %4510 = vmatmul.mubr.f32.gmra.mxu0 %v1229
        %v4511 = vpop.f32.mrf.mxu0
        %v4512 = vadd.f32 %v1225, %v4511
        %v4513 = vpop.f32.mrf.mxu0
        %v4514 = vadd.f32 %v1225, %v4513
        %4515 = vdwg.mxu0
        %4516 = vmatprep.subr.mxu0 0.0
        %4517 = vmatpush1.xpose.msra.mxu0 %v1565
        %4518 = vmatprep.subr.mxu0 0.0
        %4519 = vmatpush1.xpose.msra.mxu0 %v1562
        %4520 = vmatprep.subr.mxu0 0.0
        %4521 = vmatpush1.xpose.msra.mxu0 %v1559
        %4522 = vmatprep.subr.mxu0 0.0
        %4523 = vmatpush1.xpose.msra.mxu0 %v1556
        %4524 = vmatprep.subr.mxu0 0.0
        %4525 = vmatpush1.xpose.msra.mxu0 %v1553
        %4526 = vmatprep.subr.mxu0 0.0
        %4527 = vmatpush1.xpose.msra.mxu0 %v1550
        %4528 = vmatprep.subr.mxu0 0.0
        %4529 = vmatpush1.xpose.msra.mxu0 %v1547
        %4530 = vmatprep.subr.mxu0 0.0
        %4531 = vmatpush1.xpose.msra.mxu0 %v1544
        %4532 = vmatprep.subr.mxu0 0.0
        %4533 = vmatpush1.xpose.msra.mxu0 %v1541
        %4534 = vmatprep.subr.mxu0 0.0
        %4535 = vmatpush1.xpose.msra.mxu0 %v1538
        %4536 = vmatprep.subr.mxu0 0.0
        %4537 = vmatpush1.xpose.msra.mxu0 %v1535
        %4538 = vmatprep.subr.mxu0 0.0
        %4539 = vmatpush1.xpose.msra.mxu0 %v1532
        %4540 = vmatprep.subr.mxu0 0.0
        %4541 = vmatpush1.xpose.msra.mxu0 %v1529
        %4542 = vmatprep.subr.mxu0 0.0
        %4543 = vmatpush1.xpose.msra.mxu0 %v1526
        %4544 = vmatprep.subr.mxu0 0.0
        %4545 = vmatpush1.xpose.msra.mxu0 %v1523
        %4546 = vmatprep.subr.mxu0 0.0
        %4547 = vmatpush1.xpose.msra.mxu0 %v1520
        %4548 = vmatprep.subr.mxu0 0.0
        %4549 = vmatpush2.xpose.msra.mxu0 %v1613
        %4550 = vmatprep.subr.mxu0 0.0
        %4551 = vmatpush2.xpose.msra.mxu0 %v1610
        %4552 = vmatprep.subr.mxu0 0.0
        %4553 = vmatpush2.xpose.msra.mxu0 %v1607
        %4554 = vmatprep.subr.mxu0 0.0
        %4555 = vmatpush2.xpose.msra.mxu0 %v1604
        %4556 = vmatprep.subr.mxu0 0.0
        %4557 = vmatpush2.xpose.msra.mxu0 %v1601
        %4558 = vmatprep.subr.mxu0 0.0
        %4559 = vmatpush2.xpose.msra.mxu0 %v1598
        %4560 = vmatprep.subr.mxu0 0.0
        %4561 = vmatpush2.xpose.msra.mxu0 %v1595
        %4562 = vmatprep.subr.mxu0 0.0
        %4563 = vmatpush2.xpose.msra.mxu0 %v1592
        %4564 = vmatprep.subr.mxu0 0.0
        %4565 = vmatpush2.xpose.msra.mxu0 %v1589
        %4566 = vmatprep.subr.mxu0 0.0
        %4567 = vmatpush2.xpose.msra.mxu0 %v1586
        %4568 = vmatprep.subr.mxu0 0.0
        %4569 = vmatpush2.xpose.msra.mxu0 %v1583
        %4570 = vmatprep.subr.mxu0 0.0
        %4571 = vmatpush2.xpose.msra.mxu0 %v1580
        %4572 = vmatprep.subr.mxu0 0.0
        %4573 = vmatpush2.xpose.msra.mxu0 %v1577
        %4574 = vmatprep.subr.mxu0 0.0
        %4575 = vmatpush2.xpose.msra.mxu0 %v1574
        %4576 = vmatprep.subr.mxu0 0.0
        %4577 = vmatpush2.xpose.msra.mxu0 %v1571
        %4578 = vmatprep.subr.mxu0 0.0
        %4579 = vmatpush2.xpose.msra.mxu0 %v1568
        %4580 = vmatprep.mubr.f32.mxu0 0.0
        %4581 = vmatmul.mubr.f32.gmra.mxu0 %v1229
        %v4582 = vpop.f32.mrf.mxu0
        %v4583 = vadd.f32 %v1225, %v4582
        %v4584 = vpop.f32.mrf.mxu0
        %v4585 = vadd.f32 %v1225, %v4584
        %4586 = vdwg.mxu0
        %4587 = vmatprep.subr.mxu0 0.0
        %4588 = vmatpush1.xpose.msra.mxu0 %v1661
        %4589 = vmatprep.subr.mxu0 0.0
        %4590 = vmatpush1.xpose.msra.mxu0 %v1658
        %4591 = vmatprep.subr.mxu0 0.0
        %4592 = vmatpush1.xpose.msra.mxu0 %v1655
        %4593 = vmatprep.subr.mxu0 0.0
        %4594 = vmatpush1.xpose.msra.mxu0 %v1652
        %4595 = vmatprep.subr.mxu0 0.0
        %4596 = vmatpush1.xpose.msra.mxu0 %v1649
        %4597 = vmatprep.subr.mxu0 0.0
        %4598 = vmatpush1.xpose.msra.mxu0 %v1646
        %4599 = vmatprep.subr.mxu0 0.0
        %4600 = vmatpush1.xpose.msra.mxu0 %v1643
        %4601 = vmatprep.subr.mxu0 0.0
        %4602 = vmatpush1.xpose.msra.mxu0 %v1640
        %4603 = vmatprep.subr.mxu0 0.0
        %4604 = vmatpush1.xpose.msra.mxu0 %v1637
        %4605 = vmatprep.subr.mxu0 0.0
        %4606 = vmatpush1.xpose.msra.mxu0 %v1634
        %4607 = vmatprep.subr.mxu0 0.0
        %4608 = vmatpush1.xpose.msra.mxu0 %v1631
        %4609 = vmatprep.subr.mxu0 0.0
        %4610 = vmatpush1.xpose.msra.mxu0 %v1628
        %4611 = vmatprep.subr.mxu0 0.0
        %4612 = vmatpush1.xpose.msra.mxu0 %v1625
        %4613 = vmatprep.subr.mxu0 0.0
        %4614 = vmatpush1.xpose.msra.mxu0 %v1622
        %4615 = vmatprep.subr.mxu0 0.0
        %4616 = vmatpush1.xpose.msra.mxu0 %v1619
        %4617 = vmatprep.subr.mxu0 0.0
        %4618 = vmatpush1.xpose.msra.mxu0 %v1616
        %4619 = vmatprep.subr.mxu0 0.0
        %4620 = vmatpush2.xpose.msra.mxu0 %v1709
        %4621 = vmatprep.subr.mxu0 0.0
        %4622 = vmatpush2.xpose.msra.mxu0 %v1706
        %4623 = vmatprep.subr.mxu0 0.0
        %4624 = vmatpush2.xpose.msra.mxu0 %v1703
        %4625 = vmatprep.subr.mxu0 0.0
        %4626 = vmatpush2.xpose.msra.mxu0 %v1700
        %4627 = vmatprep.subr.mxu0 0.0
        %4628 = vmatpush2.xpose.msra.mxu0 %v1697
        %4629 = vmatprep.subr.mxu0 0.0
        %4630 = vmatpush2.xpose.msra.mxu0 %v1694
        %4631 = vmatprep.subr.mxu0 0.0
        %4632 = vmatpush2.xpose.msra.mxu0 %v1691
        %4633 = vmatprep.subr.mxu0 0.0
        %4634 = vmatpush2.xpose.msra.mxu0 %v1688
        %4635 = vmatprep.subr.mxu0 0.0
        %4636 = vmatpush2.xpose.msra.mxu0 %v1685
        %4637 = vmatprep.subr.mxu0 0.0
        %4638 = vmatpush2.xpose.msra.mxu0 %v1682
        %4639 = vmatprep.subr.mxu0 0.0
        %4640 = vmatpush2.xpose.msra.mxu0 %v1679
        %4641 = vmatprep.subr.mxu0 0.0
        %4642 = vmatpush2.xpose.msra.mxu0 %v1676
        %4643 = vmatprep.subr.mxu0 0.0
        %4644 = vmatpush2.xpose.msra.mxu0 %v1673
        %4645 = vmatprep.subr.mxu0 0.0
        %4646 = vmatpush2.xpose.msra.mxu0 %v1670
        %4647 = vmatprep.subr.mxu0 0.0
        %4648 = vmatpush2.xpose.msra.mxu0 %v1667
        %4649 = vmatprep.subr.mxu0 0.0
        %4650 = vmatpush2.xpose.msra.mxu0 %v1664
        %4651 = vmatprep.mubr.f32.mxu0 0.0
        %4652 = vmatmul.mubr.f32.gmra.mxu0 %v1229
        %v4653 = vpop.f32.mrf.mxu0
        %v4654 = vadd.f32 %v1225, %v4653
        %v4655 = vpop.f32.mrf.mxu0
        %v4656 = vadd.f32 %v1225, %v4655
        %4657 = vdwg.mxu0
        %4658 = vmatprep.subr.mxu0 0.0
        %4659 = vmatpush1.xpose.msra.mxu0 %v1757
        %4660 = vmatprep.subr.mxu0 0.0
        %4661 = vmatpush1.xpose.msra.mxu0 %v1754
        %4662 = vmatprep.subr.mxu0 0.0
        %4663 = vmatpush1.xpose.msra.mxu0 %v1751
        %4664 = vmatprep.subr.mxu0 0.0
        %4665 = vmatpush1.xpose.msra.mxu0 %v1748
        %4666 = vmatprep.subr.mxu0 0.0
        %4667 = vmatpush1.xpose.msra.mxu0 %v1745
        %4668 = vmatprep.subr.mxu0 0.0
        %4669 = vmatpush1.xpose.msra.mxu0 %v1742
        %4670 = vmatprep.subr.mxu0 0.0
        %4671 = vmatpush1.xpose.msra.mxu0 %v1739
        %4672 = vmatprep.subr.mxu0 0.0
        %4673 = vmatpush1.xpose.msra.mxu0 %v1736
        %4674 = vmatprep.subr.mxu0 0.0
        %4675 = vmatpush1.xpose.msra.mxu0 %v1733
        %4676 = vmatprep.subr.mxu0 0.0
        %4677 = vmatpush1.xpose.msra.mxu0 %v1730
        %4678 = vmatprep.subr.mxu0 0.0
        %4679 = vmatpush1.xpose.msra.mxu0 %v1727
        %4680 = vmatprep.subr.mxu0 0.0
        %4681 = vmatpush1.xpose.msra.mxu0 %v1724
        %4682 = vmatprep.subr.mxu0 0.0
        %4683 = vmatpush1.xpose.msra.mxu0 %v1721
        %4684 = vmatprep.subr.mxu0 0.0
        %4685 = vmatpush1.xpose.msra.mxu0 %v1718
        %4686 = vmatprep.subr.mxu0 0.0
        %4687 = vmatpush1.xpose.msra.mxu0 %v1715
        %4688 = vmatprep.subr.mxu0 0.0
        %4689 = vmatpush1.xpose.msra.mxu0 %v1712
        %4690 = vmatprep.subr.mxu0 0.0
        %4691 = vmatpush2.xpose.msra.mxu0 %v1805
        %4692 = vmatprep.subr.mxu0 0.0
        %4693 = vmatpush2.xpose.msra.mxu0 %v1802
        %4694 = vmatprep.subr.mxu0 0.0
        %4695 = vmatpush2.xpose.msra.mxu0 %v1799
        %4696 = vmatprep.subr.mxu0 0.0
        %4697 = vmatpush2.xpose.msra.mxu0 %v1796
        %4698 = vmatprep.subr.mxu0 0.0
        %4699 = vmatpush2.xpose.msra.mxu0 %v1793
        %4700 = vmatprep.subr.mxu0 0.0
        %4701 = vmatpush2.xpose.msra.mxu0 %v1790
        %4702 = vmatprep.subr.mxu0 0.0
        %4703 = vmatpush2.xpose.msra.mxu0 %v1787
        %4704 = vmatprep.subr.mxu0 0.0
        %4705 = vmatpush2.xpose.msra.mxu0 %v1784
        %4706 = vmatprep.subr.mxu0 0.0
        %4707 = vmatpush2.xpose.msra.mxu0 %v1781
        %4708 = vmatprep.subr.mxu0 0.0
        %4709 = vmatpush2.xpose.msra.mxu0 %v1778
        %4710 = vmatprep.subr.mxu0 0.0
        %4711 = vmatpush2.xpose.msra.mxu0 %v1775
        %4712 = vmatprep.subr.mxu0 0.0
        %4713 = vmatpush2.xpose.msra.mxu0 %v1772
        %4714 = vmatprep.subr.mxu0 0.0
        %4715 = vmatpush2.xpose.msra.mxu0 %v1769
        %4716 = vmatprep.subr.mxu0 0.0
        %4717 = vmatpush2.xpose.msra.mxu0 %v1766
        %4718 = vmatprep.subr.mxu0 0.0
        %4719 = vmatpush2.xpose.msra.mxu0 %v1763
        %4720 = vmatprep.subr.mxu0 0.0
        %4721 = vmatpush2.xpose.msra.mxu0 %v1760
        %4722 = vmatprep.mubr.f32.mxu0 0.0
        %4723 = vmatmul.mubr.f32.gmra.mxu0 %v1229
        %v4724 = vpop.f32.mrf.mxu0
        %v4725 = vadd.f32 %v1225, %v4724
        %v4726 = vpop.f32.mrf.mxu0
        %v4727 = vadd.f32 %v1225, %v4726
        %4728 = vdwg.mxu0
        %4729 = vmatprep.subr.mxu0 0.0
        %4730 = vmatpush1.xpose.msra.mxu0 %v1853
        %4731 = vmatprep.subr.mxu0 0.0
        %4732 = vmatpush1.xpose.msra.mxu0 %v1850
        %4733 = vmatprep.subr.mxu0 0.0
        %4734 = vmatpush1.xpose.msra.mxu0 %v1847
        %4735 = vmatprep.subr.mxu0 0.0
        %4736 = vmatpush1.xpose.msra.mxu0 %v1844
        %4737 = vmatprep.subr.mxu0 0.0
        %4738 = vmatpush1.xpose.msra.mxu0 %v1841
        %4739 = vmatprep.subr.mxu0 0.0
        %4740 = vmatpush1.xpose.msra.mxu0 %v1838
        %4741 = vmatprep.subr.mxu0 0.0
        %4742 = vmatpush1.xpose.msra.mxu0 %v1835
        %4743 = vmatprep.subr.mxu0 0.0
        %4744 = vmatpush1.xpose.msra.mxu0 %v1832
        %4745 = vmatprep.subr.mxu0 0.0
        %4746 = vmatpush1.xpose.msra.mxu0 %v1829
        %4747 = vmatprep.subr.mxu0 0.0
        %4748 = vmatpush1.xpose.msra.mxu0 %v1826
        %4749 = vmatprep.subr.mxu0 0.0
        %4750 = vmatpush1.xpose.msra.mxu0 %v1823
        %4751 = vmatprep.subr.mxu0 0.0
        %4752 = vmatpush1.xpose.msra.mxu0 %v1820
        %4753 = vmatprep.subr.mxu0 0.0
        %4754 = vmatpush1.xpose.msra.mxu0 %v1817
        %4755 = vmatprep.subr.mxu0 0.0
        %4756 = vmatpush1.xpose.msra.mxu0 %v1814
        %4757 = vmatprep.subr.mxu0 0.0
        %4758 = vmatpush1.xpose.msra.mxu0 %v1811
        %4759 = vmatprep.subr.mxu0 0.0
        %4760 = vmatpush1.xpose.msra.mxu0 %v1808
        %4761 = vmatprep.subr.mxu0 0.0
        %4762 = vmatpush2.xpose.msra.mxu0 %v1901
        %4763 = vmatprep.subr.mxu0 0.0
        %4764 = vmatpush2.xpose.msra.mxu0 %v1898
        %4765 = vmatprep.subr.mxu0 0.0
        %4766 = vmatpush2.xpose.msra.mxu0 %v1895
        %4767 = vmatprep.subr.mxu0 0.0
        %4768 = vmatpush2.xpose.msra.mxu0 %v1892
        %4769 = vmatprep.subr.mxu0 0.0
        %4770 = vmatpush2.xpose.msra.mxu0 %v1889
        %4771 = vmatprep.subr.mxu0 0.0
        %4772 = vmatpush2.xpose.msra.mxu0 %v1886
        %4773 = vmatprep.subr.mxu0 0.0
        %4774 = vmatpush2.xpose.msra.mxu0 %v1883
        %4775 = vmatprep.subr.mxu0 0.0
        %4776 = vmatpush2.xpose.msra.mxu0 %v1880
        %4777 = vmatprep.subr.mxu0 0.0
        %4778 = vmatpush2.xpose.msra.mxu0 %v1877
        %4779 = vmatprep.subr.mxu0 0.0
        %4780 = vmatpush2.xpose.msra.mxu0 %v1874
        %4781 = vmatprep.subr.mxu0 0.0
        %4782 = vmatpush2.xpose.msra.mxu0 %v1871
        %4783 = vmatprep.subr.mxu0 0.0
        %4784 = vmatpush2.xpose.msra.mxu0 %v1868
        %4785 = vmatprep.subr.mxu0 0.0
        %4786 = vmatpush2.xpose.msra.mxu0 %v1865
        %4787 = vmatprep.subr.mxu0 0.0
        %4788 = vmatpush2.xpose.msra.mxu0 %v1862
        %4789 = vmatprep.subr.mxu0 0.0
        %4790 = vmatpush2.xpose.msra.mxu0 %v1859
        %4791 = vmatprep.subr.mxu0 0.0
        %4792 = vmatpush2.xpose.msra.mxu0 %v1856
        %4793 = vmatprep.mubr.f32.mxu0 0.0
        %4794 = vmatmul.mubr.f32.gmra.mxu0 %v1229
        %v4795 = vpop.f32.mrf.mxu0
        %v4796 = vadd.f32 %v1225, %v4795
        %v4797 = vpop.f32.mrf.mxu0
        %v4798 = vadd.f32 %v1225, %v4797
        %4799 = vdwg.mxu0
        %4800 = vmatprep.subr.mxu0 0.0
        %4801 = vmatpush1.xpose.msra.mxu0 %v1949
        %4802 = vmatprep.subr.mxu0 0.0
        %4803 = vmatpush1.xpose.msra.mxu0 %v1946
        %4804 = vmatprep.subr.mxu0 0.0
        %4805 = vmatpush1.xpose.msra.mxu0 %v1943
        %4806 = vmatprep.subr.mxu0 0.0
        %4807 = vmatpush1.xpose.msra.mxu0 %v1940
        %4808 = vmatprep.subr.mxu0 0.0
        %4809 = vmatpush1.xpose.msra.mxu0 %v1937
        %4810 = vmatprep.subr.mxu0 0.0
        %4811 = vmatpush1.xpose.msra.mxu0 %v1934
        %4812 = vmatprep.subr.mxu0 0.0
        %4813 = vmatpush1.xpose.msra.mxu0 %v1931
        %4814 = vmatprep.subr.mxu0 0.0
        %4815 = vmatpush1.xpose.msra.mxu0 %v1928
        %4816 = vmatprep.subr.mxu0 0.0
        %4817 = vmatpush1.xpose.msra.mxu0 %v1925
        %4818 = vmatprep.subr.mxu0 0.0
        %4819 = vmatpush1.xpose.msra.mxu0 %v1922
        %4820 = vmatprep.subr.mxu0 0.0
        %4821 = vmatpush1.xpose.msra.mxu0 %v1919
        %4822 = vmatprep.subr.mxu0 0.0
        %4823 = vmatpush1.xpose.msra.mxu0 %v1916
        %4824 = vmatprep.subr.mxu0 0.0
        %4825 = vmatpush1.xpose.msra.mxu0 %v1913
        %4826 = vmatprep.subr.mxu0 0.0
        %4827 = vmatpush1.xpose.msra.mxu0 %v1910
        %4828 = vmatprep.subr.mxu0 0.0
        %4829 = vmatpush1.xpose.msra.mxu0 %v1907
        %4830 = vmatprep.subr.mxu0 0.0
        %4831 = vmatpush1.xpose.msra.mxu0 %v1904
        %4832 = vmatprep.subr.mxu0 0.0
        %4833 = vmatpush2.xpose.msra.mxu0 %v1997
        %4834 = vmatprep.subr.mxu0 0.0
        %4835 = vmatpush2.xpose.msra.mxu0 %v1994
        %4836 = vmatprep.subr.mxu0 0.0
        %4837 = vmatpush2.xpose.msra.mxu0 %v1991
        %4838 = vmatprep.subr.mxu0 0.0
        %4839 = vmatpush2.xpose.msra.mxu0 %v1988
        %4840 = vmatprep.subr.mxu0 0.0
        %4841 = vmatpush2.xpose.msra.mxu0 %v1985
        %4842 = vmatprep.subr.mxu0 0.0
        %4843 = vmatpush2.xpose.msra.mxu0 %v1982
        %4844 = vmatprep.subr.mxu0 0.0
        %4845 = vmatpush2.xpose.msra.mxu0 %v1979
        %4846 = vmatprep.subr.mxu0 0.0
        %4847 = vmatpush2.xpose.msra.mxu0 %v1976
        %4848 = vmatprep.subr.mxu0 0.0
        %4849 = vmatpush2.xpose.msra.mxu0 %v1973
        %4850 = vmatprep.subr.mxu0 0.0
        %4851 = vmatpush2.xpose.msra.mxu0 %v1970
        %4852 = vmatprep.subr.mxu0 0.0
        %4853 = vmatpush2.xpose.msra.mxu0 %v1967
        %4854 = vmatprep.subr.mxu0 0.0
        %4855 = vmatpush2.xpose.msra.mxu0 %v1964
        %4856 = vmatprep.subr.mxu0 0.0
        %4857 = vmatpush2.xpose.msra.mxu0 %v1961
        %4858 = vmatprep.subr.mxu0 0.0
        %4859 = vmatpush2.xpose.msra.mxu0 %v1958
        %4860 = vmatprep.subr.mxu0 0.0
        %4861 = vmatpush2.xpose.msra.mxu0 %v1955
        %4862 = vmatprep.subr.mxu0 0.0
        %4863 = vmatpush2.xpose.msra.mxu0 %v1952
        %4864 = vmatprep.mubr.f32.mxu0 0.0
        %4865 = vmatmul.mubr.f32.gmra.mxu0 %v1229
        %v4866 = vpop.f32.mrf.mxu0
        %v4867 = vadd.f32 %v1225, %v4866
        %v4868 = vpop.f32.mrf.mxu0
        %v4869 = vadd.f32 %v1225, %v4868
        %4870 = vdwg.mxu0
        %4871 = vmatprep.subr.mxu0 0.0
        %4872 = vmatpush1.xpose.msra.mxu0 %v2045
        %4873 = vmatprep.subr.mxu0 0.0
        %4874 = vmatpush1.xpose.msra.mxu0 %v2042
        %4875 = vmatprep.subr.mxu0 0.0
        %4876 = vmatpush1.xpose.msra.mxu0 %v2039
        %4877 = vmatprep.subr.mxu0 0.0
        %4878 = vmatpush1.xpose.msra.mxu0 %v2036
        %4879 = vmatprep.subr.mxu0 0.0
        %4880 = vmatpush1.xpose.msra.mxu0 %v2033
        %4881 = vmatprep.subr.mxu0 0.0
        %4882 = vmatpush1.xpose.msra.mxu0 %v2030
        %4883 = vmatprep.subr.mxu0 0.0
        %4884 = vmatpush1.xpose.msra.mxu0 %v2027
        %4885 = vmatprep.subr.mxu0 0.0
        %4886 = vmatpush1.xpose.msra.mxu0 %v2024
        %4887 = vmatprep.subr.mxu0 0.0
        %4888 = vmatpush1.xpose.msra.mxu0 %v2021
        %4889 = vmatprep.subr.mxu0 0.0
        %4890 = vmatpush1.xpose.msra.mxu0 %v2018
        %4891 = vmatprep.subr.mxu0 0.0
        %4892 = vmatpush1.xpose.msra.mxu0 %v2015
        %4893 = vmatprep.subr.mxu0 0.0
        %4894 = vmatpush1.xpose.msra.mxu0 %v2012
        %4895 = vmatprep.subr.mxu0 0.0
        %4896 = vmatpush1.xpose.msra.mxu0 %v2009
        %4897 = vmatprep.subr.mxu0 0.0
        %4898 = vmatpush1.xpose.msra.mxu0 %v2006
        %4899 = vmatprep.subr.mxu0 0.0
        %4900 = vmatpush1.xpose.msra.mxu0 %v2003
        %4901 = vmatprep.subr.mxu0 0.0
        %4902 = vmatpush1.xpose.msra.mxu0 %v2000
        %4903 = vmatprep.subr.mxu0 0.0
        %4904 = vmatpush2.xpose.msra.mxu0 %v2093
        %4905 = vmatprep.subr.mxu0 0.0
        %4906 = vmatpush2.xpose.msra.mxu0 %v2090
        %4907 = vmatprep.subr.mxu0 0.0
        %4908 = vmatpush2.xpose.msra.mxu0 %v2087
        %4909 = vmatprep.subr.mxu0 0.0
        %4910 = vmatpush2.xpose.msra.mxu0 %v2084
        %4911 = vmatprep.subr.mxu0 0.0
        %4912 = vmatpush2.xpose.msra.mxu0 %v2081
        %4913 = vmatprep.subr.mxu0 0.0
        %4914 = vmatpush2.xpose.msra.mxu0 %v2078
        %4915 = vmatprep.subr.mxu0 0.0
        %4916 = vmatpush2.xpose.msra.mxu0 %v2075
        %4917 = vmatprep.subr.mxu0 0.0
        %4918 = vmatpush2.xpose.msra.mxu0 %v2072
        %4919 = vmatprep.subr.mxu0 0.0
        %4920 = vmatpush2.xpose.msra.mxu0 %v2069
        %4921 = vmatprep.subr.mxu0 0.0
        %4922 = vmatpush2.xpose.msra.mxu0 %v2066
        %4923 = vmatprep.subr.mxu0 0.0
        %4924 = vmatpush2.xpose.msra.mxu0 %v2063
        %4925 = vmatprep.subr.mxu0 0.0
        %4926 = vmatpush2.xpose.msra.mxu0 %v2060
        %4927 = vmatprep.subr.mxu0 0.0
        %4928 = vmatpush2.xpose.msra.mxu0 %v2057
        %4929 = vmatprep.subr.mxu0 0.0
        %4930 = vmatpush2.xpose.msra.mxu0 %v2054
        %4931 = vmatprep.subr.mxu0 0.0
        %4932 = vmatpush2.xpose.msra.mxu0 %v2051
        %4933 = vmatprep.subr.mxu0 0.0
        %4934 = vmatpush2.xpose.msra.mxu0 %v2048
        %4935 = vmatprep.mubr.f32.mxu0 0.0
        %4936 = vmatmul.mubr.f32.gmra.mxu0 %v1229
        %v4937 = vpop.f32.mrf.mxu0
        %v4938 = vadd.f32 %v1225, %v4937
        %v4939 = vpop.f32.mrf.mxu0
        %v4940 = vadd.f32 %v1225, %v4939
        %4941 = vdwg.mxu0
        %4942 = vmatprep.subr.mxu0 0.0
        %4943 = vmatpush1.xpose.msra.mxu0 %v2141
        %4944 = vmatprep.subr.mxu0 0.0
        %4945 = vmatpush1.xpose.msra.mxu0 %v2138
        %4946 = vmatprep.subr.mxu0 0.0
        %4947 = vmatpush1.xpose.msra.mxu0 %v2135
        %4948 = vmatprep.subr.mxu0 0.0
        %4949 = vmatpush1.xpose.msra.mxu0 %v2132
        %4950 = vmatprep.subr.mxu0 0.0
        %4951 = vmatpush1.xpose.msra.mxu0 %v2129
        %4952 = vmatprep.subr.mxu0 0.0
        %4953 = vmatpush1.xpose.msra.mxu0 %v2126
        %4954 = vmatprep.subr.mxu0 0.0
        %4955 = vmatpush1.xpose.msra.mxu0 %v2123
        %4956 = vmatprep.subr.mxu0 0.0
        %4957 = vmatpush1.xpose.msra.mxu0 %v2120
        %4958 = vmatprep.subr.mxu0 0.0
        %4959 = vmatpush1.xpose.msra.mxu0 %v2117
        %4960 = vmatprep.subr.mxu0 0.0
        %4961 = vmatpush1.xpose.msra.mxu0 %v2114
        %4962 = vmatprep.subr.mxu0 0.0
        %4963 = vmatpush1.xpose.msra.mxu0 %v2111
        %4964 = vmatprep.subr.mxu0 0.0
        %4965 = vmatpush1.xpose.msra.mxu0 %v2108
        %4966 = vmatprep.subr.mxu0 0.0
        %4967 = vmatpush1.xpose.msra.mxu0 %v2105
        %4968 = vmatprep.subr.mxu0 0.0
        %4969 = vmatpush1.xpose.msra.mxu0 %v2102
        %4970 = vmatprep.subr.mxu0 0.0
        %4971 = vmatpush1.xpose.msra.mxu0 %v2099
        %4972 = vmatprep.subr.mxu0 0.0
        %4973 = vmatpush1.xpose.msra.mxu0 %v2096
        %4974 = vmatprep.subr.mxu0 0.0
        %4975 = vmatpush2.xpose.msra.mxu0 %v2189
        %4976 = vmatprep.subr.mxu0 0.0
        %4977 = vmatpush2.xpose.msra.mxu0 %v2186
        %4978 = vmatprep.subr.mxu0 0.0
        %4979 = vmatpush2.xpose.msra.mxu0 %v2183
        %4980 = vmatprep.subr.mxu0 0.0
        %4981 = vmatpush2.xpose.msra.mxu0 %v2180
        %4982 = vmatprep.subr.mxu0 0.0
        %4983 = vmatpush2.xpose.msra.mxu0 %v2177
        %4984 = vmatprep.subr.mxu0 0.0
        %4985 = vmatpush2.xpose.msra.mxu0 %v2174
        %4986 = vmatprep.subr.mxu0 0.0
        %4987 = vmatpush2.xpose.msra.mxu0 %v2171
        %4988 = vmatprep.subr.mxu0 0.0
        %4989 = vmatpush2.xpose.msra.mxu0 %v2168
        %4990 = vmatprep.subr.mxu0 0.0
        %4991 = vmatpush2.xpose.msra.mxu0 %v2165
        %4992 = vmatprep.subr.mxu0 0.0
        %4993 = vmatpush2.xpose.msra.mxu0 %v2162
        %4994 = vmatprep.subr.mxu0 0.0
        %4995 = vmatpush2.xpose.msra.mxu0 %v2159
        %4996 = vmatprep.subr.mxu0 0.0
        %4997 = vmatpush2.xpose.msra.mxu0 %v2156
        %4998 = vmatprep.subr.mxu0 0.0
        %4999 = vmatpush2.xpose.msra.mxu0 %v2153
        %5000 = vmatprep.subr.mxu0 0.0
        %5001 = vmatpush2.xpose.msra.mxu0 %v2150
        %5002 = vmatprep.subr.mxu0 0.0
        %5003 = vmatpush2.xpose.msra.mxu0 %v2147
        %5004 = vmatprep.subr.mxu0 0.0
        %5005 = vmatpush2.xpose.msra.mxu0 %v2144
        %5006 = vmatprep.mubr.f32.mxu0 0.0
        %5007 = vmatmul.mubr.f32.gmra.mxu0 %v1229
        %v5008 = vpop.f32.mrf.mxu0
        %v5009 = vadd.f32 %v1225, %v5008
        %v5010 = vpop.f32.mrf.mxu0
        %v5011 = vadd.f32 %v1225, %v5010
        %5012 = vdwg.mxu0
        %5013 = vmatprep.subr.mxu0 0.0
        %5014 = vmatpush1.xpose.msra.mxu0 %v2237
        %5015 = vmatprep.subr.mxu0 0.0
        %5016 = vmatpush1.xpose.msra.mxu0 %v2234
        %5017 = vmatprep.subr.mxu0 0.0
        %5018 = vmatpush1.xpose.msra.mxu0 %v2231
        %5019 = vmatprep.subr.mxu0 0.0
        %5020 = vmatpush1.xpose.msra.mxu0 %v2228
        %5021 = vmatprep.subr.mxu0 0.0
        %5022 = vmatpush1.xpose.msra.mxu0 %v2225
        %5023 = vmatprep.subr.mxu0 0.0
        %5024 = vmatpush1.xpose.msra.mxu0 %v2222
        %5025 = vmatprep.subr.mxu0 0.0
        %5026 = vmatpush1.xpose.msra.mxu0 %v2219
        %5027 = vmatprep.subr.mxu0 0.0
        %5028 = vmatpush1.xpose.msra.mxu0 %v2216
        %5029 = vmatprep.subr.mxu0 0.0
        %5030 = vmatpush1.xpose.msra.mxu0 %v2213
        %5031 = vmatprep.subr.mxu0 0.0
        %5032 = vmatpush1.xpose.msra.mxu0 %v2210
        %5033 = vmatprep.subr.mxu0 0.0
        %5034 = vmatpush1.xpose.msra.mxu0 %v2207
        %5035 = vmatprep.subr.mxu0 0.0
        %5036 = vmatpush1.xpose.msra.mxu0 %v2204
        %5037 = vmatprep.subr.mxu0 0.0
        %5038 = vmatpush1.xpose.msra.mxu0 %v2201
        %5039 = vmatprep.subr.mxu0 0.0
        %5040 = vmatpush1.xpose.msra.mxu0 %v2198
        %5041 = vmatprep.subr.mxu0 0.0
        %5042 = vmatpush1.xpose.msra.mxu0 %v2195
        %5043 = vmatprep.subr.mxu0 0.0
        %5044 = vmatpush1.xpose.msra.mxu0 %v2192
        %5045 = vmatprep.subr.mxu0 0.0
        %5046 = vmatpush2.xpose.msra.mxu0 %v2285
        %5047 = vmatprep.subr.mxu0 0.0
        %5048 = vmatpush2.xpose.msra.mxu0 %v2282
        %5049 = vmatprep.subr.mxu0 0.0
        %5050 = vmatpush2.xpose.msra.mxu0 %v2279
        %5051 = vmatprep.subr.mxu0 0.0
        %5052 = vmatpush2.xpose.msra.mxu0 %v2276
        %5053 = vmatprep.subr.mxu0 0.0
        %5054 = vmatpush2.xpose.msra.mxu0 %v2273
        %5055 = vmatprep.subr.mxu0 0.0
        %5056 = vmatpush2.xpose.msra.mxu0 %v2270
        %5057 = vmatprep.subr.mxu0 0.0
        %5058 = vmatpush2.xpose.msra.mxu0 %v2267
        %5059 = vmatprep.subr.mxu0 0.0
        %5060 = vmatpush2.xpose.msra.mxu0 %v2264
        %5061 = vmatprep.subr.mxu0 0.0
        %5062 = vmatpush2.xpose.msra.mxu0 %v2261
        %5063 = vmatprep.subr.mxu0 0.0
        %5064 = vmatpush2.xpose.msra.mxu0 %v2258
        %5065 = vmatprep.subr.mxu0 0.0
        %5066 = vmatpush2.xpose.msra.mxu0 %v2255
        %5067 = vmatprep.subr.mxu0 0.0
        %5068 = vmatpush2.xpose.msra.mxu0 %v2252
        %5069 = vmatprep.subr.mxu0 0.0
        %5070 = vmatpush2.xpose.msra.mxu0 %v2249
        %5071 = vmatprep.subr.mxu0 0.0
        %5072 = vmatpush2.xpose.msra.mxu0 %v2246
        %5073 = vmatprep.subr.mxu0 0.0
        %5074 = vmatpush2.xpose.msra.mxu0 %v2243
        %5075 = vmatprep.subr.mxu0 0.0
        %5076 = vmatpush2.xpose.msra.mxu0 %v2240
        %5077 = vmatprep.mubr.f32.mxu0 0.0
        %5078 = vmatmul.mubr.f32.gmra.mxu0 %v1229
        %v5079 = vpop.f32.mrf.mxu0
        %v5080 = vadd.f32 %v1225, %v5079
        %v5081 = vpop.f32.mrf.mxu0
        %v5082 = vadd.f32 %v1225, %v5081
        %5083 = vdwg.mxu0
        %5084 = vmatprep.subr.mxu0 0.0
        %5085 = vmatpush1.xpose.msra.mxu0 %v2333
        %5086 = vmatprep.subr.mxu0 0.0
        %5087 = vmatpush1.xpose.msra.mxu0 %v2330
        %5088 = vmatprep.subr.mxu0 0.0
        %5089 = vmatpush1.xpose.msra.mxu0 %v2327
        %5090 = vmatprep.subr.mxu0 0.0
        %5091 = vmatpush1.xpose.msra.mxu0 %v2324
        %5092 = vmatprep.subr.mxu0 0.0
        %5093 = vmatpush1.xpose.msra.mxu0 %v2321
        %5094 = vmatprep.subr.mxu0 0.0
        %5095 = vmatpush1.xpose.msra.mxu0 %v2318
        %5096 = vmatprep.subr.mxu0 0.0
        %5097 = vmatpush1.xpose.msra.mxu0 %v2315
        %5098 = vmatprep.subr.mxu0 0.0
        %5099 = vmatpush1.xpose.msra.mxu0 %v2312
        %5100 = vmatprep.subr.mxu0 0.0
        %5101 = vmatpush1.xpose.msra.mxu0 %v2309
        %5102 = vmatprep.subr.mxu0 0.0
        %5103 = vmatpush1.xpose.msra.mxu0 %v2306
        %5104 = vmatprep.subr.mxu0 0.0
        %5105 = vmatpush1.xpose.msra.mxu0 %v2303
        %5106 = vmatprep.subr.mxu0 0.0
        %5107 = vmatpush1.xpose.msra.mxu0 %v2300
        %5108 = vmatprep.subr.mxu0 0.0
        %5109 = vmatpush1.xpose.msra.mxu0 %v2297
        %5110 = vmatprep.subr.mxu0 0.0
        %5111 = vmatpush1.xpose.msra.mxu0 %v2294
        %5112 = vmatprep.subr.mxu0 0.0
        %5113 = vmatpush1.xpose.msra.mxu0 %v2291
        %5114 = vmatprep.subr.mxu0 0.0
        %5115 = vmatpush1.xpose.msra.mxu0 %v2288
        %5116 = vmatprep.subr.mxu0 0.0
        %5117 = vmatpush2.xpose.msra.mxu0 %v2381
        %5118 = vmatprep.subr.mxu0 0.0
        %5119 = vmatpush2.xpose.msra.mxu0 %v2378
        %5120 = vmatprep.subr.mxu0 0.0
        %5121 = vmatpush2.xpose.msra.mxu0 %v2375
        %5122 = vmatprep.subr.mxu0 0.0
        %5123 = vmatpush2.xpose.msra.mxu0 %v2372
        %5124 = vmatprep.subr.mxu0 0.0
        %5125 = vmatpush2.xpose.msra.mxu0 %v2369
        %5126 = vmatprep.subr.mxu0 0.0
        %5127 = vmatpush2.xpose.msra.mxu0 %v2366
        %5128 = vmatprep.subr.mxu0 0.0
        %5129 = vmatpush2.xpose.msra.mxu0 %v2363
        %5130 = vmatprep.subr.mxu0 0.0
        %5131 = vmatpush2.xpose.msra.mxu0 %v2360
        %5132 = vmatprep.subr.mxu0 0.0
        %5133 = vmatpush2.xpose.msra.mxu0 %v2357
        %5134 = vmatprep.subr.mxu0 0.0
        %5135 = vmatpush2.xpose.msra.mxu0 %v2354
        %5136 = vmatprep.subr.mxu0 0.0
        %5137 = vmatpush2.xpose.msra.mxu0 %v2351
        %5138 = vmatprep.subr.mxu0 0.0
        %5139 = vmatpush2.xpose.msra.mxu0 %v2348
        %5140 = vmatprep.subr.mxu0 0.0
        %5141 = vmatpush2.xpose.msra.mxu0 %v2345
        %5142 = vmatprep.subr.mxu0 0.0
        %5143 = vmatpush2.xpose.msra.mxu0 %v2342
        %5144 = vmatprep.subr.mxu0 0.0
        %5145 = vmatpush2.xpose.msra.mxu0 %v2339
        %5146 = vmatprep.subr.mxu0 0.0
        %5147 = vmatpush2.xpose.msra.mxu0 %v2336
        %5148 = vmatprep.mubr.f32.mxu0 0.0
        %5149 = vmatmul.mubr.f32.gmra.mxu0 %v1229
        %v5150 = vpop.f32.mrf.mxu0
        %v5151 = vadd.f32 %v1225, %v5150
        %v5152 = vpop.f32.mrf.mxu0
        %v5153 = vadd.f32 %v1225, %v5152
        %5154 = vdwg.mxu0
        %5155 = vmatprep.subr.mxu0 0.0
        %5156 = vmatpush1.xpose.msra.mxu0 %v2429
        %5157 = vmatprep.subr.mxu0 0.0
        %5158 = vmatpush1.xpose.msra.mxu0 %v2426
        %5159 = vmatprep.subr.mxu0 0.0
        %5160 = vmatpush1.xpose.msra.mxu0 %v2423
        %5161 = vmatprep.subr.mxu0 0.0
        %5162 = vmatpush1.xpose.msra.mxu0 %v2420
        %5163 = vmatprep.subr.mxu0 0.0
        %5164 = vmatpush1.xpose.msra.mxu0 %v2417
        %5165 = vmatprep.subr.mxu0 0.0
        %5166 = vmatpush1.xpose.msra.mxu0 %v2414
        %5167 = vmatprep.subr.mxu0 0.0
        %5168 = vmatpush1.xpose.msra.mxu0 %v2411
        %5169 = vmatprep.subr.mxu0 0.0
        %5170 = vmatpush1.xpose.msra.mxu0 %v2408
        %5171 = vmatprep.subr.mxu0 0.0
        %5172 = vmatpush1.xpose.msra.mxu0 %v2405
        %5173 = vmatprep.subr.mxu0 0.0
        %5174 = vmatpush1.xpose.msra.mxu0 %v2402
        %5175 = vmatprep.subr.mxu0 0.0
        %5176 = vmatpush1.xpose.msra.mxu0 %v2399
        %5177 = vmatprep.subr.mxu0 0.0
        %5178 = vmatpush1.xpose.msra.mxu0 %v2396
        %5179 = vmatprep.subr.mxu0 0.0
        %5180 = vmatpush1.xpose.msra.mxu0 %v2393
        %5181 = vmatprep.subr.mxu0 0.0
        %5182 = vmatpush1.xpose.msra.mxu0 %v2390
        %5183 = vmatprep.subr.mxu0 0.0
        %5184 = vmatpush1.xpose.msra.mxu0 %v2387
        %5185 = vmatprep.subr.mxu0 0.0
        %5186 = vmatpush1.xpose.msra.mxu0 %v2384
        %5187 = vmatprep.subr.mxu0 0.0
        %5188 = vmatpush2.xpose.msra.mxu0 %v2477
        %5189 = vmatprep.subr.mxu0 0.0
        %5190 = vmatpush2.xpose.msra.mxu0 %v2474
        %5191 = vmatprep.subr.mxu0 0.0
        %5192 = vmatpush2.xpose.msra.mxu0 %v2471
        %5193 = vmatprep.subr.mxu0 0.0
        %5194 = vmatpush2.xpose.msra.mxu0 %v2468
        %5195 = vmatprep.subr.mxu0 0.0
        %5196 = vmatpush2.xpose.msra.mxu0 %v2465
        %5197 = vmatprep.subr.mxu0 0.0
        %5198 = vmatpush2.xpose.msra.mxu0 %v2462
        %5199 = vmatprep.subr.mxu0 0.0
        %5200 = vmatpush2.xpose.msra.mxu0 %v2459
        %5201 = vmatprep.subr.mxu0 0.0
        %5202 = vmatpush2.xpose.msra.mxu0 %v2456
        %5203 = vmatprep.subr.mxu0 0.0
        %5204 = vmatpush2.xpose.msra.mxu0 %v2453
        %5205 = vmatprep.subr.mxu0 0.0
        %5206 = vmatpush2.xpose.msra.mxu0 %v2450
        %5207 = vmatprep.subr.mxu0 0.0
        %5208 = vmatpush2.xpose.msra.mxu0 %v2447
        %5209 = vmatprep.subr.mxu0 0.0
        %5210 = vmatpush2.xpose.msra.mxu0 %v2444
        %5211 = vmatprep.subr.mxu0 0.0
        %5212 = vmatpush2.xpose.msra.mxu0 %v2441
        %5213 = vmatprep.subr.mxu0 0.0
        %5214 = vmatpush2.xpose.msra.mxu0 %v2438
        %5215 = vmatprep.subr.mxu0 0.0
        %5216 = vmatpush2.xpose.msra.mxu0 %v2435
        %5217 = vmatprep.subr.mxu0 0.0
        %5218 = vmatpush2.xpose.msra.mxu0 %v2432
        %5219 = vmatprep.mubr.f32.mxu0 0.0
        %5220 = vmatmul.mubr.f32.gmra.mxu0 %v1229
        %v5221 = vpop.f32.mrf.mxu0
        %v5222 = vadd.f32 %v1225, %v5221
        %v5223 = vpop.f32.mrf.mxu0
        %v5224 = vadd.f32 %v1225, %v5223
        %5225 = vdwg.mxu0
        %5226 = vmatprep.subr.mxu0 0.0
        %5227 = vmatpush1.xpose.msra.mxu0 %v2525
        %5228 = vmatprep.subr.mxu0 0.0
        %5229 = vmatpush1.xpose.msra.mxu0 %v2522
        %5230 = vmatprep.subr.mxu0 0.0
        %5231 = vmatpush1.xpose.msra.mxu0 %v2519
        %5232 = vmatprep.subr.mxu0 0.0
        %5233 = vmatpush1.xpose.msra.mxu0 %v2516
        %5234 = vmatprep.subr.mxu0 0.0
        %5235 = vmatpush1.xpose.msra.mxu0 %v2513
        %5236 = vmatprep.subr.mxu0 0.0
        %5237 = vmatpush1.xpose.msra.mxu0 %v2510
        %5238 = vmatprep.subr.mxu0 0.0
        %5239 = vmatpush1.xpose.msra.mxu0 %v2507
        %5240 = vmatprep.subr.mxu0 0.0
        %5241 = vmatpush1.xpose.msra.mxu0 %v2504
        %5242 = vmatprep.subr.mxu0 0.0
        %5243 = vmatpush1.xpose.msra.mxu0 %v2501
        %5244 = vmatprep.subr.mxu0 0.0
        %5245 = vmatpush1.xpose.msra.mxu0 %v2498
        %5246 = vmatprep.subr.mxu0 0.0
        %5247 = vmatpush1.xpose.msra.mxu0 %v2495
        %5248 = vmatprep.subr.mxu0 0.0
        %5249 = vmatpush1.xpose.msra.mxu0 %v2492
        %5250 = vmatprep.subr.mxu0 0.0
        %5251 = vmatpush1.xpose.msra.mxu0 %v2489
        %5252 = vmatprep.subr.mxu0 0.0
        %5253 = vmatpush1.xpose.msra.mxu0 %v2486
        %5254 = vmatprep.subr.mxu0 0.0
        %5255 = vmatpush1.xpose.msra.mxu0 %v2483
        %5256 = vmatprep.subr.mxu0 0.0
        %5257 = vmatpush1.xpose.msra.mxu0 %v2480
        %5258 = vmatprep.subr.mxu0 0.0
        %5259 = vmatpush2.xpose.msra.mxu0 %v2573
        %5260 = vmatprep.subr.mxu0 0.0
        %5261 = vmatpush2.xpose.msra.mxu0 %v2570
        %5262 = vmatprep.subr.mxu0 0.0
        %5263 = vmatpush2.xpose.msra.mxu0 %v2567
        %5264 = vmatprep.subr.mxu0 0.0
        %5265 = vmatpush2.xpose.msra.mxu0 %v2564
        %5266 = vmatprep.subr.mxu0 0.0
        %5267 = vmatpush2.xpose.msra.mxu0 %v2561
        %5268 = vmatprep.subr.mxu0 0.0
        %5269 = vmatpush2.xpose.msra.mxu0 %v2558
        %5270 = vmatprep.subr.mxu0 0.0
        %5271 = vmatpush2.xpose.msra.mxu0 %v2555
        %5272 = vmatprep.subr.mxu0 0.0
        %5273 = vmatpush2.xpose.msra.mxu0 %v2552
        %5274 = vmatprep.subr.mxu0 0.0
        %5275 = vmatpush2.xpose.msra.mxu0 %v2549
        %5276 = vmatprep.subr.mxu0 0.0
        %5277 = vmatpush2.xpose.msra.mxu0 %v2546
        %5278 = vmatprep.subr.mxu0 0.0
        %5279 = vmatpush2.xpose.msra.mxu0 %v2543
        %5280 = vmatprep.subr.mxu0 0.0
        %5281 = vmatpush2.xpose.msra.mxu0 %v2540
        %5282 = vmatprep.subr.mxu0 0.0
        %5283 = vmatpush2.xpose.msra.mxu0 %v2537
        %5284 = vmatprep.subr.mxu0 0.0
        %5285 = vmatpush2.xpose.msra.mxu0 %v2534
        %5286 = vmatprep.subr.mxu0 0.0
        %5287 = vmatpush2.xpose.msra.mxu0 %v2531
        %5288 = vmatprep.subr.mxu0 0.0
        %5289 = vmatpush2.xpose.msra.mxu0 %v2528
        %5290 = vmatprep.mubr.f32.mxu0 0.0
        %5291 = vmatmul.mubr.f32.gmra.mxu0 %v1229
        %v5292 = vpop.f32.mrf.mxu0
        %v5293 = vadd.f32 %v1225, %v5292
        %v5294 = vpop.f32.mrf.mxu0
        %v5295 = vadd.f32 %v1225, %v5294
        %5296 = vdwg.mxu0
        %5297 = vmatprep.subr.mxu0 0.0
        %5298 = vmatpush1.xpose.msra.mxu0 %v2621
        %5299 = vmatprep.subr.mxu0 0.0
        %5300 = vmatpush1.xpose.msra.mxu0 %v2618
        %5301 = vmatprep.subr.mxu0 0.0
        %5302 = vmatpush1.xpose.msra.mxu0 %v2615
        %5303 = vmatprep.subr.mxu0 0.0
        %5304 = vmatpush1.xpose.msra.mxu0 %v2612
        %5305 = vmatprep.subr.mxu0 0.0
        %5306 = vmatpush1.xpose.msra.mxu0 %v2609
        %5307 = vmatprep.subr.mxu0 0.0
        %5308 = vmatpush1.xpose.msra.mxu0 %v2606
        %5309 = vmatprep.subr.mxu0 0.0
        %5310 = vmatpush1.xpose.msra.mxu0 %v2603
        %5311 = vmatprep.subr.mxu0 0.0
        %5312 = vmatpush1.xpose.msra.mxu0 %v2600
        %5313 = vmatprep.subr.mxu0 0.0
        %5314 = vmatpush1.xpose.msra.mxu0 %v2597
        %5315 = vmatprep.subr.mxu0 0.0
        %5316 = vmatpush1.xpose.msra.mxu0 %v2594
        %5317 = vmatprep.subr.mxu0 0.0
        %5318 = vmatpush1.xpose.msra.mxu0 %v2591
        %5319 = vmatprep.subr.mxu0 0.0
        %5320 = vmatpush1.xpose.msra.mxu0 %v2588
        %5321 = vmatprep.subr.mxu0 0.0
        %5322 = vmatpush1.xpose.msra.mxu0 %v2585
        %5323 = vmatprep.subr.mxu0 0.0
        %5324 = vmatpush1.xpose.msra.mxu0 %v2582
        %5325 = vmatprep.subr.mxu0 0.0
        %5326 = vmatpush1.xpose.msra.mxu0 %v2579
        %5327 = vmatprep.subr.mxu0 0.0
        %5328 = vmatpush1.xpose.msra.mxu0 %v2576
        %5329 = vmatprep.subr.mxu0 0.0
        %5330 = vmatpush2.xpose.msra.mxu0 %v2669
        %5331 = vmatprep.subr.mxu0 0.0
        %5332 = vmatpush2.xpose.msra.mxu0 %v2666
        %5333 = vmatprep.subr.mxu0 0.0
        %5334 = vmatpush2.xpose.msra.mxu0 %v2663
        %5335 = vmatprep.subr.mxu0 0.0
        %5336 = vmatpush2.xpose.msra.mxu0 %v2660
        %5337 = vmatprep.subr.mxu0 0.0
        %5338 = vmatpush2.xpose.msra.mxu0 %v2657
        %5339 = vmatprep.subr.mxu0 0.0
        %5340 = vmatpush2.xpose.msra.mxu0 %v2654
        %5341 = vmatprep.subr.mxu0 0.0
        %5342 = vmatpush2.xpose.msra.mxu0 %v2651
        %5343 = vmatprep.subr.mxu0 0.0
        %5344 = vmatpush2.xpose.msra.mxu0 %v2648
        %5345 = vmatprep.subr.mxu0 0.0
        %5346 = vmatpush2.xpose.msra.mxu0 %v2645
        %5347 = vmatprep.subr.mxu0 0.0
        %5348 = vmatpush2.xpose.msra.mxu0 %v2642
        %5349 = vmatprep.subr.mxu0 0.0
        %5350 = vmatpush2.xpose.msra.mxu0 %v2639
        %5351 = vmatprep.subr.mxu0 0.0
        %5352 = vmatpush2.xpose.msra.mxu0 %v2636
        %5353 = vmatprep.subr.mxu0 0.0
        %5354 = vmatpush2.xpose.msra.mxu0 %v2633
        %5355 = vmatprep.subr.mxu0 0.0
        %5356 = vmatpush2.xpose.msra.mxu0 %v2630
        %5357 = vmatprep.subr.mxu0 0.0
        %5358 = vmatpush2.xpose.msra.mxu0 %v2627
        %5359 = vmatprep.subr.mxu0 0.0
        %5360 = vmatpush2.xpose.msra.mxu0 %v2624
        %5361 = vmatprep.mubr.f32.mxu0 0.0
        %5362 = vmatmul.mubr.f32.gmra.mxu0 %v1229
        %v5363 = vpop.f32.mrf.mxu0
        %v5364 = vadd.f32 %v1225, %v5363
        %v5365 = vpop.f32.mrf.mxu0
        %v5366 = vadd.f32 %v1225, %v5365
        %5367 = vdwg.mxu0
        %5368 = vmatprep.subr.mxu0 0.0
        %5369 = vmatpush1.xpose.msra.mxu0 %v2717
        %5370 = vmatprep.subr.mxu0 0.0
        %5371 = vmatpush1.xpose.msra.mxu0 %v2714
        %5372 = vmatprep.subr.mxu0 0.0
        %5373 = vmatpush1.xpose.msra.mxu0 %v2711
        %5374 = vmatprep.subr.mxu0 0.0
        %5375 = vmatpush1.xpose.msra.mxu0 %v2708
        %5376 = vmatprep.subr.mxu0 0.0
        %5377 = vmatpush1.xpose.msra.mxu0 %v2705
        %5378 = vmatprep.subr.mxu0 0.0
        %5379 = vmatpush1.xpose.msra.mxu0 %v2702
        %5380 = vmatprep.subr.mxu0 0.0
        %5381 = vmatpush1.xpose.msra.mxu0 %v2699
        %5382 = vmatprep.subr.mxu0 0.0
        %5383 = vmatpush1.xpose.msra.mxu0 %v2696
        %5384 = vmatprep.subr.mxu0 0.0
        %5385 = vmatpush1.xpose.msra.mxu0 %v2693
        %5386 = vmatprep.subr.mxu0 0.0
        %5387 = vmatpush1.xpose.msra.mxu0 %v2690
        %5388 = vmatprep.subr.mxu0 0.0
        %5389 = vmatpush1.xpose.msra.mxu0 %v2687
        %5390 = vmatprep.subr.mxu0 0.0
        %5391 = vmatpush1.xpose.msra.mxu0 %v2684
        %5392 = vmatprep.subr.mxu0 0.0
        %5393 = vmatpush1.xpose.msra.mxu0 %v2681
        %5394 = vmatprep.subr.mxu0 0.0
        %5395 = vmatpush1.xpose.msra.mxu0 %v2678
        %5396 = vmatprep.subr.mxu0 0.0
        %5397 = vmatpush1.xpose.msra.mxu0 %v2675
        %5398 = vmatprep.subr.mxu0 0.0
        %5399 = vmatpush1.xpose.msra.mxu0 %v2672
        %5400 = vmatprep.subr.mxu0 0.0
        %5401 = vmatpush2.xpose.msra.mxu0 %v2765
        %5402 = vmatprep.subr.mxu0 0.0
        %5403 = vmatpush2.xpose.msra.mxu0 %v2762
        %5404 = vmatprep.subr.mxu0 0.0
        %5405 = vmatpush2.xpose.msra.mxu0 %v2759
        %5406 = vmatprep.subr.mxu0 0.0
        %5407 = vmatpush2.xpose.msra.mxu0 %v2756
        %5408 = vmatprep.subr.mxu0 0.0
        %5409 = vmatpush2.xpose.msra.mxu0 %v2753
        %5410 = vmatprep.subr.mxu0 0.0
        %5411 = vmatpush2.xpose.msra.mxu0 %v2750
        %5412 = vmatprep.subr.mxu0 0.0
        %5413 = vmatpush2.xpose.msra.mxu0 %v2747
        %5414 = vmatprep.subr.mxu0 0.0
        %5415 = vmatpush2.xpose.msra.mxu0 %v2744
        %5416 = vmatprep.subr.mxu0 0.0
        %5417 = vmatpush2.xpose.msra.mxu0 %v2741
        %5418 = vmatprep.subr.mxu0 0.0
        %5419 = vmatpush2.xpose.msra.mxu0 %v2738
        %5420 = vmatprep.subr.mxu0 0.0
        %5421 = vmatpush2.xpose.msra.mxu0 %v2735
        %5422 = vmatprep.subr.mxu0 0.0
        %5423 = vmatpush2.xpose.msra.mxu0 %v2732
        %5424 = vmatprep.subr.mxu0 0.0
        %5425 = vmatpush2.xpose.msra.mxu0 %v2729
        %5426 = vmatprep.subr.mxu0 0.0
        %5427 = vmatpush2.xpose.msra.mxu0 %v2726
        %5428 = vmatprep.subr.mxu0 0.0
        %5429 = vmatpush2.xpose.msra.mxu0 %v2723
        %5430 = vmatprep.subr.mxu0 0.0
        %5431 = vmatpush2.xpose.msra.mxu0 %v2720
        %5432 = vmatprep.mubr.f32.mxu0 0.0
        %5433 = vmatmul.mubr.f32.gmra.mxu0 %v1229
        %v5434 = vpop.f32.mrf.mxu0
        %v5435 = vadd.f32 %v1225, %v5434
        %v5436 = vpop.f32.mrf.mxu0
        %v5437 = vadd.f32 %v1225, %v5436
        %5438 = vdwg.mxu0
        %5439 = vmatprep.subr.mxu0 0.0
        %5440 = vmatpush1.xpose.msra.mxu0 %v2813
        %5441 = vmatprep.subr.mxu0 0.0
        %5442 = vmatpush1.xpose.msra.mxu0 %v2810
        %5443 = vmatprep.subr.mxu0 0.0
        %5444 = vmatpush1.xpose.msra.mxu0 %v2807
        %5445 = vmatprep.subr.mxu0 0.0
        %5446 = vmatpush1.xpose.msra.mxu0 %v2804
        %5447 = vmatprep.subr.mxu0 0.0
        %5448 = vmatpush1.xpose.msra.mxu0 %v2801
        %5449 = vmatprep.subr.mxu0 0.0
        %5450 = vmatpush1.xpose.msra.mxu0 %v2798
        %5451 = vmatprep.subr.mxu0 0.0
        %5452 = vmatpush1.xpose.msra.mxu0 %v2795
        %5453 = vmatprep.subr.mxu0 0.0
        %5454 = vmatpush1.xpose.msra.mxu0 %v2792
        %5455 = vmatprep.subr.mxu0 0.0
        %5456 = vmatpush1.xpose.msra.mxu0 %v2789
        %5457 = vmatprep.subr.mxu0 0.0
        %5458 = vmatpush1.xpose.msra.mxu0 %v2786
        %5459 = vmatprep.subr.mxu0 0.0
        %5460 = vmatpush1.xpose.msra.mxu0 %v2783
        %5461 = vmatprep.subr.mxu0 0.0
        %5462 = vmatpush1.xpose.msra.mxu0 %v2780
        %5463 = vmatprep.subr.mxu0 0.0
        %5464 = vmatpush1.xpose.msra.mxu0 %v2777
        %5465 = vmatprep.subr.mxu0 0.0
        %5466 = vmatpush1.xpose.msra.mxu0 %v2774
        %5467 = vmatprep.subr.mxu0 0.0
        %5468 = vmatpush1.xpose.msra.mxu0 %v2771
        %5469 = vmatprep.subr.mxu0 0.0
        %5470 = vmatpush1.xpose.msra.mxu0 %v2768
        %5471 = vmatprep.subr.mxu0 0.0
        %5472 = vmatpush2.xpose.msra.mxu0 %v2861
        %5473 = vmatprep.subr.mxu0 0.0
        %5474 = vmatpush2.xpose.msra.mxu0 %v2858
        %5475 = vmatprep.subr.mxu0 0.0
        %5476 = vmatpush2.xpose.msra.mxu0 %v2855
        %5477 = vmatprep.subr.mxu0 0.0
        %5478 = vmatpush2.xpose.msra.mxu0 %v2852
        %5479 = vmatprep.subr.mxu0 0.0
        %5480 = vmatpush2.xpose.msra.mxu0 %v2849
        %5481 = vmatprep.subr.mxu0 0.0
        %5482 = vmatpush2.xpose.msra.mxu0 %v2846
        %5483 = vmatprep.subr.mxu0 0.0
        %5484 = vmatpush2.xpose.msra.mxu0 %v2843
        %5485 = vmatprep.subr.mxu0 0.0
        %5486 = vmatpush2.xpose.msra.mxu0 %v2840
        %5487 = vmatprep.subr.mxu0 0.0
        %5488 = vmatpush2.xpose.msra.mxu0 %v2837
        %5489 = vmatprep.subr.mxu0 0.0
        %5490 = vmatpush2.xpose.msra.mxu0 %v2834
        %5491 = vmatprep.subr.mxu0 0.0
        %5492 = vmatpush2.xpose.msra.mxu0 %v2831
        %5493 = vmatprep.subr.mxu0 0.0
        %5494 = vmatpush2.xpose.msra.mxu0 %v2828
        %5495 = vmatprep.subr.mxu0 0.0
        %5496 = vmatpush2.xpose.msra.mxu0 %v2825
        %5497 = vmatprep.subr.mxu0 0.0
        %5498 = vmatpush2.xpose.msra.mxu0 %v2822
        %5499 = vmatprep.subr.mxu0 0.0
        %5500 = vmatpush2.xpose.msra.mxu0 %v2819
        %5501 = vmatprep.subr.mxu0 0.0
        %5502 = vmatpush2.xpose.msra.mxu0 %v2816
        %5503 = vmatprep.mubr.f32.mxu0 0.0
        %5504 = vmatmul.mubr.f32.gmra.mxu0 %v1229
        %v5505 = vpop.f32.mrf.mxu0
        %v5506 = vadd.f32 %v1225, %v5505
        %v5507 = vpop.f32.mrf.mxu0
        %v5508 = vadd.f32 %v1225, %v5507
        %5509 = vdwg.mxu0
        %5510 = vmatprep.subr.mxu0 0.0
        %5511 = vmatpush1.xpose.msra.mxu0 %v2909
        %5512 = vmatprep.subr.mxu0 0.0
        %5513 = vmatpush1.xpose.msra.mxu0 %v2906
        %5514 = vmatprep.subr.mxu0 0.0
        %5515 = vmatpush1.xpose.msra.mxu0 %v2903
        %5516 = vmatprep.subr.mxu0 0.0
        %5517 = vmatpush1.xpose.msra.mxu0 %v2900
        %5518 = vmatprep.subr.mxu0 0.0
        %5519 = vmatpush1.xpose.msra.mxu0 %v2897
        %5520 = vmatprep.subr.mxu0 0.0
        %5521 = vmatpush1.xpose.msra.mxu0 %v2894
        %5522 = vmatprep.subr.mxu0 0.0
        %5523 = vmatpush1.xpose.msra.mxu0 %v2891
        %5524 = vmatprep.subr.mxu0 0.0
        %5525 = vmatpush1.xpose.msra.mxu0 %v2888
        %5526 = vmatprep.subr.mxu0 0.0
        %5527 = vmatpush1.xpose.msra.mxu0 %v2885
        %5528 = vmatprep.subr.mxu0 0.0
        %5529 = vmatpush1.xpose.msra.mxu0 %v2882
        %5530 = vmatprep.subr.mxu0 0.0
        %5531 = vmatpush1.xpose.msra.mxu0 %v2879
        %5532 = vmatprep.subr.mxu0 0.0
        %5533 = vmatpush1.xpose.msra.mxu0 %v2876
        %5534 = vmatprep.subr.mxu0 0.0
        %5535 = vmatpush1.xpose.msra.mxu0 %v2873
        %5536 = vmatprep.subr.mxu0 0.0
        %5537 = vmatpush1.xpose.msra.mxu0 %v2870
        %5538 = vmatprep.subr.mxu0 0.0
        %5539 = vmatpush1.xpose.msra.mxu0 %v2867
        %5540 = vmatprep.subr.mxu0 0.0
        %5541 = vmatpush1.xpose.msra.mxu0 %v2864
        %5542 = vmatprep.subr.mxu0 0.0
        %5543 = vmatpush2.xpose.msra.mxu0 %v2957
        %5544 = vmatprep.subr.mxu0 0.0
        %5545 = vmatpush2.xpose.msra.mxu0 %v2954
        %5546 = vmatprep.subr.mxu0 0.0
        %5547 = vmatpush2.xpose.msra.mxu0 %v2951
        %5548 = vmatprep.subr.mxu0 0.0
        %5549 = vmatpush2.xpose.msra.mxu0 %v2948
        %5550 = vmatprep.subr.mxu0 0.0
        %5551 = vmatpush2.xpose.msra.mxu0 %v2945
        %5552 = vmatprep.subr.mxu0 0.0
        %5553 = vmatpush2.xpose.msra.mxu0 %v2942
        %5554 = vmatprep.subr.mxu0 0.0
        %5555 = vmatpush2.xpose.msra.mxu0 %v2939
        %5556 = vmatprep.subr.mxu0 0.0
        %5557 = vmatpush2.xpose.msra.mxu0 %v2936
        %5558 = vmatprep.subr.mxu0 0.0
        %5559 = vmatpush2.xpose.msra.mxu0 %v2933
        %5560 = vmatprep.subr.mxu0 0.0
        %5561 = vmatpush2.xpose.msra.mxu0 %v2930
        %5562 = vmatprep.subr.mxu0 0.0
        %5563 = vmatpush2.xpose.msra.mxu0 %v2927
        %5564 = vmatprep.subr.mxu0 0.0
        %5565 = vmatpush2.xpose.msra.mxu0 %v2924
        %5566 = vmatprep.subr.mxu0 0.0
        %5567 = vmatpush2.xpose.msra.mxu0 %v2921
        %5568 = vmatprep.subr.mxu0 0.0
        %5569 = vmatpush2.xpose.msra.mxu0 %v2918
        %5570 = vmatprep.subr.mxu0 0.0
        %5571 = vmatpush2.xpose.msra.mxu0 %v2915
        %5572 = vmatprep.subr.mxu0 0.0
        %5573 = vmatpush2.xpose.msra.mxu0 %v2912
        %5574 = vmatprep.mubr.f32.mxu0 0.0
        %5575 = vmatmul.mubr.f32.gmra.mxu0 %v1229
        %v5576 = vpop.f32.mrf.mxu0
        %v5577 = vadd.f32 %v1225, %v5576
        %v5578 = vpop.f32.mrf.mxu0
        %v5579 = vadd.f32 %v1225, %v5578
        %5580 = vdwg.mxu0
        %5581 = vmatprep.subr.mxu0 0.0
        %5582 = vmatpush1.xpose.msra.mxu0 %v3005
        %5583 = vmatprep.subr.mxu0 0.0
        %5584 = vmatpush1.xpose.msra.mxu0 %v3002
        %5585 = vmatprep.subr.mxu0 0.0
        %5586 = vmatpush1.xpose.msra.mxu0 %v2999
        %5587 = vmatprep.subr.mxu0 0.0
        %5588 = vmatpush1.xpose.msra.mxu0 %v2996
        %5589 = vmatprep.subr.mxu0 0.0
        %5590 = vmatpush1.xpose.msra.mxu0 %v2993
        %5591 = vmatprep.subr.mxu0 0.0
        %5592 = vmatpush1.xpose.msra.mxu0 %v2990
        %5593 = vmatprep.subr.mxu0 0.0
        %5594 = vmatpush1.xpose.msra.mxu0 %v2987
        %5595 = vmatprep.subr.mxu0 0.0
        %5596 = vmatpush1.xpose.msra.mxu0 %v2984
        %5597 = vmatprep.subr.mxu0 0.0
        %5598 = vmatpush1.xpose.msra.mxu0 %v2981
        %5599 = vmatprep.subr.mxu0 0.0
        %5600 = vmatpush1.xpose.msra.mxu0 %v2978
        %5601 = vmatprep.subr.mxu0 0.0
        %5602 = vmatpush1.xpose.msra.mxu0 %v2975
        %5603 = vmatprep.subr.mxu0 0.0
        %5604 = vmatpush1.xpose.msra.mxu0 %v2972
        %5605 = vmatprep.subr.mxu0 0.0
        %5606 = vmatpush1.xpose.msra.mxu0 %v2969
        %5607 = vmatprep.subr.mxu0 0.0
        %5608 = vmatpush1.xpose.msra.mxu0 %v2966
        %5609 = vmatprep.subr.mxu0 0.0
        %5610 = vmatpush1.xpose.msra.mxu0 %v2963
        %5611 = vmatprep.subr.mxu0 0.0
        %5612 = vmatpush1.xpose.msra.mxu0 %v2960
        %5613 = vmatprep.subr.mxu0 0.0
        %5614 = vmatpush2.xpose.msra.mxu0 %v3053
        %5615 = vmatprep.subr.mxu0 0.0
        %5616 = vmatpush2.xpose.msra.mxu0 %v3050
        %5617 = vmatprep.subr.mxu0 0.0
        %5618 = vmatpush2.xpose.msra.mxu0 %v3047
        %5619 = vmatprep.subr.mxu0 0.0
        %5620 = vmatpush2.xpose.msra.mxu0 %v3044
        %5621 = vmatprep.subr.mxu0 0.0
        %5622 = vmatpush2.xpose.msra.mxu0 %v3041
        %5623 = vmatprep.subr.mxu0 0.0
        %5624 = vmatpush2.xpose.msra.mxu0 %v3038
        %5625 = vmatprep.subr.mxu0 0.0
        %5626 = vmatpush2.xpose.msra.mxu0 %v3035
        %5627 = vmatprep.subr.mxu0 0.0
        %5628 = vmatpush2.xpose.msra.mxu0 %v3032
        %5629 = vmatprep.subr.mxu0 0.0
        %5630 = vmatpush2.xpose.msra.mxu0 %v3029
        %5631 = vmatprep.subr.mxu0 0.0
        %5632 = vmatpush2.xpose.msra.mxu0 %v3026
        %5633 = vmatprep.subr.mxu0 0.0
        %5634 = vmatpush2.xpose.msra.mxu0 %v3023
        %5635 = vmatprep.subr.mxu0 0.0
        %5636 = vmatpush2.xpose.msra.mxu0 %v3020
        %5637 = vmatprep.subr.mxu0 0.0
        %5638 = vmatpush2.xpose.msra.mxu0 %v3017
        %5639 = vmatprep.subr.mxu0 0.0
        %5640 = vmatpush2.xpose.msra.mxu0 %v3014
        %5641 = vmatprep.subr.mxu0 0.0
        %5642 = vmatpush2.xpose.msra.mxu0 %v3011
        %5643 = vmatprep.subr.mxu0 0.0
        %5644 = vmatpush2.xpose.msra.mxu0 %v3008
        %5645 = vmatprep.mubr.f32.mxu0 0.0
        %5646 = vmatmul.mubr.f32.gmra.mxu0 %v1229
        %v5647 = vpop.f32.mrf.mxu0
        %v5648 = vadd.f32 %v1225, %v5647
        %v5649 = vpop.f32.mrf.mxu0
        %v5650 = vadd.f32 %v1225, %v5649
        %5651 = vdwg.mxu0
        %5652 = vmatprep.subr.mxu0 0.0
        %5653 = vmatpush1.xpose.msra.mxu0 %v3101
        %5654 = vmatprep.subr.mxu0 0.0
        %5655 = vmatpush1.xpose.msra.mxu0 %v3098
        %5656 = vmatprep.subr.mxu0 0.0
        %5657 = vmatpush1.xpose.msra.mxu0 %v3095
        %5658 = vmatprep.subr.mxu0 0.0
        %5659 = vmatpush1.xpose.msra.mxu0 %v3092
        %5660 = vmatprep.subr.mxu0 0.0
        %5661 = vmatpush1.xpose.msra.mxu0 %v3089
        %5662 = vmatprep.subr.mxu0 0.0
        %5663 = vmatpush1.xpose.msra.mxu0 %v3086
        %5664 = vmatprep.subr.mxu0 0.0
        %5665 = vmatpush1.xpose.msra.mxu0 %v3083
        %5666 = vmatprep.subr.mxu0 0.0
        %5667 = vmatpush1.xpose.msra.mxu0 %v3080
        %5668 = vmatprep.subr.mxu0 0.0
        %5669 = vmatpush1.xpose.msra.mxu0 %v3077
        %5670 = vmatprep.subr.mxu0 0.0
        %5671 = vmatpush1.xpose.msra.mxu0 %v3074
        %5672 = vmatprep.subr.mxu0 0.0
        %5673 = vmatpush1.xpose.msra.mxu0 %v3071
        %5674 = vmatprep.subr.mxu0 0.0
        %5675 = vmatpush1.xpose.msra.mxu0 %v3068
        %5676 = vmatprep.subr.mxu0 0.0
        %5677 = vmatpush1.xpose.msra.mxu0 %v3065
        %5678 = vmatprep.subr.mxu0 0.0
        %5679 = vmatpush1.xpose.msra.mxu0 %v3062
        %5680 = vmatprep.subr.mxu0 0.0
        %5681 = vmatpush1.xpose.msra.mxu0 %v3059
        %5682 = vmatprep.subr.mxu0 0.0
        %5683 = vmatpush1.xpose.msra.mxu0 %v3056
        %5684 = vmatprep.subr.mxu0 0.0
        %5685 = vmatpush2.xpose.msra.mxu0 %v3149
        %5686 = vmatprep.subr.mxu0 0.0
        %5687 = vmatpush2.xpose.msra.mxu0 %v3146
        %5688 = vmatprep.subr.mxu0 0.0
        %5689 = vmatpush2.xpose.msra.mxu0 %v3143
        %5690 = vmatprep.subr.mxu0 0.0
        %5691 = vmatpush2.xpose.msra.mxu0 %v3140
        %5692 = vmatprep.subr.mxu0 0.0
        %5693 = vmatpush2.xpose.msra.mxu0 %v3137
        %5694 = vmatprep.subr.mxu0 0.0
        %5695 = vmatpush2.xpose.msra.mxu0 %v3134
        %5696 = vmatprep.subr.mxu0 0.0
        %5697 = vmatpush2.xpose.msra.mxu0 %v3131
        %5698 = vmatprep.subr.mxu0 0.0
        %5699 = vmatpush2.xpose.msra.mxu0 %v3128
        %5700 = vmatprep.subr.mxu0 0.0
        %5701 = vmatpush2.xpose.msra.mxu0 %v3125
        %5702 = vmatprep.subr.mxu0 0.0
        %5703 = vmatpush2.xpose.msra.mxu0 %v3122
        %5704 = vmatprep.subr.mxu0 0.0
        %5705 = vmatpush2.xpose.msra.mxu0 %v3119
        %5706 = vmatprep.subr.mxu0 0.0
        %5707 = vmatpush2.xpose.msra.mxu0 %v3116
        %5708 = vmatprep.subr.mxu0 0.0
        %5709 = vmatpush2.xpose.msra.mxu0 %v3113
        %5710 = vmatprep.subr.mxu0 0.0
        %5711 = vmatpush2.xpose.msra.mxu0 %v3110
        %5712 = vmatprep.subr.mxu0 0.0
        %5713 = vmatpush2.xpose.msra.mxu0 %v3107
        %5714 = vmatprep.subr.mxu0 0.0
        %5715 = vmatpush2.xpose.msra.mxu0 %v3104
        %5716 = vmatprep.mubr.f32.mxu0 0.0
        %5717 = vmatmul.mubr.f32.gmra.mxu0 %v1229
        %v5718 = vpop.f32.mrf.mxu0
        %v5719 = vadd.f32 %v1225, %v5718
        %v5720 = vpop.f32.mrf.mxu0
        %v5721 = vadd.f32 %v1225, %v5720
        %5722 = vdwg.mxu0
        %5723 = vmatprep.subr.mxu0 0.0
        %5724 = vmatpush1.xpose.msra.mxu0 %v3197
        %5725 = vmatprep.subr.mxu0 0.0
        %5726 = vmatpush1.xpose.msra.mxu0 %v3194
        %5727 = vmatprep.subr.mxu0 0.0
        %5728 = vmatpush1.xpose.msra.mxu0 %v3191
        %5729 = vmatprep.subr.mxu0 0.0
        %5730 = vmatpush1.xpose.msra.mxu0 %v3188
        %5731 = vmatprep.subr.mxu0 0.0
        %5732 = vmatpush1.xpose.msra.mxu0 %v3185
        %5733 = vmatprep.subr.mxu0 0.0
        %5734 = vmatpush1.xpose.msra.mxu0 %v3182
        %5735 = vmatprep.subr.mxu0 0.0
        %5736 = vmatpush1.xpose.msra.mxu0 %v3179
        %5737 = vmatprep.subr.mxu0 0.0
        %5738 = vmatpush1.xpose.msra.mxu0 %v3176
        %5739 = vmatprep.subr.mxu0 0.0
        %5740 = vmatpush1.xpose.msra.mxu0 %v3173
        %5741 = vmatprep.subr.mxu0 0.0
        %5742 = vmatpush1.xpose.msra.mxu0 %v3170
        %5743 = vmatprep.subr.mxu0 0.0
        %5744 = vmatpush1.xpose.msra.mxu0 %v3167
        %5745 = vmatprep.subr.mxu0 0.0
        %5746 = vmatpush1.xpose.msra.mxu0 %v3164
        %5747 = vmatprep.subr.mxu0 0.0
        %5748 = vmatpush1.xpose.msra.mxu0 %v3161
        %5749 = vmatprep.subr.mxu0 0.0
        %5750 = vmatpush1.xpose.msra.mxu0 %v3158
        %5751 = vmatprep.subr.mxu0 0.0
        %5752 = vmatpush1.xpose.msra.mxu0 %v3155
        %5753 = vmatprep.subr.mxu0 0.0
        %5754 = vmatpush1.xpose.msra.mxu0 %v3152
        %5755 = vmatprep.subr.mxu0 0.0
        %5756 = vmatpush2.xpose.msra.mxu0 %v3245
        %5757 = vmatprep.subr.mxu0 0.0
        %5758 = vmatpush2.xpose.msra.mxu0 %v3242
        %5759 = vmatprep.subr.mxu0 0.0
        %5760 = vmatpush2.xpose.msra.mxu0 %v3239
        %5761 = vmatprep.subr.mxu0 0.0
        %5762 = vmatpush2.xpose.msra.mxu0 %v3236
        %5763 = vmatprep.subr.mxu0 0.0
        %5764 = vmatpush2.xpose.msra.mxu0 %v3233
        %5765 = vmatprep.subr.mxu0 0.0
        %5766 = vmatpush2.xpose.msra.mxu0 %v3230
        %5767 = vmatprep.subr.mxu0 0.0
        %5768 = vmatpush2.xpose.msra.mxu0 %v3227
        %5769 = vmatprep.subr.mxu0 0.0
        %5770 = vmatpush2.xpose.msra.mxu0 %v3224
        %5771 = vmatprep.subr.mxu0 0.0
        %5772 = vmatpush2.xpose.msra.mxu0 %v3221
        %5773 = vmatprep.subr.mxu0 0.0
        %5774 = vmatpush2.xpose.msra.mxu0 %v3218
        %5775 = vmatprep.subr.mxu0 0.0
        %5776 = vmatpush2.xpose.msra.mxu0 %v3215
        %5777 = vmatprep.subr.mxu0 0.0
        %5778 = vmatpush2.xpose.msra.mxu0 %v3212
        %5779 = vmatprep.subr.mxu0 0.0
        %5780 = vmatpush2.xpose.msra.mxu0 %v3209
        %5781 = vmatprep.subr.mxu0 0.0
        %5782 = vmatpush2.xpose.msra.mxu0 %v3206
        %5783 = vmatprep.subr.mxu0 0.0
        %5784 = vmatpush2.xpose.msra.mxu0 %v3203
        %5785 = vmatprep.subr.mxu0 0.0
        %5786 = vmatpush2.xpose.msra.mxu0 %v3200
        %5787 = vmatprep.mubr.f32.mxu0 0.0
        %5788 = vmatmul.mubr.f32.gmra.mxu0 %v1229
        %v5789 = vpop.f32.mrf.mxu0
        %v5790 = vadd.f32 %v1225, %v5789
        %v5791 = vpop.f32.mrf.mxu0
        %v5792 = vadd.f32 %v1225, %v5791
        %5793 = vdwg.mxu0
        %5794 = vmatprep.subr.mxu0 0.0
        %5795 = vmatpush1.xpose.msra.mxu0 %v3293
        %5796 = vmatprep.subr.mxu0 0.0
        %5797 = vmatpush1.xpose.msra.mxu0 %v3290
        %5798 = vmatprep.subr.mxu0 0.0
        %5799 = vmatpush1.xpose.msra.mxu0 %v3287
        %5800 = vmatprep.subr.mxu0 0.0
        %5801 = vmatpush1.xpose.msra.mxu0 %v3284
        %5802 = vmatprep.subr.mxu0 0.0
        %5803 = vmatpush1.xpose.msra.mxu0 %v3281
        %5804 = vmatprep.subr.mxu0 0.0
        %5805 = vmatpush1.xpose.msra.mxu0 %v3278
        %5806 = vmatprep.subr.mxu0 0.0
        %5807 = vmatpush1.xpose.msra.mxu0 %v3275
        %5808 = vmatprep.subr.mxu0 0.0
        %5809 = vmatpush1.xpose.msra.mxu0 %v3272
        %5810 = vmatprep.subr.mxu0 0.0
        %5811 = vmatpush1.xpose.msra.mxu0 %v3269
        %5812 = vmatprep.subr.mxu0 0.0
        %5813 = vmatpush1.xpose.msra.mxu0 %v3266
        %5814 = vmatprep.subr.mxu0 0.0
        %5815 = vmatpush1.xpose.msra.mxu0 %v3263
        %5816 = vmatprep.subr.mxu0 0.0
        %5817 = vmatpush1.xpose.msra.mxu0 %v3260
        %5818 = vmatprep.subr.mxu0 0.0
        %5819 = vmatpush1.xpose.msra.mxu0 %v3257
        %5820 = vmatprep.subr.mxu0 0.0
        %5821 = vmatpush1.xpose.msra.mxu0 %v3254
        %5822 = vmatprep.subr.mxu0 0.0
        %5823 = vmatpush1.xpose.msra.mxu0 %v3251
        %5824 = vmatprep.subr.mxu0 0.0
        %5825 = vmatpush1.xpose.msra.mxu0 %v3248
        %5826 = vmatprep.subr.mxu0 0.0
        %5827 = vmatpush2.xpose.msra.mxu0 %v3341
        %5828 = vmatprep.subr.mxu0 0.0
        %5829 = vmatpush2.xpose.msra.mxu0 %v3338
        %5830 = vmatprep.subr.mxu0 0.0
        %5831 = vmatpush2.xpose.msra.mxu0 %v3335
        %5832 = vmatprep.subr.mxu0 0.0
        %5833 = vmatpush2.xpose.msra.mxu0 %v3332
        %5834 = vmatprep.subr.mxu0 0.0
        %5835 = vmatpush2.xpose.msra.mxu0 %v3329
        %5836 = vmatprep.subr.mxu0 0.0
        %5837 = vmatpush2.xpose.msra.mxu0 %v3326
        %5838 = vmatprep.subr.mxu0 0.0
        %5839 = vmatpush2.xpose.msra.mxu0 %v3323
        %5840 = vmatprep.subr.mxu0 0.0
        %5841 = vmatpush2.xpose.msra.mxu0 %v3320
        %5842 = vmatprep.subr.mxu0 0.0
        %5843 = vmatpush2.xpose.msra.mxu0 %v3317
        %5844 = vmatprep.subr.mxu0 0.0
        %5845 = vmatpush2.xpose.msra.mxu0 %v3314
        %5846 = vmatprep.subr.mxu0 0.0
        %5847 = vmatpush2.xpose.msra.mxu0 %v3311
        %5848 = vmatprep.subr.mxu0 0.0
        %5849 = vmatpush2.xpose.msra.mxu0 %v3308
        %5850 = vmatprep.subr.mxu0 0.0
        %5851 = vmatpush2.xpose.msra.mxu0 %v3305
        %5852 = vmatprep.subr.mxu0 0.0
        %5853 = vmatpush2.xpose.msra.mxu0 %v3302
        %5854 = vmatprep.subr.mxu0 0.0
        %5855 = vmatpush2.xpose.msra.mxu0 %v3299
        %5856 = vmatprep.subr.mxu0 0.0
        %5857 = vmatpush2.xpose.msra.mxu0 %v3296
        %5858 = vmatprep.mubr.f32.mxu0 0.0
        %5859 = vmatmul.mubr.f32.gmra.mxu0 %v1229
        %v5860 = vpop.f32.mrf.mxu0
        %v5861 = vadd.f32 %v1225, %v5860
        %v5862 = vpop.f32.mrf.mxu0
        %v5863 = vadd.f32 %v1225, %v5862
        %5864 = vdwg.mxu0
        %5865 = vmatprep.subr.mxu0 0.0
        %5866 = vmatpush1.xpose.msra.mxu0 %v3389
        %5867 = vmatprep.subr.mxu0 0.0
        %5868 = vmatpush1.xpose.msra.mxu0 %v3386
        %5869 = vmatprep.subr.mxu0 0.0
        %5870 = vmatpush1.xpose.msra.mxu0 %v3383
        %5871 = vmatprep.subr.mxu0 0.0
        %5872 = vmatpush1.xpose.msra.mxu0 %v3380
        %5873 = vmatprep.subr.mxu0 0.0
        %5874 = vmatpush1.xpose.msra.mxu0 %v3377
        %5875 = vmatprep.subr.mxu0 0.0
        %5876 = vmatpush1.xpose.msra.mxu0 %v3374
        %5877 = vmatprep.subr.mxu0 0.0
        %5878 = vmatpush1.xpose.msra.mxu0 %v3371
        %5879 = vmatprep.subr.mxu0 0.0
        %5880 = vmatpush1.xpose.msra.mxu0 %v3368
        %5881 = vmatprep.subr.mxu0 0.0
        %5882 = vmatpush1.xpose.msra.mxu0 %v3365
        %5883 = vmatprep.subr.mxu0 0.0
        %5884 = vmatpush1.xpose.msra.mxu0 %v3362
        %5885 = vmatprep.subr.mxu0 0.0
        %5886 = vmatpush1.xpose.msra.mxu0 %v3359
        %5887 = vmatprep.subr.mxu0 0.0
        %5888 = vmatpush1.xpose.msra.mxu0 %v3356
        %5889 = vmatprep.subr.mxu0 0.0
        %5890 = vmatpush1.xpose.msra.mxu0 %v3353
        %5891 = vmatprep.subr.mxu0 0.0
        %5892 = vmatpush1.xpose.msra.mxu0 %v3350
        %5893 = vmatprep.subr.mxu0 0.0
        %5894 = vmatpush1.xpose.msra.mxu0 %v3347
        %5895 = vmatprep.subr.mxu0 0.0
        %5896 = vmatpush1.xpose.msra.mxu0 %v3344
        %5897 = vmatprep.subr.mxu0 0.0
        %5898 = vmatpush2.xpose.msra.mxu0 %v3437
        %5899 = vmatprep.subr.mxu0 0.0
        %5900 = vmatpush2.xpose.msra.mxu0 %v3434
        %5901 = vmatprep.subr.mxu0 0.0
        %5902 = vmatpush2.xpose.msra.mxu0 %v3431
        %5903 = vmatprep.subr.mxu0 0.0
        %5904 = vmatpush2.xpose.msra.mxu0 %v3428
        %5905 = vmatprep.subr.mxu0 0.0
        %5906 = vmatpush2.xpose.msra.mxu0 %v3425
        %5907 = vmatprep.subr.mxu0 0.0
        %5908 = vmatpush2.xpose.msra.mxu0 %v3422
        %5909 = vmatprep.subr.mxu0 0.0
        %5910 = vmatpush2.xpose.msra.mxu0 %v3419
        %5911 = vmatprep.subr.mxu0 0.0
        %5912 = vmatpush2.xpose.msra.mxu0 %v3416
        %5913 = vmatprep.subr.mxu0 0.0
        %5914 = vmatpush2.xpose.msra.mxu0 %v3413
        %5915 = vmatprep.subr.mxu0 0.0
        %5916 = vmatpush2.xpose.msra.mxu0 %v3410
        %5917 = vmatprep.subr.mxu0 0.0
        %5918 = vmatpush2.xpose.msra.mxu0 %v3407
        %5919 = vmatprep.subr.mxu0 0.0
        %5920 = vmatpush2.xpose.msra.mxu0 %v3404
        %5921 = vmatprep.subr.mxu0 0.0
        %5922 = vmatpush2.xpose.msra.mxu0 %v3401
        %5923 = vmatprep.subr.mxu0 0.0
        %5924 = vmatpush2.xpose.msra.mxu0 %v3398
        %5925 = vmatprep.subr.mxu0 0.0
        %5926 = vmatpush2.xpose.msra.mxu0 %v3395
        %5927 = vmatprep.subr.mxu0 0.0
        %5928 = vmatpush2.xpose.msra.mxu0 %v3392
        %5929 = vmatprep.mubr.f32.mxu0 0.0
        %5930 = vmatmul.mubr.f32.gmra.mxu0 %v1229
        %v5931 = vpop.f32.mrf.mxu0
        %v5932 = vadd.f32 %v1225, %v5931
        %v5933 = vpop.f32.mrf.mxu0
        %v5934 = vadd.f32 %v1225, %v5933
        %5935 = vdwg.mxu0
        %5936 = vmatprep.subr.mxu0 0.0
        %5937 = vmatpush1.xpose.msra.mxu0 %v3485
        %5938 = vmatprep.subr.mxu0 0.0
        %5939 = vmatpush1.xpose.msra.mxu0 %v3482
        %5940 = vmatprep.subr.mxu0 0.0
        %5941 = vmatpush1.xpose.msra.mxu0 %v3479
        %5942 = vmatprep.subr.mxu0 0.0
        %5943 = vmatpush1.xpose.msra.mxu0 %v3476
        %5944 = vmatprep.subr.mxu0 0.0
        %5945 = vmatpush1.xpose.msra.mxu0 %v3473
        %5946 = vmatprep.subr.mxu0 0.0
        %5947 = vmatpush1.xpose.msra.mxu0 %v3470
        %5948 = vmatprep.subr.mxu0 0.0
        %5949 = vmatpush1.xpose.msra.mxu0 %v3467
        %5950 = vmatprep.subr.mxu0 0.0
        %5951 = vmatpush1.xpose.msra.mxu0 %v3464
        %5952 = vmatprep.subr.mxu0 0.0
        %5953 = vmatpush1.xpose.msra.mxu0 %v3461
        %5954 = vmatprep.subr.mxu0 0.0
        %5955 = vmatpush1.xpose.msra.mxu0 %v3458
        %5956 = vmatprep.subr.mxu0 0.0
        %5957 = vmatpush1.xpose.msra.mxu0 %v3455
        %5958 = vmatprep.subr.mxu0 0.0
        %5959 = vmatpush1.xpose.msra.mxu0 %v3452
        %5960 = vmatprep.subr.mxu0 0.0
        %5961 = vmatpush1.xpose.msra.mxu0 %v3449
        %5962 = vmatprep.subr.mxu0 0.0
        %5963 = vmatpush1.xpose.msra.mxu0 %v3446
        %5964 = vmatprep.subr.mxu0 0.0
        %5965 = vmatpush1.xpose.msra.mxu0 %v3443
        %5966 = vmatprep.subr.mxu0 0.0
        %5967 = vmatpush1.xpose.msra.mxu0 %v3440
        %5968 = vmatprep.subr.mxu0 0.0
        %5969 = vmatpush2.xpose.msra.mxu0 %v3533
        %5970 = vmatprep.subr.mxu0 0.0
        %5971 = vmatpush2.xpose.msra.mxu0 %v3530
        %5972 = vmatprep.subr.mxu0 0.0
        %5973 = vmatpush2.xpose.msra.mxu0 %v3527
        %5974 = vmatprep.subr.mxu0 0.0
        %5975 = vmatpush2.xpose.msra.mxu0 %v3524
        %5976 = vmatprep.subr.mxu0 0.0
        %5977 = vmatpush2.xpose.msra.mxu0 %v3521
        %5978 = vmatprep.subr.mxu0 0.0
        %5979 = vmatpush2.xpose.msra.mxu0 %v3518
        %5980 = vmatprep.subr.mxu0 0.0
        %5981 = vmatpush2.xpose.msra.mxu0 %v3515
        %5982 = vmatprep.subr.mxu0 0.0
        %5983 = vmatpush2.xpose.msra.mxu0 %v3512
        %5984 = vmatprep.subr.mxu0 0.0
        %5985 = vmatpush2.xpose.msra.mxu0 %v3509
        %5986 = vmatprep.subr.mxu0 0.0
        %5987 = vmatpush2.xpose.msra.mxu0 %v3506
        %5988 = vmatprep.subr.mxu0 0.0
        %5989 = vmatpush2.xpose.msra.mxu0 %v3503
        %5990 = vmatprep.subr.mxu0 0.0
        %5991 = vmatpush2.xpose.msra.mxu0 %v3500
        %5992 = vmatprep.subr.mxu0 0.0
        %5993 = vmatpush2.xpose.msra.mxu0 %v3497
        %5994 = vmatprep.subr.mxu0 0.0
        %5995 = vmatpush2.xpose.msra.mxu0 %v3494
        %5996 = vmatprep.subr.mxu0 0.0
        %5997 = vmatpush2.xpose.msra.mxu0 %v3491
        %5998 = vmatprep.subr.mxu0 0.0
        %5999 = vmatpush2.xpose.msra.mxu0 %v3488
        %6000 = vmatprep.mubr.f32.mxu0 0.0
        %6001 = vmatmul.mubr.f32.gmra.mxu0 %v1229
        %v6002 = vpop.f32.mrf.mxu0
        %v6003 = vadd.f32 %v1225, %v6002
        %v6004 = vpop.f32.mrf.mxu0
        %v6005 = vadd.f32 %v1225, %v6004
        %6006 = vdwg.mxu0
        %6007 = vmatprep.subr.mxu0 0.0
        %6008 = vmatpush1.xpose.msra.mxu0 %v3581
        %6009 = vmatprep.subr.mxu0 0.0
        %6010 = vmatpush1.xpose.msra.mxu0 %v3578
        %6011 = vmatprep.subr.mxu0 0.0
        %6012 = vmatpush1.xpose.msra.mxu0 %v3575
        %6013 = vmatprep.subr.mxu0 0.0
        %6014 = vmatpush1.xpose.msra.mxu0 %v3572
        %6015 = vmatprep.subr.mxu0 0.0
        %6016 = vmatpush1.xpose.msra.mxu0 %v3569
        %6017 = vmatprep.subr.mxu0 0.0
        %6018 = vmatpush1.xpose.msra.mxu0 %v3566
        %6019 = vmatprep.subr.mxu0 0.0
        %6020 = vmatpush1.xpose.msra.mxu0 %v3563
        %6021 = vmatprep.subr.mxu0 0.0
        %6022 = vmatpush1.xpose.msra.mxu0 %v3560
        %6023 = vmatprep.subr.mxu0 0.0
        %6024 = vmatpush1.xpose.msra.mxu0 %v3557
        %6025 = vmatprep.subr.mxu0 0.0
        %6026 = vmatpush1.xpose.msra.mxu0 %v3554
        %6027 = vmatprep.subr.mxu0 0.0
        %6028 = vmatpush1.xpose.msra.mxu0 %v3551
        %6029 = vmatprep.subr.mxu0 0.0
        %6030 = vmatpush1.xpose.msra.mxu0 %v3548
        %6031 = vmatprep.subr.mxu0 0.0
        %6032 = vmatpush1.xpose.msra.mxu0 %v3545
        %6033 = vmatprep.subr.mxu0 0.0
        %6034 = vmatpush1.xpose.msra.mxu0 %v3542
        %6035 = vmatprep.subr.mxu0 0.0
        %6036 = vmatpush1.xpose.msra.mxu0 %v3539
        %6037 = vmatprep.subr.mxu0 0.0
        %6038 = vmatpush1.xpose.msra.mxu0 %v3536
        %6039 = vmatprep.subr.mxu0 0.0
        %6040 = vmatpush2.xpose.msra.mxu0 %v3629
        %6041 = vmatprep.subr.mxu0 0.0
        %6042 = vmatpush2.xpose.msra.mxu0 %v3626
        %6043 = vmatprep.subr.mxu0 0.0
        %6044 = vmatpush2.xpose.msra.mxu0 %v3623
        %6045 = vmatprep.subr.mxu0 0.0
        %6046 = vmatpush2.xpose.msra.mxu0 %v3620
        %6047 = vmatprep.subr.mxu0 0.0
        %6048 = vmatpush2.xpose.msra.mxu0 %v3617
        %6049 = vmatprep.subr.mxu0 0.0
        %6050 = vmatpush2.xpose.msra.mxu0 %v3614
        %6051 = vmatprep.subr.mxu0 0.0
        %6052 = vmatpush2.xpose.msra.mxu0 %v3611
        %6053 = vmatprep.subr.mxu0 0.0
        %6054 = vmatpush2.xpose.msra.mxu0 %v3608
        %6055 = vmatprep.subr.mxu0 0.0
        %6056 = vmatpush2.xpose.msra.mxu0 %v3605
        %6057 = vmatprep.subr.mxu0 0.0
        %6058 = vmatpush2.xpose.msra.mxu0 %v3602
        %6059 = vmatprep.subr.mxu0 0.0
        %6060 = vmatpush2.xpose.msra.mxu0 %v3599
        %6061 = vmatprep.subr.mxu0 0.0
        %6062 = vmatpush2.xpose.msra.mxu0 %v3596
        %6063 = vmatprep.subr.mxu0 0.0
        %6064 = vmatpush2.xpose.msra.mxu0 %v3593
        %6065 = vmatprep.subr.mxu0 0.0
        %6066 = vmatpush2.xpose.msra.mxu0 %v3590
        %6067 = vmatprep.subr.mxu0 0.0
        %6068 = vmatpush2.xpose.msra.mxu0 %v3587
        %6069 = vmatprep.subr.mxu0 0.0
        %6070 = vmatpush2.xpose.msra.mxu0 %v3584
        %6071 = vmatprep.mubr.f32.mxu0 0.0
        %6072 = vmatmul.mubr.f32.gmra.mxu0 %v1229
        %v6073 = vpop.f32.mrf.mxu0
        %v6074 = vadd.f32 %v1225, %v6073
        %v6075 = vpop.f32.mrf.mxu0
        %v6076 = vadd.f32 %v1225, %v6075
        %6077 = vdwg.mxu0
        %6078 = vmatprep.subr.mxu0 0.0
        %6079 = vmatpush1.xpose.msra.mxu0 %v3677
        %6080 = vmatprep.subr.mxu0 0.0
        %6081 = vmatpush1.xpose.msra.mxu0 %v3674
        %6082 = vmatprep.subr.mxu0 0.0
        %6083 = vmatpush1.xpose.msra.mxu0 %v3671
        %6084 = vmatprep.subr.mxu0 0.0
        %6085 = vmatpush1.xpose.msra.mxu0 %v3668
        %6086 = vmatprep.subr.mxu0 0.0
        %6087 = vmatpush1.xpose.msra.mxu0 %v3665
        %6088 = vmatprep.subr.mxu0 0.0
        %6089 = vmatpush1.xpose.msra.mxu0 %v3662
        %6090 = vmatprep.subr.mxu0 0.0
        %6091 = vmatpush1.xpose.msra.mxu0 %v3659
        %6092 = vmatprep.subr.mxu0 0.0
        %6093 = vmatpush1.xpose.msra.mxu0 %v3656
        %6094 = vmatprep.subr.mxu0 0.0
        %6095 = vmatpush1.xpose.msra.mxu0 %v3653
        %6096 = vmatprep.subr.mxu0 0.0
        %6097 = vmatpush1.xpose.msra.mxu0 %v3650
        %6098 = vmatprep.subr.mxu0 0.0
        %6099 = vmatpush1.xpose.msra.mxu0 %v3647
        %6100 = vmatprep.subr.mxu0 0.0
        %6101 = vmatpush1.xpose.msra.mxu0 %v3644
        %6102 = vmatprep.subr.mxu0 0.0
        %6103 = vmatpush1.xpose.msra.mxu0 %v3641
        %6104 = vmatprep.subr.mxu0 0.0
        %6105 = vmatpush1.xpose.msra.mxu0 %v3638
        %6106 = vmatprep.subr.mxu0 0.0
        %6107 = vmatpush1.xpose.msra.mxu0 %v3635
        %6108 = vmatprep.subr.mxu0 0.0
        %6109 = vmatpush1.xpose.msra.mxu0 %v3632
        %6110 = vmatprep.subr.mxu0 0.0
        %6111 = vmatpush2.xpose.msra.mxu0 %v3725
        %6112 = vmatprep.subr.mxu0 0.0
        %6113 = vmatpush2.xpose.msra.mxu0 %v3722
        %6114 = vmatprep.subr.mxu0 0.0
        %6115 = vmatpush2.xpose.msra.mxu0 %v3719
        %6116 = vmatprep.subr.mxu0 0.0
        %6117 = vmatpush2.xpose.msra.mxu0 %v3716
        %6118 = vmatprep.subr.mxu0 0.0
        %6119 = vmatpush2.xpose.msra.mxu0 %v3713
        %6120 = vmatprep.subr.mxu0 0.0
        %6121 = vmatpush2.xpose.msra.mxu0 %v3710
        %6122 = vmatprep.subr.mxu0 0.0
        %6123 = vmatpush2.xpose.msra.mxu0 %v3707
        %6124 = vmatprep.subr.mxu0 0.0
        %6125 = vmatpush2.xpose.msra.mxu0 %v3704
        %6126 = vmatprep.subr.mxu0 0.0
        %6127 = vmatpush2.xpose.msra.mxu0 %v3701
        %6128 = vmatprep.subr.mxu0 0.0
        %6129 = vmatpush2.xpose.msra.mxu0 %v3698
        %6130 = vmatprep.subr.mxu0 0.0
        %6131 = vmatpush2.xpose.msra.mxu0 %v3695
        %6132 = vmatprep.subr.mxu0 0.0
        %6133 = vmatpush2.xpose.msra.mxu0 %v3692
        %6134 = vmatprep.subr.mxu0 0.0
        %6135 = vmatpush2.xpose.msra.mxu0 %v3689
        %6136 = vmatprep.subr.mxu0 0.0
        %6137 = vmatpush2.xpose.msra.mxu0 %v3686
        %6138 = vmatprep.subr.mxu0 0.0
        %6139 = vmatpush2.xpose.msra.mxu0 %v3683
        %6140 = vmatprep.subr.mxu0 0.0
        %6141 = vmatpush2.xpose.msra.mxu0 %v3680
        %6142 = vmatprep.mubr.f32.mxu0 0.0
        %6143 = vmatmul.mubr.f32.gmra.mxu0 %v1229
        %v6144 = vpop.f32.mrf.mxu0
        %v6145 = vadd.f32 %v1225, %v6144
        %v6146 = vpop.f32.mrf.mxu0
        %v6147 = vadd.f32 %v1225, %v6146
        %6148 = vdwg.mxu0
        %6149 = vmatprep.subr.mxu0 0.0
        %6150 = vmatpush1.xpose.msra.mxu0 %v3773
        %6151 = vmatprep.subr.mxu0 0.0
        %6152 = vmatpush1.xpose.msra.mxu0 %v3770
        %6153 = vmatprep.subr.mxu0 0.0
        %6154 = vmatpush1.xpose.msra.mxu0 %v3767
        %6155 = vmatprep.subr.mxu0 0.0
        %6156 = vmatpush1.xpose.msra.mxu0 %v3764
        %6157 = vmatprep.subr.mxu0 0.0
        %6158 = vmatpush1.xpose.msra.mxu0 %v3761
        %6159 = vmatprep.subr.mxu0 0.0
        %6160 = vmatpush1.xpose.msra.mxu0 %v3758
        %6161 = vmatprep.subr.mxu0 0.0
        %6162 = vmatpush1.xpose.msra.mxu0 %v3755
        %6163 = vmatprep.subr.mxu0 0.0
        %6164 = vmatpush1.xpose.msra.mxu0 %v3752
        %6165 = vmatprep.subr.mxu0 0.0
        %6166 = vmatpush1.xpose.msra.mxu0 %v3749
        %6167 = vmatprep.subr.mxu0 0.0
        %6168 = vmatpush1.xpose.msra.mxu0 %v3746
        %6169 = vmatprep.subr.mxu0 0.0
        %6170 = vmatpush1.xpose.msra.mxu0 %v3743
        %6171 = vmatprep.subr.mxu0 0.0
        %6172 = vmatpush1.xpose.msra.mxu0 %v3740
        %6173 = vmatprep.subr.mxu0 0.0
        %6174 = vmatpush1.xpose.msra.mxu0 %v3737
        %6175 = vmatprep.subr.mxu0 0.0
        %6176 = vmatpush1.xpose.msra.mxu0 %v3734
        %6177 = vmatprep.subr.mxu0 0.0
        %6178 = vmatpush1.xpose.msra.mxu0 %v3731
        %6179 = vmatprep.subr.mxu0 0.0
        %6180 = vmatpush1.xpose.msra.mxu0 %v3728
        %6181 = vmatprep.subr.mxu0 0.0
        %6182 = vmatpush2.xpose.msra.mxu0 %v3821
        %6183 = vmatprep.subr.mxu0 0.0
        %6184 = vmatpush2.xpose.msra.mxu0 %v3818
        %6185 = vmatprep.subr.mxu0 0.0
        %6186 = vmatpush2.xpose.msra.mxu0 %v3815
        %6187 = vmatprep.subr.mxu0 0.0
        %6188 = vmatpush2.xpose.msra.mxu0 %v3812
        %6189 = vmatprep.subr.mxu0 0.0
        %6190 = vmatpush2.xpose.msra.mxu0 %v3809
        %6191 = vmatprep.subr.mxu0 0.0
        %6192 = vmatpush2.xpose.msra.mxu0 %v3806
        %6193 = vmatprep.subr.mxu0 0.0
        %6194 = vmatpush2.xpose.msra.mxu0 %v3803
        %6195 = vmatprep.subr.mxu0 0.0
        %6196 = vmatpush2.xpose.msra.mxu0 %v3800
        %6197 = vmatprep.subr.mxu0 0.0
        %6198 = vmatpush2.xpose.msra.mxu0 %v3797
        %6199 = vmatprep.subr.mxu0 0.0
        %6200 = vmatpush2.xpose.msra.mxu0 %v3794
        %6201 = vmatprep.subr.mxu0 0.0
        %6202 = vmatpush2.xpose.msra.mxu0 %v3791
        %6203 = vmatprep.subr.mxu0 0.0
        %6204 = vmatpush2.xpose.msra.mxu0 %v3788
        %6205 = vmatprep.subr.mxu0 0.0
        %6206 = vmatpush2.xpose.msra.mxu0 %v3785
        %6207 = vmatprep.subr.mxu0 0.0
        %6208 = vmatpush2.xpose.msra.mxu0 %v3782
        %6209 = vmatprep.subr.mxu0 0.0
        %6210 = vmatpush2.xpose.msra.mxu0 %v3779
        %6211 = vmatprep.subr.mxu0 0.0
        %6212 = vmatpush2.xpose.msra.mxu0 %v3776
        %6213 = vmatprep.mubr.f32.mxu0 0.0
        %6214 = vmatmul.mubr.f32.gmra.mxu0 %v1229
        %v6215 = vpop.f32.mrf.mxu0
        %v6216 = vadd.f32 %v1225, %v6215
        %v6217 = vpop.f32.mrf.mxu0
        %v6218 = vadd.f32 %v1225, %v6217
        %6219 = vdwg.mxu0
        %6220 = vmatprep.subr.mxu0 0.0
        %6221 = vmatpush1.xpose.msra.mxu0 %v3869
        %6222 = vmatprep.subr.mxu0 0.0
        %6223 = vmatpush1.xpose.msra.mxu0 %v3866
        %6224 = vmatprep.subr.mxu0 0.0
        %6225 = vmatpush1.xpose.msra.mxu0 %v3863
        %6226 = vmatprep.subr.mxu0 0.0
        %6227 = vmatpush1.xpose.msra.mxu0 %v3860
        %6228 = vmatprep.subr.mxu0 0.0
        %6229 = vmatpush1.xpose.msra.mxu0 %v3857
        %6230 = vmatprep.subr.mxu0 0.0
        %6231 = vmatpush1.xpose.msra.mxu0 %v3854
        %6232 = vmatprep.subr.mxu0 0.0
        %6233 = vmatpush1.xpose.msra.mxu0 %v3851
        %6234 = vmatprep.subr.mxu0 0.0
        %6235 = vmatpush1.xpose.msra.mxu0 %v3848
        %6236 = vmatprep.subr.mxu0 0.0
        %6237 = vmatpush1.xpose.msra.mxu0 %v3845
        %6238 = vmatprep.subr.mxu0 0.0
        %6239 = vmatpush1.xpose.msra.mxu0 %v3842
        %6240 = vmatprep.subr.mxu0 0.0
        %6241 = vmatpush1.xpose.msra.mxu0 %v3839
        %6242 = vmatprep.subr.mxu0 0.0
        %6243 = vmatpush1.xpose.msra.mxu0 %v3836
        %6244 = vmatprep.subr.mxu0 0.0
        %6245 = vmatpush1.xpose.msra.mxu0 %v3833
        %6246 = vmatprep.subr.mxu0 0.0
        %6247 = vmatpush1.xpose.msra.mxu0 %v3830
        %6248 = vmatprep.subr.mxu0 0.0
        %6249 = vmatpush1.xpose.msra.mxu0 %v3827
        %6250 = vmatprep.subr.mxu0 0.0
        %6251 = vmatpush1.xpose.msra.mxu0 %v3824
        %6252 = vmatprep.subr.mxu0 0.0
        %6253 = vmatpush2.xpose.msra.mxu0 %v3917
        %6254 = vmatprep.subr.mxu0 0.0
        %6255 = vmatpush2.xpose.msra.mxu0 %v3914
        %6256 = vmatprep.subr.mxu0 0.0
        %6257 = vmatpush2.xpose.msra.mxu0 %v3911
        %6258 = vmatprep.subr.mxu0 0.0
        %6259 = vmatpush2.xpose.msra.mxu0 %v3908
        %6260 = vmatprep.subr.mxu0 0.0
        %6261 = vmatpush2.xpose.msra.mxu0 %v3905
        %6262 = vmatprep.subr.mxu0 0.0
        %6263 = vmatpush2.xpose.msra.mxu0 %v3902
        %6264 = vmatprep.subr.mxu0 0.0
        %6265 = vmatpush2.xpose.msra.mxu0 %v3899
        %6266 = vmatprep.subr.mxu0 0.0
        %6267 = vmatpush2.xpose.msra.mxu0 %v3896
        %6268 = vmatprep.subr.mxu0 0.0
        %6269 = vmatpush2.xpose.msra.mxu0 %v3893
        %6270 = vmatprep.subr.mxu0 0.0
        %6271 = vmatpush2.xpose.msra.mxu0 %v3890
        %6272 = vmatprep.subr.mxu0 0.0
        %6273 = vmatpush2.xpose.msra.mxu0 %v3887
        %6274 = vmatprep.subr.mxu0 0.0
        %6275 = vmatpush2.xpose.msra.mxu0 %v3884
        %6276 = vmatprep.subr.mxu0 0.0
        %6277 = vmatpush2.xpose.msra.mxu0 %v3881
        %6278 = vmatprep.subr.mxu0 0.0
        %6279 = vmatpush2.xpose.msra.mxu0 %v3878
        %6280 = vmatprep.subr.mxu0 0.0
        %6281 = vmatpush2.xpose.msra.mxu0 %v3875
        %6282 = vmatprep.subr.mxu0 0.0
        %6283 = vmatpush2.xpose.msra.mxu0 %v3872
        %6284 = vmatprep.mubr.f32.mxu0 0.0
        %6285 = vmatmul.mubr.f32.gmra.mxu0 %v1229
        %v6286 = vpop.f32.mrf.mxu0
        %v6287 = vadd.f32 %v1225, %v6286
        %v6288 = vpop.f32.mrf.mxu0
        %v6289 = vadd.f32 %v1225, %v6288
        %6290 = vdwg.mxu0
        %6291 = vmatprep.subr.mxu0 0.0
        %6292 = vmatpush1.xpose.msra.mxu0 %v3965
        %6293 = vmatprep.subr.mxu0 0.0
        %6294 = vmatpush1.xpose.msra.mxu0 %v3962
        %6295 = vmatprep.subr.mxu0 0.0
        %6296 = vmatpush1.xpose.msra.mxu0 %v3959
        %6297 = vmatprep.subr.mxu0 0.0
        %6298 = vmatpush1.xpose.msra.mxu0 %v3956
        %6299 = vmatprep.subr.mxu0 0.0
        %6300 = vmatpush1.xpose.msra.mxu0 %v3953
        %6301 = vmatprep.subr.mxu0 0.0
        %6302 = vmatpush1.xpose.msra.mxu0 %v3950
        %6303 = vmatprep.subr.mxu0 0.0
        %6304 = vmatpush1.xpose.msra.mxu0 %v3947
        %6305 = vmatprep.subr.mxu0 0.0
        %6306 = vmatpush1.xpose.msra.mxu0 %v3944
        %6307 = vmatprep.subr.mxu0 0.0
        %6308 = vmatpush1.xpose.msra.mxu0 %v3941
        %6309 = vmatprep.subr.mxu0 0.0
        %6310 = vmatpush1.xpose.msra.mxu0 %v3938
        %6311 = vmatprep.subr.mxu0 0.0
        %6312 = vmatpush1.xpose.msra.mxu0 %v3935
        %6313 = vmatprep.subr.mxu0 0.0
        %6314 = vmatpush1.xpose.msra.mxu0 %v3932
        %6315 = vmatprep.subr.mxu0 0.0
        %6316 = vmatpush1.xpose.msra.mxu0 %v3929
        %6317 = vmatprep.subr.mxu0 0.0
        %6318 = vmatpush1.xpose.msra.mxu0 %v3926
        %6319 = vmatprep.subr.mxu0 0.0
        %6320 = vmatpush1.xpose.msra.mxu0 %v3923
        %6321 = vmatprep.subr.mxu0 0.0
        %6322 = vmatpush1.xpose.msra.mxu0 %v3920
        %6323 = vmatprep.subr.mxu0 0.0
        %6324 = vmatpush2.xpose.msra.mxu0 %v4013
        %6325 = vmatprep.subr.mxu0 0.0
        %6326 = vmatpush2.xpose.msra.mxu0 %v4010
        %6327 = vmatprep.subr.mxu0 0.0
        %6328 = vmatpush2.xpose.msra.mxu0 %v4007
        %6329 = vmatprep.subr.mxu0 0.0
        %6330 = vmatpush2.xpose.msra.mxu0 %v4004
        %6331 = vmatprep.subr.mxu0 0.0
        %6332 = vmatpush2.xpose.msra.mxu0 %v4001
        %6333 = vmatprep.subr.mxu0 0.0
        %6334 = vmatpush2.xpose.msra.mxu0 %v3998
        %6335 = vmatprep.subr.mxu0 0.0
        %6336 = vmatpush2.xpose.msra.mxu0 %v3995
        %6337 = vmatprep.subr.mxu0 0.0
        %6338 = vmatpush2.xpose.msra.mxu0 %v3992
        %6339 = vmatprep.subr.mxu0 0.0
        %6340 = vmatpush2.xpose.msra.mxu0 %v3989
        %6341 = vmatprep.subr.mxu0 0.0
        %6342 = vmatpush2.xpose.msra.mxu0 %v3986
        %6343 = vmatprep.subr.mxu0 0.0
        %6344 = vmatpush2.xpose.msra.mxu0 %v3983
        %6345 = vmatprep.subr.mxu0 0.0
        %6346 = vmatpush2.xpose.msra.mxu0 %v3980
        %6347 = vmatprep.subr.mxu0 0.0
        %6348 = vmatpush2.xpose.msra.mxu0 %v3977
        %6349 = vmatprep.subr.mxu0 0.0
        %6350 = vmatpush2.xpose.msra.mxu0 %v3974
        %6351 = vmatprep.subr.mxu0 0.0
        %6352 = vmatpush2.xpose.msra.mxu0 %v3971
        %6353 = vmatprep.subr.mxu0 0.0
        %6354 = vmatpush2.xpose.msra.mxu0 %v3968
        %6355 = vmatprep.mubr.f32.mxu0 0.0
        %6356 = vmatmul.mubr.f32.gmra.mxu0 %v1229
        %v6357 = vpop.f32.mrf.mxu0
        %v6358 = vadd.f32 %v1225, %v6357
        %v6359 = vpop.f32.mrf.mxu0
        %v6360 = vadd.f32 %v1225, %v6359
        %6361 = vdwg.mxu0
        %6362 = vmatprep.subr.mxu0 0.0
        %6363 = vmatpush1.xpose.msra.mxu0 %v4061
        %6364 = vmatprep.subr.mxu0 0.0
        %6365 = vmatpush1.xpose.msra.mxu0 %v4058
        %6366 = vmatprep.subr.mxu0 0.0
        %6367 = vmatpush1.xpose.msra.mxu0 %v4055
        %6368 = vmatprep.subr.mxu0 0.0
        %6369 = vmatpush1.xpose.msra.mxu0 %v4052
        %6370 = vmatprep.subr.mxu0 0.0
        %6371 = vmatpush1.xpose.msra.mxu0 %v4049
        %6372 = vmatprep.subr.mxu0 0.0
        %6373 = vmatpush1.xpose.msra.mxu0 %v4046
        %6374 = vmatprep.subr.mxu0 0.0
        %6375 = vmatpush1.xpose.msra.mxu0 %v4043
        %6376 = vmatprep.subr.mxu0 0.0
        %6377 = vmatpush1.xpose.msra.mxu0 %v4040
        %6378 = vmatprep.subr.mxu0 0.0
        %6379 = vmatpush1.xpose.msra.mxu0 %v4037
        %6380 = vmatprep.subr.mxu0 0.0
        %6381 = vmatpush1.xpose.msra.mxu0 %v4034
        %6382 = vmatprep.subr.mxu0 0.0
        %6383 = vmatpush1.xpose.msra.mxu0 %v4031
        %6384 = vmatprep.subr.mxu0 0.0
        %6385 = vmatpush1.xpose.msra.mxu0 %v4028
        %6386 = vmatprep.subr.mxu0 0.0
        %6387 = vmatpush1.xpose.msra.mxu0 %v4025
        %6388 = vmatprep.subr.mxu0 0.0
        %6389 = vmatpush1.xpose.msra.mxu0 %v4022
        %6390 = vmatprep.subr.mxu0 0.0
        %6391 = vmatpush1.xpose.msra.mxu0 %v4019
        %6392 = vmatprep.subr.mxu0 0.0
        %6393 = vmatpush1.xpose.msra.mxu0 %v4016
        %6394 = vmatprep.subr.mxu0 0.0
        %6395 = vmatpush2.xpose.msra.mxu0 %v4109
        %6396 = vmatprep.subr.mxu0 0.0
        %6397 = vmatpush2.xpose.msra.mxu0 %v4106
        %6398 = vmatprep.subr.mxu0 0.0
        %6399 = vmatpush2.xpose.msra.mxu0 %v4103
        %6400 = vmatprep.subr.mxu0 0.0
        %6401 = vmatpush2.xpose.msra.mxu0 %v4100
        %6402 = vmatprep.subr.mxu0 0.0
        %6403 = vmatpush2.xpose.msra.mxu0 %v4097
        %6404 = vmatprep.subr.mxu0 0.0
        %6405 = vmatpush2.xpose.msra.mxu0 %v4094
        %6406 = vmatprep.subr.mxu0 0.0
        %6407 = vmatpush2.xpose.msra.mxu0 %v4091
        %6408 = vmatprep.subr.mxu0 0.0
        %6409 = vmatpush2.xpose.msra.mxu0 %v4088
        %6410 = vmatprep.subr.mxu0 0.0
        %6411 = vmatpush2.xpose.msra.mxu0 %v4085
        %6412 = vmatprep.subr.mxu0 0.0
        %6413 = vmatpush2.xpose.msra.mxu0 %v4082
        %6414 = vmatprep.subr.mxu0 0.0
        %6415 = vmatpush2.xpose.msra.mxu0 %v4079
        %6416 = vmatprep.subr.mxu0 0.0
        %6417 = vmatpush2.xpose.msra.mxu0 %v4076
        %6418 = vmatprep.subr.mxu0 0.0
        %6419 = vmatpush2.xpose.msra.mxu0 %v4073
        %6420 = vmatprep.subr.mxu0 0.0
        %6421 = vmatpush2.xpose.msra.mxu0 %v4070
        %6422 = vmatprep.subr.mxu0 0.0
        %6423 = vmatpush2.xpose.msra.mxu0 %v4067
        %6424 = vmatprep.subr.mxu0 0.0
        %6425 = vmatpush2.xpose.msra.mxu0 %v4064
        %6426 = vmatprep.mubr.f32.mxu0 0.0
        %6427 = vmatmul.mubr.f32.gmra.mxu0 %v1229
        %v6428 = vpop.f32.mrf.mxu0
        %v6429 = vadd.f32 %v1225, %v6428
        %v6430 = vpop.f32.mrf.mxu0
        %v6431 = vadd.f32 %v1225, %v6430
        %6432 = vdwg.mxu0
        %6433 = vmatprep.subr.mxu0 0.0
        %6434 = vmatpush1.xpose.msra.mxu0 %v4157
        %6435 = vmatprep.subr.mxu0 0.0
        %6436 = vmatpush1.xpose.msra.mxu0 %v4154
        %6437 = vmatprep.subr.mxu0 0.0
        %6438 = vmatpush1.xpose.msra.mxu0 %v4151
        %6439 = vmatprep.subr.mxu0 0.0
        %6440 = vmatpush1.xpose.msra.mxu0 %v4148
        %6441 = vmatprep.subr.mxu0 0.0
        %6442 = vmatpush1.xpose.msra.mxu0 %v4145
        %6443 = vmatprep.subr.mxu0 0.0
        %6444 = vmatpush1.xpose.msra.mxu0 %v4142
        %6445 = vmatprep.subr.mxu0 0.0
        %6446 = vmatpush1.xpose.msra.mxu0 %v4139
        %6447 = vmatprep.subr.mxu0 0.0
        %6448 = vmatpush1.xpose.msra.mxu0 %v4136
        %6449 = vmatprep.subr.mxu0 0.0
        %6450 = vmatpush1.xpose.msra.mxu0 %v4133
        %6451 = vmatprep.subr.mxu0 0.0
        %6452 = vmatpush1.xpose.msra.mxu0 %v4130
        %6453 = vmatprep.subr.mxu0 0.0
        %6454 = vmatpush1.xpose.msra.mxu0 %v4127
        %6455 = vmatprep.subr.mxu0 0.0
        %6456 = vmatpush1.xpose.msra.mxu0 %v4124
        %6457 = vmatprep.subr.mxu0 0.0
        %6458 = vmatpush1.xpose.msra.mxu0 %v4121
        %6459 = vmatprep.subr.mxu0 0.0
        %6460 = vmatpush1.xpose.msra.mxu0 %v4118
        %6461 = vmatprep.subr.mxu0 0.0
        %6462 = vmatpush1.xpose.msra.mxu0 %v4115
        %6463 = vmatprep.subr.mxu0 0.0
        %6464 = vmatpush1.xpose.msra.mxu0 %v4112
        %6465 = vmatprep.subr.mxu0 0.0
        %6466 = vmatpush2.xpose.msra.mxu0 %v4205
        %6467 = vmatprep.subr.mxu0 0.0
        %6468 = vmatpush2.xpose.msra.mxu0 %v4202
        %6469 = vmatprep.subr.mxu0 0.0
        %6470 = vmatpush2.xpose.msra.mxu0 %v4199
        %6471 = vmatprep.subr.mxu0 0.0
        %6472 = vmatpush2.xpose.msra.mxu0 %v4196
        %6473 = vmatprep.subr.mxu0 0.0
        %6474 = vmatpush2.xpose.msra.mxu0 %v4193
        %6475 = vmatprep.subr.mxu0 0.0
        %6476 = vmatpush2.xpose.msra.mxu0 %v4190
        %6477 = vmatprep.subr.mxu0 0.0
        %6478 = vmatpush2.xpose.msra.mxu0 %v4187
        %6479 = vmatprep.subr.mxu0 0.0
        %6480 = vmatpush2.xpose.msra.mxu0 %v4184
        %6481 = vmatprep.subr.mxu0 0.0
        %6482 = vmatpush2.xpose.msra.mxu0 %v4181
        %6483 = vmatprep.subr.mxu0 0.0
        %6484 = vmatpush2.xpose.msra.mxu0 %v4178
        %6485 = vmatprep.subr.mxu0 0.0
        %6486 = vmatpush2.xpose.msra.mxu0 %v4175
        %6487 = vmatprep.subr.mxu0 0.0
        %6488 = vmatpush2.xpose.msra.mxu0 %v4172
        %6489 = vmatprep.subr.mxu0 0.0
        %6490 = vmatpush2.xpose.msra.mxu0 %v4169
        %6491 = vmatprep.subr.mxu0 0.0
        %6492 = vmatpush2.xpose.msra.mxu0 %v4166
        %6493 = vmatprep.subr.mxu0 0.0
        %6494 = vmatpush2.xpose.msra.mxu0 %v4163
        %6495 = vmatprep.subr.mxu0 0.0
        %6496 = vmatpush2.xpose.msra.mxu0 %v4160
        %6497 = vmatprep.mubr.f32.mxu0 0.0
        %6498 = vmatmul.mubr.f32.gmra.mxu0 %v1229
        %v6499 = vpop.f32.mrf.mxu0
        %v6500 = vadd.f32 %v1225, %v6499
        %v6501 = vpop.f32.mrf.mxu0
        %v6502 = vadd.f32 %v1225, %v6501
        %6503 = vdwg.mxu0
        %6504 = vmatprep.subr.mxu0 0.0
        %6505 = vmatpush1.xpose.msra.mxu0 %v4253
        %6506 = vmatprep.subr.mxu0 0.0
        %6507 = vmatpush1.xpose.msra.mxu0 %v4250
        %6508 = vmatprep.subr.mxu0 0.0
        %6509 = vmatpush1.xpose.msra.mxu0 %v4247
        %6510 = vmatprep.subr.mxu0 0.0
        %6511 = vmatpush1.xpose.msra.mxu0 %v4244
        %6512 = vmatprep.subr.mxu0 0.0
        %6513 = vmatpush1.xpose.msra.mxu0 %v4241
        %6514 = vmatprep.subr.mxu0 0.0
        %6515 = vmatpush1.xpose.msra.mxu0 %v4238
        %6516 = vmatprep.subr.mxu0 0.0
        %6517 = vmatpush1.xpose.msra.mxu0 %v4235
        %6518 = vmatprep.subr.mxu0 0.0
        %6519 = vmatpush1.xpose.msra.mxu0 %v4232
        %6520 = vmatprep.subr.mxu0 0.0
        %6521 = vmatpush1.xpose.msra.mxu0 %v4229
        %6522 = vmatprep.subr.mxu0 0.0
        %6523 = vmatpush1.xpose.msra.mxu0 %v4226
        %6524 = vmatprep.subr.mxu0 0.0
        %6525 = vmatpush1.xpose.msra.mxu0 %v4223
        %6526 = vmatprep.subr.mxu0 0.0
        %6527 = vmatpush1.xpose.msra.mxu0 %v4220
        %6528 = vmatprep.subr.mxu0 0.0
        %6529 = vmatpush1.xpose.msra.mxu0 %v4217
        %6530 = vmatprep.subr.mxu0 0.0
        %6531 = vmatpush1.xpose.msra.mxu0 %v4214
        %6532 = vmatprep.subr.mxu0 0.0
        %6533 = vmatpush1.xpose.msra.mxu0 %v4211
        %6534 = vmatprep.subr.mxu0 0.0
        %6535 = vmatpush1.xpose.msra.mxu0 %v4208
        %6536 = vmatprep.subr.mxu0 0.0
        %6537 = vmatpush2.xpose.msra.mxu0 %v4301
        %6538 = vmatprep.subr.mxu0 0.0
        %6539 = vmatpush2.xpose.msra.mxu0 %v4298
        %6540 = vmatprep.subr.mxu0 0.0
        %6541 = vmatpush2.xpose.msra.mxu0 %v4295
        %6542 = vmatprep.subr.mxu0 0.0
        %6543 = vmatpush2.xpose.msra.mxu0 %v4292
        %6544 = vmatprep.subr.mxu0 0.0
        %6545 = vmatpush2.xpose.msra.mxu0 %v4289
        %6546 = vmatprep.subr.mxu0 0.0
        %6547 = vmatpush2.xpose.msra.mxu0 %v4286
        %6548 = vmatprep.subr.mxu0 0.0
        %6549 = vmatpush2.xpose.msra.mxu0 %v4283
        %6550 = vmatprep.subr.mxu0 0.0
        %6551 = vmatpush2.xpose.msra.mxu0 %v4280
        %6552 = vmatprep.subr.mxu0 0.0
        %6553 = vmatpush2.xpose.msra.mxu0 %v4277
        %6554 = vmatprep.subr.mxu0 0.0
        %6555 = vmatpush2.xpose.msra.mxu0 %v4274
        %6556 = vmatprep.subr.mxu0 0.0
        %6557 = vmatpush2.xpose.msra.mxu0 %v4271
        %6558 = vmatprep.subr.mxu0 0.0
        %6559 = vmatpush2.xpose.msra.mxu0 %v4268
        %6560 = vmatprep.subr.mxu0 0.0
        %6561 = vmatpush2.xpose.msra.mxu0 %v4265
        %6562 = vmatprep.subr.mxu0 0.0
        %6563 = vmatpush2.xpose.msra.mxu0 %v4262
        %6564 = vmatprep.subr.mxu0 0.0
        %6565 = vmatpush2.xpose.msra.mxu0 %v4259
        %6566 = vmatprep.subr.mxu0 0.0
        %6567 = vmatpush2.xpose.msra.mxu0 %v4256
        %6568 = vmatprep.mubr.f32.mxu0 0.0
        %6569 = vmatmul.mubr.f32.gmra.mxu0 %v1229
        %v6570 = vpop.f32.mrf.mxu0
        %v6571 = vadd.f32 %v1225, %v6570
        %v6572 = vpop.f32.mrf.mxu0
        %v6573 = vadd.f32 %v1225, %v6572
        %6574 = vdwg.mxu0
        %v6639 = vcombine.low %v4370, %v4372
        %v6640 = vcombine.low %v4441, %v4443
        %v6641 = vcombine.low %v4512, %v4514
        %v6642 = vcombine.low %v4583, %v4585
        %v6643 = vcombine.low %v4654, %v4656
        %v6644 = vcombine.low %v4725, %v4727
        %v6645 = vcombine.low %v4796, %v4798
        %v6646 = vcombine.low %v4867, %v4869
        %v6647 = vcombine.low %v4938, %v4940
        %v6648 = vcombine.low %v5009, %v5011
        %v6649 = vcombine.low %v5080, %v5082
        %v6650 = vcombine.low %v5151, %v5153
        %v6651 = vcombine.low %v5222, %v5224
        %v6652 = vcombine.low %v5293, %v5295
        %v6653 = vcombine.low %v5364, %v5366
        %v6654 = vcombine.low %v5435, %v5437
        %v6655 = vcombine.low %v5506, %v5508
        %v6656 = vcombine.low %v5577, %v5579
        %v6657 = vcombine.low %v5648, %v5650
        %v6658 = vcombine.low %v5719, %v5721
        %v6659 = vcombine.low %v5790, %v5792
        %v6660 = vcombine.low %v5861, %v5863
        %v6661 = vcombine.low %v5932, %v5934
        %v6662 = vcombine.low %v6003, %v6005
        %v6663 = vcombine.low %v6074, %v6076
        %v6664 = vcombine.low %v6145, %v6147
        %v6665 = vcombine.low %v6216, %v6218
        %v6666 = vcombine.low %v6287, %v6289
        %v6667 = vcombine.low %v6358, %v6360
        %v6668 = vcombine.low %v6429, %v6431
        %v6669 = vcombine.low %v6500, %v6502
        %v6670 = vcombine.low %v6571, %v6573
        %6703 = vst [vmem:[%s176] sm:$0x77] %v6639
        %6704 = vst [vmem:[%s176 + $0x8] sm:$0x77] %v6640
        %6705 = vst [vmem:[%s176 + $0x10] sm:$0x77] %v6641
        %6706 = vst [vmem:[%s176 + $0x18] sm:$0x77] %v6642
        %6707 = vst [vmem:[%s176 + $0x20] sm:$0x77] %v6643
        %6708 = vst [vmem:[%s176 + $0x28] sm:$0x77] %v6644
        %6709 = vst [vmem:[%s176 + $0x30] sm:$0x77] %v6645
        %6710 = vst [vmem:[%s176 + $0x38] sm:$0x77] %v6646
        %6711 = vst [vmem:[%s176 + $0x40] sm:$0x77] %v6647
        %6712 = vst [vmem:[%s176 + $0x48] sm:$0x77] %v6648
        %6713 = vst [vmem:[%s176 + $0x50] sm:$0x77] %v6649
        %6714 = vst [vmem:[%s176 + $0x58] sm:$0x77] %v6650
        %6715 = vst [vmem:[%s176 + $0x60] sm:$0x77] %v6651
        %6716 = vst [vmem:[%s176 + $0x68] sm:$0x77] %v6652
        %6717 = vst [vmem:[%s176 + $0x70] sm:$0x77] %v6653
        %6718 = vst [vmem:[%s176 + $0x78] sm:$0x77] %v6654
        %6719 = vst [vmem:[%s176 + $0x80] sm:$0x77] %v6655
        %6720 = vst [vmem:[%s176 + $0x88] sm:$0x77] %v6656
        %6721 = vst [vmem:[%s176 + $0x90] sm:$0x77] %v6657
        %6722 = vst [vmem:[%s176 + $0x98] sm:$0x77] %v6658
        %6723 = vst [vmem:[%s176 + $0xa0] sm:$0x77] %v6659
        %6724 = vst [vmem:[%s176 + $0xa8] sm:$0x77] %v6660
        %6725 = vst [vmem:[%s176 + $0xb0] sm:$0x77] %v6661
        %6726 = vst [vmem:[%s176 + $0xb8] sm:$0x77] %v6662
        %6727 = vst [vmem:[%s176 + $0xc0] sm:$0x77] %v6663
        %6728 = vst [vmem:[%s176 + $0xc8] sm:$0x77] %v6664
        %6729 = vst [vmem:[%s176 + $0xd0] sm:$0x77] %v6665
        %6730 = vst [vmem:[%s176 + $0xd8] sm:$0x77] %v6666
        %6731 = vst [vmem:[%s176 + $0xe0] sm:$0x77] %v6667
        %6732 = vst [vmem:[%s176 + $0xe8] sm:$0x77] %v6668
        %6733 = vst [vmem:[%s176 + $0xf0] sm:$0x77] %v6669
        %6734 = vst [vmem:[%s176 + $0xf8] sm:$0x77] %v6670
        %s6735 = sand.u32 %s93, 1
        %s6736 = scalar_lea.sflag [#allocation3], %s6735
        %s6737 = sand.u32 %s93, 1
        %s6738 = smul.addr %s6737, 256
        %s6739 = scalar_lea.vmem [#allocation2], %s6738
        // Predicated region
        $region33: #{tpu_custom_call.1} parent=31 // pred_check
          %p6740 = pneg %p103
        $region34: #{tpu_custom_call.1} parent=31 // pred_check_branch
          %6742 = sbr.rel (%p6740) target = $region36
        $region35: #{tpu_custom_call.1} parent=31 // pred_region
          %s6743 = smul.u32 64, %s17
          %s6744 = ssub.s32 97, %s6743
          %p6745 = scmp.lt.s32.totalorder %s6744, 64
          %s6746 = scalar_select %p6745, %s6744, 64
          %s6747 = smul.u32 64, %s6746
          %s6749 = ssub.s32 4096, %s6747
          %6750 = vsyncadd %s6736, %s6749
          %p6751 = scmp.ne.s32.totalorder 0, %s6747
          %s6752 = smul.addr %s6743, 64
          %s6753 = scalar_lea.hbm %s3, %s6752
          %s6754 = smul.u32 %s6746, 4
          %s6755 = sshll.u32 %s6754, 4
          %s6756 = sshll.u32 %s6739, 4
          %s6757 = int_to_ptr.vmem [resolvable:$true] %s6756
          %6759 = dma.vmem_to_hbm [thread:$0]  (%p6751), %s6757, %s6755, %s6753, %s6736
        $region36: #{tpu_custom_call.1} parent=31 // pred_fallthru
          _
      $region32: #{tpu_custom_call.1} parent=5 // pred_fallthru
        _
      %p6760 = scmp.le.s32.totalorder 2, %s12
      // Predicated region
      $region37: #{tpu_custom_call.1} parent=5 // pred_check
        %p6761 = pneg %p6760
      $region38: #{tpu_custom_call.1} parent=5 // pred_check_branch
        %6763 = sbr.rel (%p6761) target = $region40
      $region39: #{tpu_custom_call.1} parent=5 // pred_region
        %s6764 = ssub.s32 %s12, 2
        // Predicated region
        $region41: #{tpu_custom_call.1} parent=39 // pred_check
          %p6765 = pneg %p109
        $region42: #{tpu_custom_call.1} parent=39 // pred_check_branch
          %6767 = sbr.rel (%p6765) target = $region44
        $region43: #{tpu_custom_call.1} parent=39 // pred_region
          %s6768 = sand.u32 %s94, 1
          %s6769 = scalar_lea.sflag [#allocation3], %s6768
          %s6770 = sand.u32 %s94, 1
          %s6771 = smul.addr %s6770, 256
          %s6772 = scalar_lea.vmem [#allocation2], %s6771
          %6773 = dma.done %s6769, 4096
        $region44: #{tpu_custom_call.1} parent=39 // pred_fallthru
          _
      $region40: #{tpu_custom_call.1} parent=5 // pred_fallthru
        _
    $region6: #{tpu_custom_call.1} parent=1 // loop_footer
      %s16 = sadd.s32 1, %s12
    $region7: #{tpu_custom_call.1} parent=1 // loop_footer_branch
      %11 = sbr.rel target = $region3
    $region8: #{tpu_custom_call.1} parent=1 // loop_exit
      _
    %6774 = vsyncpa [#allocation3], 1
    %s6775 = scalar_lea.sflag [#allocation3], 1
    %6776 = vsyncpa %s6775, 1

</llo_original>
